<compile_context>
chip_gen: v7x
topology: tpu7x:2x2x1
jax: 0.10.0
libtpu: 0.0.40
codegen_flags: <defaults>
</compile_context>

<pallas_src>
import jax
import jax.numpy as jnp
from jax.experimental import pallas as pl
from jax.experimental.pallas import tpu as pltpu

_VMEM = pl.BlockSpec(memory_space=pltpu.MemorySpace.VMEM)
LEAKY_SLOPE = 0.1
GN_EPS = 1e-5


# --------------------------------------------------------------------------
# In-kernel helpers (operate on traced values, shared by the fused kernels)
# --------------------------------------------------------------------------
def _leaky_relu(x):
    return jnp.where(x >= 0.0, x, LEAKY_SLOPE * x)


def _gn_apply(x, gamma, beta, sel, sel_t, inv_denom, with_relu):
    """GroupNorm with stats over (points x in-group channels).

    Vectorized with group-selector matmuls (sel: (C, G), sel_t: (G, C)) so
    there is no per-group loop and no partial-lane stores.
    """
    s1 = jnp.sum(x, axis=0, keepdims=True)                                    # (1, C)
    mu_g = jnp.dot(s1, sel, preferred_element_type=jnp.float32) * inv_denom   # (1, G)
    mu_c = jnp.dot(mu_g, sel_t, preferred_element_type=jnp.float32)           # (1, C)
    xc = x - mu_c
    s2 = jnp.sum(xc * xc, axis=0, keepdims=True)                              # (1, C)
    var_g = jnp.dot(s2, sel, preferred_element_type=jnp.float32) * inv_denom  # (1, G)
    inv_c = jnp.dot(jax.lax.rsqrt(var_g + GN_EPS), sel_t,
                    preferred_element_type=jnp.float32)                       # (1, C)
    y = xc * inv_c * gamma + beta
    if with_relu:
        y = _leaky_relu(y)
    return y


# --------------------------------------------------------------------------
# Fused Pallas kernels (single invocation, full-array VMEM blocks)
# --------------------------------------------------------------------------
def _make_kpconv_gn_kernel(m, h, k, cin, cout, inv_sigma, inv_denom, with_relu):
    def kernel(rel_ref, nfeat_t_ref, valid_ref, invcnt_ref,
               kp_t_ref, kp_sq_ref, w_ref, gamma_ref, beta_ref,
               sel_ref, sel_t_ref, o_ref, flat_ref):
        # ---- kernel-point influence weights via the distance identity ----
        rel = rel_ref[...]                                   # (m, h, 3)
        rel_f = rel.reshape(m * h, 3)                        # leading-dim merge only
        rel_sq = jnp.sum(rel_f * rel_f, axis=1, keepdims=True)      # (m*h, 1)
        dots = jnp.dot(rel_f, kp_t_ref[...],
                       preferred_element_type=jnp.float32)          # (m*h, k)
        sq = jnp.maximum(rel_sq - 2.0 * dots + kp_sq_ref[...], 0.0)  # (m*h, k)
        wk = jnp.maximum(1.0 - jnp.sqrt(sq) * inv_sigma, 0.0)        # linear influence
        wk = wk * valid_ref[...]                                     # shadow neighbors -> 0
        wk3 = wk.reshape(m, h, k)                                    # (m, h, k)

        # ---- H-contraction on the MXU, batched over points ----
        # nfeat_t: (m, cin, h); wk3: (m, h, k) -> weighted: (m, cin, k)
        weighted = jnp.einsum('mch,mhk->mck', nfeat_t_ref[...], wk3,
                              preferred_element_type=jnp.float32)

        # ---- assemble lane-dense (m, cin*k) and do ONE K*Cin-contraction matmul ----
        for c in range(cin):                                  # static, unrolled
            flat_ref[:, c * k:(c + 1) * k] = weighted[:, c, :]
        out = jnp.dot(flat_ref[...], w_ref[...],
                      preferred_element_type=jnp.float32)     # (m, cout)

        # ---- neighbor-count normalization (count from indices, precomputed) ----
        out = out * invcnt_ref[...]

        # ---- fused GroupNorm + LeakyReLU ----
        o_ref[...] = _gn_apply(out, gamma_ref[...], beta_ref[...],
                               sel_ref[...], sel_t_ref[...], inv_denom, with_relu)

    return kernel


def _make_unary_kernel(with_gn, with_relu, inv_denom):
    if with_gn:
        def kernel(x_ref, w_ref, b_ref, gamma_ref, beta_ref, sel_ref, sel_t_ref, o_ref):
            y = jnp.dot(x_ref[...], w_ref[...],
                        preferred_element_type=jnp.float32) + b_ref[...]
            o_ref[...] = _gn_apply(y, gamma_ref[...], beta_ref[...],
                                   sel_ref[...], sel_t_ref[...], inv_denom, with_relu)
    else:
        def kernel(x_ref, w_ref, b_ref, o_ref):
            o_ref[...] = jnp.dot(x_ref[...], w_ref[...],
                                 preferred_element_type=jnp.float32) + b_ref[...]
    return kernel


def _make_residual_tail_kernel(strided, has_sc_unary, inv_denom):
    def kernel(*refs):
        it = iter(refs)
        x_ref = next(it)          # (m, cmid)  output of conv + GN + lrelu
        sc_ref = next(it)         # (m, cin) or (m, h, cin) if strided (pre-masked)
        w2 = next(it); b2 = next(it); g2 = next(it); be2 = next(it)
        if has_sc_unary:
            ws = next(it); bs = next(it); gs = next(it); bes = next(it)
        sel = next(it); sel_t = next(it)
        o_ref = next(it)

        # unary2: linear + GN (no relu)
        y = jnp.dot(x_ref[...], w2[...],
                    preferred_element_type=jnp.float32) + b2[...]
        y = _gn_apply(y, g2[...], be2[...], sel[...], sel_t[...], inv_denom, False)

        # shortcut path
        if strided:
            sc = jnp.max(sc_ref[...], axis=1)        # max-pool over neighbors
        else:
            sc = sc_ref[...]
        if has_sc_unary:
            sc = jnp.dot(sc, ws[...], preferred_element_type=jnp.float32) + bs[...]
            sc = _gn_apply(sc, gs[...], bes[...], sel[...], sel_t[...], inv_denom, False)

        o_ref[...] = _leaky_relu(y + sc)

    return kernel


# --------------------------------------------------------------------------
# JAX glue: gathers (clamp + mask, no shadow-row concat) and kernel wiring
# --------------------------------------------------------------------------
def apply_kpconv_gn(kp_params, gn_params, sigma, s_feats, q_points, s_points,
                    neighbor_indices, with_relu=True):
    m, h = neighbor_indices.shape
    n_src = s_points.shape[0]
    cin = s_feats.shape[1]
    w_flat = kp_params['w_flat']                     # (cin*k, cout)
    cout = w_flat.shape[1]
    k = kp_params['kp_t'].shape[1]

    idx = jnp.minimum(neighbor_indices, n_src - 1)
    valid = neighbor_indices < n_src
    rel = jnp.take(s_points, idx, axis=0) - q_points[:, None, :]           # (m, h, 3)
    nfeat_t = jnp.transpose(jnp.take(s_feats, idx, axis=0), (0, 2, 1))     # (m, cin, h)
    validf = valid.astype(jnp.float32).reshape(m * h, 1)
    cnt = jnp.maximum(jnp.sum(valid, axis=1), 1).astype(jnp.float32)
    invcnt = (1.0 / cnt).reshape(m, 1)

    num_groups = gn_params['sel'].shape[1]
    inv_denom = 1.0 / float(m * (cout // num_groups))
    kernel = _make_kpconv_gn_kernel(m, h, k, cin, cout,
                                    1.0 / float(sigma), inv_denom, with_relu)
    return pl.pallas_call(
        kernel,
        out_shape=jax.ShapeDtypeStruct((m, cout), jnp.float32),
        in_specs=[_VMEM] * 11,
        out_specs=_VMEM,
        scratch_shapes=[pltpu.VMEM((m, cin * k), jnp.float32)],
    )(rel, nfeat_t, validf, invcnt, kp_params['kp_t'], kp_params['kp_sq'],
      w_flat, gn_params['gamma'], gn_params['beta'],
      gn_params['sel'], gn_params['sel_t'])


def apply_unary(p, x, with_relu=True):
    m = x.shape[0]
    cout = p['lin']['w'].shape[1]
    gn = p['gn']
    num_groups = gn['sel'].shape[1]
    inv_denom = 1.0 / float(m * (cout // num_groups))
    kernel = _make_unary_kernel(True, with_relu, inv_denom)
    return pl.pallas_call(
        kernel,
        out_shape=jax.ShapeDtypeStruct((m, cout), jnp.float32),
        in_specs=[_VMEM] * 7,
        out_specs=_VMEM,
    )(x, p['lin']['w'], p['lin']['b'], gn['gamma'], gn['beta'], gn['sel'], gn['sel_t'])


def apply_linear(p, x):
    m = x.shape[0]
    cout = p['w'].shape[1]
    kernel = _make_unary_kernel(False, False, 0.0)
    return pl.pallas_call(
        kernel,
        out_shape=jax.ShapeDtypeStruct((m, cout), jnp.float32),
        in_specs=[_VMEM] * 3,
        out_specs=_VMEM,
    )(x, p['w'], p['b'])


def apply_residual_tail(p, x_mid, shortcut_in, strided):
    m = x_mid.shape[0]
    u2 = p['unary2']
    cout = u2['lin']['w'].shape[1]
    gn2 = u2['gn']
    has_sc = p['unary_shortcut'] is not None
    num_groups = gn2['sel'].shape[1]
    inv_denom = 1.0 / float(m * (cout // num_groups))
    kernel = _make_residual_tail_kernel(strided, has_sc, inv_denom)

    args = [x_mid, shortcut_in, u2['lin']['w'], u2['lin']['b'],
            gn2['gamma'], gn2['beta']]
    if has_sc:
        su = p['unary_shortcut']
        args += [su['lin']['w'], su['lin']['b'], su['gn']['gamma'], su['gn']['beta']]
    args += [gn2['sel'], gn2['sel_t']]
    return pl.pallas_call(
        kernel,
        out_shape=jax.ShapeDtypeStruct((m, cout), jnp.float32),
        in_specs=[_VMEM] * len(args),
        out_specs=_VMEM,
    )(*args)


def nearest_upsample(x, upsample_indices):
    n = x.shape[0]
    idx0 = upsample_indices[:, 0]
    valid = (idx0 < n).astype(x.dtype)[:, None]
    return jnp.take(x, jnp.minimum(idx0, n - 1), axis=0) * valid


def apply_conv_block(p, s_feats, q_points, s_points, neighbor_indices):
    return apply_kpconv_gn(p['kpconv'], p['gn'], p['sigma'], s_feats,
                           q_points, s_points, neighbor_indices, with_relu=True)


def apply_residual_block(p, s_feats, q_points, s_points, neighbor_indices):
    if p['unary1'] is not None:
        x = apply_unary(p['unary1'], s_feats, with_relu=True)
    else:
        x = s_feats
    x = apply_kpconv_gn(p['kpconv'], p['gn_conv'], p['sigma'], x,
                        q_points, s_points, neighbor_indices, with_relu=True)
    if p['strided']:
        n_src = s_feats.shape[0]
        idx = jnp.minimum(neighbor_indices, n_src - 1)
        validf = (neighbor_indices < n_src).astype(jnp.float32)[:, :, None]
        shortcut_in = jnp.take(s_feats, idx, axis=0) * validf    # (m, h, cin), shadow -> 0
    else:
        shortcut_in = s_feats
    return apply_residual_tail(p, x, shortcut_in, p['strided'])


# --------------------------------------------------------------------------
# Deterministic parameter initialization (synthetic, no checkpoint load)
# --------------------------------------------------------------------------
def _group_selectors(c, num_groups):
    cg = c // num_groups
    cidx = jnp.arange(c) // cg
    sel = (cidx[:, None] == jnp.arange(num_groups)[None, :]).astype(jnp.float32)
    return sel, sel.T


def _init_linear(key, cin, cout):
    kw, kb = jax.random.split(key)
    w = jax.random.normal(kw, (cin, cout), jnp.float32) / jnp.sqrt(float(cin))
    b = 0.01 * jax.random.normal(kb, (1, cout), jnp.float32)
    return {'w': w, 'b': b}


def _init_gn(key, c, num_groups):
    kg, kb = jax.random.split(key)
    gamma = 1.0 + 0.05 * jax.random.normal(kg, (1, c), jnp.float32)
    beta = 0.05 * jax.random.normal(kb, (1, c), jnp.float32)
    sel, sel_t = _group_selectors(c, num_groups)
    return {'gamma': gamma, 'beta': beta, 'sel': sel, 'sel_t': sel_t}


def _init_kpconv(key, cin, cout, kernel_size, radius):
    kw, kp = jax.random.split(key)
    w = jax.random.normal(kw, (kernel_size, cin, cout), jnp.float32)
    w = w / jnp.sqrt(float(kernel_size * cin))
    # TODO(synk): real KPConv loads optimized kernel-point dispositions; we use
    # deterministic pseudo-random points inside the ball of `radius` instead.
    kpts = radius * jax.random.uniform(kp, (kernel_size, 3), jnp.float32,
                                       minval=-1.0, maxval=1.0)
    return {
        'w_flat': jnp.transpose(w, (1, 0, 2)).reshape(cin * kernel_size, cout),
        'kp_t': kpts.T,                                   # (3, K)
        'kp_sq': jnp.sum(kpts * kpts, axis=1).reshape(1, kernel_size),
    }


def _init_unary(key, cin, cout, num_groups):
    k1, k2 = jax.random.split(key)
    return {'lin': _init_linear(k1, cin, cout), 'gn': _init_gn(k2, cout, num_groups)}


def _init_conv_block(key, cin, cout, kernel_size, radius, sigma, num_groups):
    k1, k2 = jax.random.split(key)
    return {'kpconv': _init_kpconv(k1, cin, cout, kernel_size, radius),
            'gn': _init_gn(k2, cout, num_groups),
            'sigma': float(sigma)}


def _init_residual_block(key, cin, cout, kernel_size, radius, sigma, num_groups,
                         strided=False):
    mid = cout // 4
    ks = jax.random.split(key, 5)
    return {
        'unary1': _init_unary(ks[0], cin, mid, num_groups) if cin != mid else None,
        'kpconv': _init_kpconv(ks[1], mid, mid, kernel_size, radius),
        'gn_conv': _init_gn(ks[2], mid, num_groups),
        'unary2': _init_unary(ks[3], mid, cout, num_groups),
        'unary_shortcut': _init_unary(ks[4], cin, cout, num_groups) if cin != cout else None,
        'sigma': float(sigma),
        'strided': bool(strided),
    }


def init_kpconv_fpn(key, input_dim, output_dim, init_dim, kernel_size,
                    init_radius, init_sigma, group_norm):
    ks = jax.random.split(key, 13)
    r, s, d, g = init_radius, init_sigma, init_dim, group_norm
    return {
        'encoder1_1': _init_conv_block(ks[0], input_dim, d, kernel_size, r, s, g),
        'encoder1_2': _init_residual_block(ks[1], d, d * 2, kernel_size, r, s, g),
        'encoder2_1': _init_residual_block(ks[2], d * 2, d * 2, kernel_size, r, s, g, strided=True),
        'encoder2_2': _init_residual_block(ks[3], d * 2, d * 4, kernel_size, r * 2, s * 2, g),
        'encoder2_3': _init_residual_block(ks[4], d * 4, d * 4, kernel_size, r * 2, s * 2, g),
        'encoder3_1': _init_residual_block(ks[5], d * 4, d * 4, kernel_size, r * 2, s * 2, g, strided=True),
        'encoder3_2': _init_residual_block(ks[6], d * 4, d * 8, kernel_size, r * 4, s * 4, g),
        'encoder3_3': _init_residual_block(ks[7], d * 8, d * 8, kernel_size, r * 4, s * 4, g),
        'encoder4_1': _init_residual_block(ks[8], d * 8, d * 8, kernel_size, r * 4, s * 4, g, strided=True),
        'encoder4_2': _init_residual_block(ks[9], d * 8, d * 16, kernel_size, r * 8, s * 8, g),
        'encoder4_3': _init_residual_block(ks[10], d * 16, d * 16, kernel_size, r * 8, s * 8, g),
        'decoder3': _init_unary(ks[11], d * 24, d * 8, g),
        'decoder2': _init_linear(ks[12], d * 12, output_dim),
    }


# --------------------------------------------------------------------------
# KPConvFPN forward
# --------------------------------------------------------------------------
def kpconv_fpn_forward(params, feats, data_dict, num_groups):
    del num_groups  # group count is baked into the per-layer selector matrices
    points = data_dict['points']
    neighbors = data_dict['neighbors']
    subsampling = data_dict['subsampling']
    upsampling = data_dict['upsampling']

    feats_s1 = apply_conv_block(params['encoder1_1'], feats, points[0], points[0], neighbors[0])
    feats_s1 = apply_residual_block(params['encoder1_2'], feats_s1, points[0], points[0], neighbors[0])
    feats_s2 = apply_residual_block(params['encoder2_1'], feats_s1, points[1], points[0], subsampling[0])
    feats_s2 = apply_residual_block(params['encoder2_2'], feats_s2, points[1], points[1], neighbors[1])
    feats_s2 = apply_residual_block(params['encoder2_3'], feats_s2, points[1], points[1], neighbors[1])
    feats_s3 = apply_residual_block(params['encoder3_1'], feats_s2, points[2], points[1], subsampling[1])
    feats_s3 = apply_residual_block(params['encoder3_2'], feats_s3, points[2], points[2], neighbors[2])
    feats_s3 = apply_residual_block(params['encoder3_3'], feats_s3, points[2], points[2], neighbors[2])
    feats_s4 = apply_residual_block(params['encoder4_1'], feats_s3, points[3], points[2], subsampling[2])
    feats_s4 = apply_residual_block(params['encoder4_2'], feats_s4, points[3], points[3], neighbors[3])
    feats_s4 = apply_residual_block(params['encoder4_3'], feats_s4, points[3], points[3], neighbors[3])

    feats_list = [feats_s4]

    latent_s3 = nearest_upsample(feats_s4, upsampling[2])
    latent_s3 = jnp.concatenate([latent_s3, feats_s3], axis=1)
    latent_s3 = apply_unary(params['decoder3'], latent_s3, with_relu=True)
    feats_list.append(latent_s3)

    latent_s2 = nearest_upsample(latent_s3, upsampling[1])
    latent_s2 = jnp.concatenate([latent_s2, feats_s2], axis=1)
    latent_s2 = apply_linear(params['decoder2'], latent_s2)
    feats_list.append(latent_s2)

    feats_list.reverse()
    return feats_list


if __name__ == "__main__":
    input_dim, output_dim = 4, 32
    init_dim, kernel_size = 8, 15
    init_radius, init_sigma, group_norm = 0.1, 0.1, 4

    key = jax.random.PRNGKey(0)
    kparam, kdata = jax.random.split(key)
    params = init_kpconv_fpn(kparam, input_dim, output_dim, init_dim, kernel_size,
                             init_radius, init_sigma, group_norm)

    num_points = [32, 16, 8, 4]
    num_neighbors = 8
    dkeys = jax.random.split(kdata, 16)
    points = [0.3 * jax.random.uniform(dkeys[i], (num_points[i], 3), jnp.float32)
              for i in range(4)]
    neighbors = [jax.random.randint(dkeys[4 + i], (num_points[i], num_neighbors),
                                    0, num_points[i] + 1, jnp.int32) for i in range(4)]
    subsampling = [jax.random.randint(dkeys[8 + i], (num_points[i + 1], num_neighbors),
                                      0, num_points[i] + 1, jnp.int32) for i in range(3)]
    upsampling = [jax.random.randint(dkeys[11 + i], (num_points[i], num_neighbors),
                                     0, num_points[i + 1] + 1, jnp.int32) for i in range(3)]
    feats = jax.random.normal(dkeys[14], (num_points[0], input_dim), jnp.float32)

    data_dict = {'points': points, 'neighbors': neighbors,
                 'subsampling': subsampling, 'upsampling': upsampling}

    outs = kpconv_fpn_forward(params, feats, data_dict, group_norm)
    outs = jax.block_until_ready(outs)

    assert outs[0].shape == (num_points[1], output_dim)
    assert outs[1].shape == (num_points[2], init_dim * 8)
    assert outs[2].shape == (num_points[3], init_dim * 16)
    assert all(bool(jnp.all(jnp.isfinite(o))) for o in outs)
    print("KERNEL_OK")
</pallas_src>

<mosaic_0001>
module attributes {stable_mosaic.version = 11 : i64} {
  func.func @kernel(%arg0: memref<32x8x3xf32, #tpu.memory_space<vmem>>, %arg1: memref<32x4x8xf32, #tpu.memory_space<vmem>>, %arg2: memref<256x1xf32, #tpu.memory_space<vmem>>, %arg3: memref<32x1xf32, #tpu.memory_space<vmem>>, %arg4: memref<3x15xf32, #tpu.memory_space<vmem>>, %arg5: memref<1x15xf32, #tpu.memory_space<vmem>>, %arg6: memref<60x8xf32, #tpu.memory_space<vmem>>, %arg7: memref<1x8xf32, #tpu.memory_space<vmem>>, %arg8: memref<1x8xf32, #tpu.memory_space<vmem>>, %arg9: memref<8x4xf32, #tpu.memory_space<vmem>>, %arg10: memref<4x8xf32, #tpu.memory_space<vmem>>, %arg11: memref<32x8xf32, #tpu.memory_space<vmem>>, %arg12: memref<32x60xf32, #tpu.memory_space<vmem>>) attributes {dimension_semantics = [], scalar_prefetch = 0 : i64, scratch_operands = 1 : i64, tpu.core_type = #tpu.core_type<tc>} {
    %c0 = arith.constant 0 : index
    %c0_0 = arith.constant 0 : index
    %c0_1 = arith.constant 0 : index
    %0 = vector.load %arg0[%c0, %c0_0, %c0_1] : memref<32x8x3xf32, #tpu.memory_space<vmem>>, vector<32x8x3xf32>
    %1 = vector.shape_cast %0 : vector<32x8x3xf32> to vector<256x3xf32>
    %2 = arith.mulf %1, %1 : vector<256x3xf32>
    %cst = arith.constant dense<0.000000e+00> : vector<256xf32>
    %3 = vector.multi_reduction <add>, %2, %cst [1] : vector<256x3xf32> to vector<256xf32>
    %4 = vector.shape_cast %3 : vector<256xf32> to vector<256x1xf32>
    %c0_2 = arith.constant 0 : index
    %c0_3 = arith.constant 0 : index
    %5 = vector.load %arg4[%c0_2, %c0_3] : memref<3x15xf32, #tpu.memory_space<vmem>>, vector<3x15xf32>
    %cst_4 = arith.constant dense<0.000000e+00> : vector<256x15xf32>
    %6 = tpu.matmul %1, %5, %cst_4 {dimension_numbers = #tpu.dot_dimension_numbers<[1], [0], [0], [1], [0, 0, 1, 1], [], []>} : vector<256x3xf32>, vector<3x15xf32>, vector<256x15xf32> -> vector<256x15xf32>
    %cst_5 = arith.constant 2.000000e+00 : f32
    %7 = vector.broadcast %cst_5 : f32 to vector<256x15xf32>
    %8 = arith.mulf %7, %6 : vector<256x15xf32>
    %9 = vector.broadcast %4 : vector<256x1xf32> to vector<256x15xf32>
    %10 = arith.subf %9, %8 : vector<256x15xf32>
    %c0_6 = arith.constant 0 : index
    %c0_7 = arith.constant 0 : index
    %11 = vector.load %arg5[%c0_6, %c0_7] : memref<1x15xf32, #tpu.memory_space<vmem>>, vector<1x15xf32>
    %12 = vector.broadcast %11 : vector<1x15xf32> to vector<256x15xf32>
    %13 = arith.addf %10, %12 : vector<256x15xf32>
    %cst_8 = arith.constant 0.000000e+00 : f32
    %14 = vector.broadcast %cst_8 : f32 to vector<256x15xf32>
    %15 = arith.maximumf %13, %14 : vector<256x15xf32>
    %16 = math.sqrt %15 : vector<256x15xf32>
    %cst_9 = arith.constant 1.000000e+01 : f32
    %17 = vector.broadcast %cst_9 : f32 to vector<256x15xf32>
    %18 = arith.mulf %16, %17 : vector<256x15xf32>
    %cst_10 = arith.constant 1.000000e+00 : f32
    %19 = vector.broadcast %cst_10 : f32 to vector<256x15xf32>
    %20 = arith.subf %19, %18 : vector<256x15xf32>
    %cst_11 = arith.constant 0.000000e+00 : f32
    %21 = vector.broadcast %cst_11 : f32 to vector<256x15xf32>
    %22 = arith.maximumf %20, %21 : vector<256x15xf32>
    %c0_12 = arith.constant 0 : index
    %c0_13 = arith.constant 0 : index
    %23 = vector.load %arg2[%c0_12, %c0_13] : memref<256x1xf32, #tpu.memory_space<vmem>>, vector<256x1xf32>
    %24 = vector.broadcast %23 : vector<256x1xf32> to vector<256x15xf32>
    %25 = arith.mulf %22, %24 : vector<256x15xf32>
    %26 = vector.shape_cast %25 : vector<256x15xf32> to vector<32x8x15xf32>
    %c0_14 = arith.constant 0 : index
    %c0_15 = arith.constant 0 : index
    %c0_16 = arith.constant 0 : index
    %27 = vector.load %arg1[%c0_14, %c0_15, %c0_16] : memref<32x4x8xf32, #tpu.memory_space<vmem>>, vector<32x4x8xf32>
    "tpu.trace_start"() <{level = 10 : i32, message = "mch,mhk->mck"}> : () -> ()
    %cst_17 = arith.constant dense<0.000000e+00> : vector<32x4x15xf32>
    %28 = tpu.matmul %27, %26, %cst_17 {dimension_numbers = #tpu.dot_dimension_numbers<[2], [1], [1], [2], [0, 0, 0, 1, 1, 2], [0], [0]>} : vector<32x4x8xf32>, vector<32x8x15xf32>, vector<32x4x15xf32> -> vector<32x4x15xf32>
    "tpu.trace_stop"() : () -> ()
    %29 = vector.extract_strided_slice %28 {offsets = [0, 0, 0], sizes = [32, 1, 15], strides = [1, 1, 1]} : vector<32x4x15xf32> to vector<32x1x15xf32>
    %30 = vector.shape_cast %29 : vector<32x1x15xf32> to vector<32x15xf32>
    %c0_18 = arith.constant 0 : index
    %c0_19 = arith.constant 0 : index
    %31 = vector.load %arg12[%c0_18, %c0_19] : memref<32x60xf32, #tpu.memory_space<vmem>>, vector<32x15xf32>
    tpu.vector_store %arg12[%c0_18, %c0_19], %30 {strides = array<i32>} : memref<32x60xf32, #tpu.memory_space<vmem>>, vector<32x15xf32>,
    %32 = vector.extract_strided_slice %28 {offsets = [0, 1, 0], sizes = [32, 1, 15], strides = [1, 1, 1]} : vector<32x4x15xf32> to vector<32x1x15xf32>
    %33 = vector.shape_cast %32 : vector<32x1x15xf32> to vector<32x15xf32>
    %c0_20 = arith.constant 0 : index
    %c15 = arith.constant 15 : index
    %34 = vector.load %arg12[%c0_20, %c15] : memref<32x60xf32, #tpu.memory_space<vmem>>, vector<32x15xf32>
    tpu.vector_store %arg12[%c0_20, %c15], %33 {strides = array<i32>} : memref<32x60xf32, #tpu.memory_space<vmem>>, vector<32x15xf32>,
    %35 = vector.extract_strided_slice %28 {offsets = [0, 2, 0], sizes = [32, 1, 15], strides = [1, 1, 1]} : vector<32x4x15xf32> to vector<32x1x15xf32>
    %36 = vector.shape_cast %35 : vector<32x1x15xf32> to vector<32x15xf32>
    %c0_21 = arith.constant 0 : index
    %c30 = arith.constant 30 : index
    %37 = vector.load %arg12[%c0_21, %c30] : memref<32x60xf32, #tpu.memory_space<vmem>>, vector<32x15xf32>
    tpu.vector_store %arg12[%c0_21, %c30], %36 {strides = array<i32>} : memref<32x60xf32, #tpu.memory_space<vmem>>, vector<32x15xf32>,
    %38 = vector.extract_strided_slice %28 {offsets = [0, 3, 0], sizes = [32, 1, 15], strides = [1, 1, 1]} : vector<32x4x15xf32> to vector<32x1x15xf32>
    %39 = vector.shape_cast %38 : vector<32x1x15xf32> to vector<32x15xf32>
    %c0_22 = arith.constant 0 : index
    %c45 = arith.constant 45 : index
    %40 = vector.load %arg12[%c0_22, %c45] : memref<32x60xf32, #tpu.memory_space<vmem>>, vector<32x15xf32>
    tpu.vector_store %arg12[%c0_22, %c45], %39 {strides = array<i32>} : memref<32x60xf32, #tpu.memory_space<vmem>>, vector<32x15xf32>,
    %c0_23 = arith.constant 0 : index
    %c0_24 = arith.constant 0 : index
    %41 = vector.load %arg12[%c0_23, %c0_24] : memref<32x60xf32, #tpu.memory_space<vmem>>, vector<32x60xf32>
    %c0_25 = arith.constant 0 : index
    %c0_26 = arith.constant 0 : index
    %42 = vector.load %arg6[%c0_25, %c0_26] : memref<60x8xf32, #tpu.memory_space<vmem>>, vector<60x8xf32>
    %cst_27 = arith.constant dense<0.000000e+00> : vector<32x8xf32>
    %43 = tpu.matmul %41, %42, %cst_27 {dimension_numbers = #tpu.dot_dimension_numbers<[1], [0], [0], [1], [0, 0, 1, 1], [], []>} : vector<32x60xf32>, vector<60x8xf32>, vector<32x8xf32> -> vector<32x8xf32>
    %c0_28 = arith.constant 0 : index
    %c0_29 = arith.constant 0 : index
    %44 = vector.load %arg3[%c0_28, %c0_29] : memref<32x1xf32, #tpu.memory_space<vmem>>, vector<32x1xf32>
    %45 = vector.broadcast %44 : vector<32x1xf32> to vector<32x8xf32>
    %46 = arith.mulf %43, %45 : vector<32x8xf32>
    %c0_30 = arith.constant 0 : index
    %c0_31 = arith.constant 0 : index
    %47 = vector.load %arg7[%c0_30, %c0_31] : memref<1x8xf32, #tpu.memory_space<vmem>>, vector<1x8xf32>
    %c0_32 = arith.constant 0 : index
    %c0_33 = arith.constant 0 : index
    %48 = vector.load %arg8[%c0_32, %c0_33] : memref<1x8xf32, #tpu.memory_space<vmem>>, vector<1x8xf32>
    %c0_34 = arith.constant 0 : index
    %c0_35 = arith.constant 0 : index
    %49 = vector.load %arg9[%c0_34, %c0_35] : memref<8x4xf32, #tpu.memory_space<vmem>>, vector<8x4xf32>
    %c0_36 = arith.constant 0 : index
    %c0_37 = arith.constant 0 : index
    %50 = vector.load %arg10[%c0_36, %c0_37] : memref<4x8xf32, #tpu.memory_space<vmem>>, vector<4x8xf32>
    %cst_38 = arith.constant dense<0.000000e+00> : vector<8xf32>
    %51 = vector.multi_reduction <add>, %46, %cst_38 [0] : vector<32x8xf32> to vector<8xf32>
    %52 = vector.shape_cast %51 : vector<8xf32> to vector<1x8xf32>
    %cst_39 = arith.constant dense<0.000000e+00> : vector<1x4xf32>
    %53 = tpu.matmul %52, %49, %cst_39 {dimension_numbers = #tpu.dot_dimension_numbers<[1], [0], [0], [1], [0, 0, 1, 1], [], []>} : vector<1x8xf32>, vector<8x4xf32>, vector<1x4xf32> -> vector<1x4xf32>
    %cst_40 = arith.constant 1.562500e-02 : f32
    %54 = vector.broadcast %cst_40 : f32 to vector<1x4xf32>
    %55 = arith.mulf %53, %54 : vector<1x4xf32>
    %cst_41 = arith.constant dense<0.000000e+00> : vector<1x8xf32>
    %56 = tpu.matmul %55, %50, %cst_41 {dimension_numbers = #tpu.dot_dimension_numbers<[1], [0], [0], [1], [0, 0, 1, 1], [], []>} : vector<1x4xf32>, vector<4x8xf32>, vector<1x8xf32> -> vector<1x8xf32>
    %57 = vector.broadcast %56 : vector<1x8xf32> to vector<32x8xf32>
    %58 = arith.subf %46, %57 : vector<32x8xf32>
    %59 = arith.mulf %58, %58 : vector<32x8xf32>
    %cst_42 = arith.constant dense<0.000000e+00> : vector<8xf32>
    %60 = vector.multi_reduction <add>, %59, %cst_42 [0] : vector<32x8xf32> to vector<8xf32>
    %61 = vector.shape_cast %60 : vector<8xf32> to vector<1x8xf32>
    %cst_43 = arith.constant dense<0.000000e+00> : vector<1x4xf32>
    %62 = tpu.matmul %61, %49, %cst_43 {dimension_numbers = #tpu.dot_dimension_numbers<[1], [0], [0], [1], [0, 0, 1, 1], [], []>} : vector<1x8xf32>, vector<8x4xf32>, vector<1x4xf32> -> vector<1x4xf32>
    %cst_44 = arith.constant 1.562500e-02 : f32
    %63 = vector.broadcast %cst_44 : f32 to vector<1x4xf32>
    %64 = arith.mulf %62, %63 : vector<1x4xf32>
    %cst_45 = arith.constant 9.99999974E-6 : f32
    %65 = vector.broadcast %cst_45 : f32 to vector<1x4xf32>
    %66 = arith.addf %64, %65 : vector<1x4xf32>
    %67 = math.rsqrt %66 : vector<1x4xf32>
    %cst_46 = arith.constant dense<0.000000e+00> : vector<1x8xf32>
    %68 = tpu.matmul %67, %50, %cst_46 {dimension_numbers = #tpu.dot_dimension_numbers<[1], [0], [0], [1], [0, 0, 1, 1], [], []>} : vector<1x4xf32>, vector<4x8xf32>, vector<1x8xf32> -> vector<1x8xf32>
    %69 = vector.broadcast %68 : vector<1x8xf32> to vector<32x8xf32>
    %70 = arith.mulf %58, %69 : vector<32x8xf32>
    %71 = vector.broadcast %47 : vector<1x8xf32> to vector<32x8xf32>
    %72 = arith.mulf %70, %71 : vector<32x8xf32>
    %73 = vector.broadcast %48 : vector<1x8xf32> to vector<32x8xf32>
    %74 = arith.addf %72, %73 : vector<32x8xf32>
    %cst_47 = arith.constant 0.000000e+00 : f32
    %75 = vector.broadcast %cst_47 : f32 to vector<32x8xf32>
    %76 = arith.cmpf oge, %74, %75 : vector<32x8xf32>
    %cst_48 = arith.constant 1.000000e-01 : f32
    %77 = vector.broadcast %cst_48 : f32 to vector<32x8xf32>
    %78 = arith.mulf %77, %74 : vector<32x8xf32>
    %79 = arith.select %76, %74, %78 : vector<32x8xi1>, vector<32x8xf32>
    %c0_49 = arith.constant 0 : index
    %c0_50 = arith.constant 0 : index
    %80 = vector.load %arg11[%c0_49, %c0_50] : memref<32x8xf32, #tpu.memory_space<vmem>>, vector<32x8xf32>
    tpu.vector_store %arg11[%c0_49, %c0_50], %79 {strides = array<i32>} : memref<32x8xf32, #tpu.memory_space<vmem>>, vector<32x8xf32>,
    return
  }
}

</mosaic_0001>

<llo_original>
// kernel: tpu_custom_call.1
$region0: #{tpu_custom_call.1}
  #allocation0 [shape = 'u32[]', space=smem, size = 0x4, offset = 0x4, fixed_abs, tag = 'smem constant byte address 0x4 - core index']
  #allocation1 [shape = 'u32[144,128]{1,0:T(1,128)}', space=vmem, size = 0x12000, scoped, tag = 'internal scratch']
  #allocation2 [shape = 'f32[32,60]{1,0:T(8,128)}', space=vmem, size = 0x4000, scoped, tag = 'scratch operand']
  %s0 = inlined_call_operand.vmem [shape: f32[32,8,3], index: 0, kind: input, shape index: {}]
  %s1 = inlined_call_operand.vmem [shape: f32[32,4,8], index: 1, kind: input, shape index: {}]
  %s2 = inlined_call_operand.vmem [shape: f32[256,1], index: 2, kind: input, shape index: {}]
  %s3 = inlined_call_operand.vmem [shape: f32[32,1], index: 3, kind: input, shape index: {}]
  %s4 = inlined_call_operand.vmem [shape: f32[3,15], index: 4, kind: input, shape index: {}]
  %s5 = inlined_call_operand.vmem [shape: f32[1,15], index: 5, kind: input, shape index: {}]
  %s6 = inlined_call_operand.vmem [shape: f32[60,8], index: 6, kind: input, shape index: {}]
  %s7 = inlined_call_operand.vmem [shape: f32[1,8], index: 7, kind: input, shape index: {}]
  %s8 = inlined_call_operand.vmem [shape: f32[1,8], index: 8, kind: input, shape index: {}]
  %s9 = inlined_call_operand.vmem [shape: f32[8,4], index: 9, kind: input, shape index: {}]
  %s10 = inlined_call_operand.vmem [shape: f32[4,8], index: 10, kind: input, shape index: {}]
  %s11 = inlined_call_operand.vmem [shape: f32[32,8], index: 11, kind: output, shape index: {}]
  %s12 = sld [smem:[#allocation0]]
  $region54: #{tpu_custom_call.1} parent=0
    _
  %s14 = ssub.s32 1, %s12
  %s15 = scalar_select 0, %s14, %s12
  // Predicated region
  $region2: #{tpu_custom_call.1} parent=0 // pred_check
    _
  $region3: #{tpu_custom_call.1} parent=0 // pred_check_branch
    %17 = sbr.rel (0) target = $region5
  $region4: #{tpu_custom_call.1} parent=0 // pred_region
    _
  $region5: #{tpu_custom_call.1} parent=0 // pred_fallthru
    _
  // Predicated region
  $region6: #{tpu_custom_call.1} parent=0 // pred_check
    _
  $region7: #{tpu_custom_call.1} parent=0 // pred_check_branch
    %19 = sbr.rel (0) target = $region9
  $region8: #{tpu_custom_call.1} parent=0 // pred_region
    _
  $region9: #{tpu_custom_call.1} parent=0 // pred_fallthru
    _
  // Predicated region
  $region10: #{tpu_custom_call.1} parent=0 // pred_check
    _
  $region11: #{tpu_custom_call.1} parent=0 // pred_check_branch
    %21 = sbr.rel (0) target = $region13
  $region12: #{tpu_custom_call.1} parent=0 // pred_region
    _
  $region13: #{tpu_custom_call.1} parent=0 // pred_fallthru
    _
  // Predicated region
  $region14: #{tpu_custom_call.1} parent=0 // pred_check
    _
  $region15: #{tpu_custom_call.1} parent=0 // pred_check_branch
    %23 = sbr.rel (0) target = $region17
  $region16: #{tpu_custom_call.1} parent=0 // pred_region
    _
  $region17: #{tpu_custom_call.1} parent=0 // pred_fallthru
    _
  // Predicated region
  $region18: #{tpu_custom_call.1} parent=0 // pred_check
    _
  $region19: #{tpu_custom_call.1} parent=0 // pred_check_branch
    %25 = sbr.rel (0) target = $region21
  $region20: #{tpu_custom_call.1} parent=0 // pred_region
    _
  $region21: #{tpu_custom_call.1} parent=0 // pred_fallthru
    _
  // Predicated region
  $region22: #{tpu_custom_call.1} parent=0 // pred_check
    _
  $region23: #{tpu_custom_call.1} parent=0 // pred_check_branch
    %27 = sbr.rel (0) target = $region25
  $region24: #{tpu_custom_call.1} parent=0 // pred_region
    _
  $region25: #{tpu_custom_call.1} parent=0 // pred_fallthru
    _
  // Predicated region
  $region26: #{tpu_custom_call.1} parent=0 // pred_check
    _
  $region27: #{tpu_custom_call.1} parent=0 // pred_check_branch
    %29 = sbr.rel (0) target = $region29
  $region28: #{tpu_custom_call.1} parent=0 // pred_region
    _
  $region29: #{tpu_custom_call.1} parent=0 // pred_fallthru
    _
  // Predicated region
  $region30: #{tpu_custom_call.1} parent=0 // pred_check
    _
  $region31: #{tpu_custom_call.1} parent=0 // pred_check_branch
    %31 = sbr.rel (0) target = $region33
  $region32: #{tpu_custom_call.1} parent=0 // pred_region
    _
  $region33: #{tpu_custom_call.1} parent=0 // pred_fallthru
    _
  // Predicated region
  $region34: #{tpu_custom_call.1} parent=0 // pred_check
    _
  $region35: #{tpu_custom_call.1} parent=0 // pred_check_branch
    %33 = sbr.rel (0) target = $region37
  $region36: #{tpu_custom_call.1} parent=0 // pred_region
    _
  $region37: #{tpu_custom_call.1} parent=0 // pred_fallthru
    _
  // Predicated region
  $region38: #{tpu_custom_call.1} parent=0 // pred_check
    _
  $region39: #{tpu_custom_call.1} parent=0 // pred_check_branch
    %35 = sbr.rel (0) target = $region41
  $region40: #{tpu_custom_call.1} parent=0 // pred_region
    _
  $region41: #{tpu_custom_call.1} parent=0 // pred_fallthru
    _
  // Predicated region
  $region42: #{tpu_custom_call.1} parent=0 // pred_check
    _
  $region43: #{tpu_custom_call.1} parent=0 // pred_check_branch
    %37 = sbr.rel (0) target = $region45
  $region44: #{tpu_custom_call.1} parent=0 // pred_region
    _
  $region45: #{tpu_custom_call.1} parent=0 // pred_fallthru
    _
  %v38 = vld [vmem:[%s0] sm:$0xff]
  %v39 = vld [vmem:[%s0 + $0x8] sm:$0xff]
  %v40 = vld [vmem:[%s0 + $0x10] sm:$0xff]
  %v41 = vld [vmem:[%s0 + $0x18] sm:$0xff]
  %v42 = vld [vmem:[%s0 + $0x20] sm:$0xff]
  %v43 = vld [vmem:[%s0 + $0x28] sm:$0xff]
  %v44 = vld [vmem:[%s0 + $0x30] sm:$0xff]
  %v45 = vld [vmem:[%s0 + $0x38] sm:$0xff]
  %v46 = vld [vmem:[%s0 + $0x40] sm:$0xff]
  %v47 = vld [vmem:[%s0 + $0x48] sm:$0xff]
  %v48 = vld [vmem:[%s0 + $0x50] sm:$0xff]
  %v49 = vld [vmem:[%s0 + $0x58] sm:$0xff]
  %v50 = vld [vmem:[%s0 + $0x60] sm:$0xff]
  %v51 = vld [vmem:[%s0 + $0x68] sm:$0xff]
  %v52 = vld [vmem:[%s0 + $0x70] sm:$0xff]
  %v53 = vld [vmem:[%s0 + $0x78] sm:$0xff]
  %v54 = vld [vmem:[%s0 + $0x80] sm:$0xff]
  %v55 = vld [vmem:[%s0 + $0x88] sm:$0xff]
  %v56 = vld [vmem:[%s0 + $0x90] sm:$0xff]
  %v57 = vld [vmem:[%s0 + $0x98] sm:$0xff]
  %v58 = vld [vmem:[%s0 + $0xa0] sm:$0xff]
  %v59 = vld [vmem:[%s0 + $0xa8] sm:$0xff]
  %v60 = vld [vmem:[%s0 + $0xb0] sm:$0xff]
  %v61 = vld [vmem:[%s0 + $0xb8] sm:$0xff]
  %v62 = vld [vmem:[%s0 + $0xc0] sm:$0xff]
  %v63 = vld [vmem:[%s0 + $0xc8] sm:$0xff]
  %v64 = vld [vmem:[%s0 + $0xd0] sm:$0xff]
  %v65 = vld [vmem:[%s0 + $0xd8] sm:$0xff]
  %v66 = vld [vmem:[%s0 + $0xe0] sm:$0xff]
  %v67 = vld [vmem:[%s0 + $0xe8] sm:$0xff]
  %v68 = vld [vmem:[%s0 + $0xf0] sm:$0xff]
  %v69 = vld [vmem:[%s0 + $0xf8] sm:$0xff]
  %v70 = vmul.f32 %v38, %v38
  %v71 = vmul.f32 %v39, %v39
  %v72 = vmul.f32 %v40, %v40
  %v73 = vmul.f32 %v41, %v41
  %v74 = vmul.f32 %v42, %v42
  %v75 = vmul.f32 %v43, %v43
  %v76 = vmul.f32 %v44, %v44
  %v77 = vmul.f32 %v45, %v45
  %v78 = vmul.f32 %v46, %v46
  %v79 = vmul.f32 %v47, %v47
  %v80 = vmul.f32 %v48, %v48
  %v81 = vmul.f32 %v49, %v49
  %v82 = vmul.f32 %v50, %v50
  %v83 = vmul.f32 %v51, %v51
  %v84 = vmul.f32 %v52, %v52
  %v85 = vmul.f32 %v53, %v53
  %v86 = vmul.f32 %v54, %v54
  %v87 = vmul.f32 %v55, %v55
  %v88 = vmul.f32 %v56, %v56
  %v89 = vmul.f32 %v57, %v57
  %v90 = vmul.f32 %v58, %v58
  %v91 = vmul.f32 %v59, %v59
  %v92 = vmul.f32 %v60, %v60
  %v93 = vmul.f32 %v61, %v61
  %v94 = vmul.f32 %v62, %v62
  %v95 = vmul.f32 %v63, %v63
  %v96 = vmul.f32 %v64, %v64
  %v97 = vmul.f32 %v65, %v65
  %v98 = vmul.f32 %v66, %v66
  %v99 = vmul.f32 %v67, %v67
  %v100 = vmul.f32 %v68, %v68
  %v101 = vmul.f32 %v69, %v69
  %vm102 = vcmask 23552
  %v103 = vsel %vm102, %v70, 0.0
  %104 = vadd.xlane.f32.xlu0 %v103
  %v105 = vpop.xlane.xlu0 %104
  %v106 = vsel %vm102, %v71, 0.0
  %107 = vadd.xlane.f32.xlu0 %v106
  %v108 = vpop.xlane.xlu0 %107
  %v109 = vsel %vm102, %v72, 0.0
  %110 = vadd.xlane.f32.xlu0 %v109
  %v111 = vpop.xlane.xlu0 %110
  %v112 = vsel %vm102, %v73, 0.0
  %113 = vadd.xlane.f32.xlu0 %v112
  %v114 = vpop.xlane.xlu0 %113
  %v115 = vsel %vm102, %v74, 0.0
  %116 = vadd.xlane.f32.xlu0 %v115
  %v117 = vpop.xlane.xlu0 %116
  %v118 = vsel %vm102, %v75, 0.0
  %119 = vadd.xlane.f32.xlu0 %v118
  %v120 = vpop.xlane.xlu0 %119
  %v121 = vsel %vm102, %v76, 0.0
  %122 = vadd.xlane.f32.xlu0 %v121
  %v123 = vpop.xlane.xlu0 %122
  %v124 = vsel %vm102, %v77, 0.0
  %125 = vadd.xlane.f32.xlu0 %v124
  %v126 = vpop.xlane.xlu0 %125
  %v127 = vsel %vm102, %v78, 0.0
  %128 = vadd.xlane.f32.xlu0 %v127
  %v129 = vpop.xlane.xlu0 %128
  %v130 = vsel %vm102, %v79, 0.0
  %131 = vadd.xlane.f32.xlu0 %v130
  %v132 = vpop.xlane.xlu0 %131
  %v133 = vsel %vm102, %v80, 0.0
  %134 = vadd.xlane.f32.xlu0 %v133
  %v135 = vpop.xlane.xlu0 %134
  %v136 = vsel %vm102, %v81, 0.0
  %137 = vadd.xlane.f32.xlu0 %v136
  %v138 = vpop.xlane.xlu0 %137
  %v139 = vsel %vm102, %v82, 0.0
  %140 = vadd.xlane.f32.xlu0 %v139
  %v141 = vpop.xlane.xlu0 %140
  %v142 = vsel %vm102, %v83, 0.0
  %143 = vadd.xlane.f32.xlu0 %v142
  %v144 = vpop.xlane.xlu0 %143
  %v145 = vsel %vm102, %v84, 0.0
  %146 = vadd.xlane.f32.xlu0 %v145
  %v147 = vpop.xlane.xlu0 %146
  %v148 = vsel %vm102, %v85, 0.0
  %149 = vadd.xlane.f32.xlu0 %v148
  %v150 = vpop.xlane.xlu0 %149
  %v151 = vsel %vm102, %v86, 0.0
  %152 = vadd.xlane.f32.xlu0 %v151
  %v153 = vpop.xlane.xlu0 %152
  %v154 = vsel %vm102, %v87, 0.0
  %155 = vadd.xlane.f32.xlu0 %v154
  %v156 = vpop.xlane.xlu0 %155
  %v157 = vsel %vm102, %v88, 0.0
  %158 = vadd.xlane.f32.xlu0 %v157
  %v159 = vpop.xlane.xlu0 %158
  %v160 = vsel %vm102, %v89, 0.0
  %161 = vadd.xlane.f32.xlu0 %v160
  %v162 = vpop.xlane.xlu0 %161
  %v163 = vsel %vm102, %v90, 0.0
  %164 = vadd.xlane.f32.xlu0 %v163
  %v165 = vpop.xlane.xlu0 %164
  %v166 = vsel %vm102, %v91, 0.0
  %167 = vadd.xlane.f32.xlu0 %v166
  %v168 = vpop.xlane.xlu0 %167
  %v169 = vsel %vm102, %v92, 0.0
  %170 = vadd.xlane.f32.xlu0 %v169
  %v171 = vpop.xlane.xlu0 %170
  %v172 = vsel %vm102, %v93, 0.0
  %173 = vadd.xlane.f32.xlu0 %v172
  %v174 = vpop.xlane.xlu0 %173
  %v175 = vsel %vm102, %v94, 0.0
  %176 = vadd.xlane.f32.xlu0 %v175
  %v177 = vpop.xlane.xlu0 %176
  %v178 = vsel %vm102, %v95, 0.0
  %179 = vadd.xlane.f32.xlu0 %v178
  %v180 = vpop.xlane.xlu0 %179
  %v181 = vsel %vm102, %v96, 0.0
  %182 = vadd.xlane.f32.xlu0 %v181
  %v183 = vpop.xlane.xlu0 %182
  %v184 = vsel %vm102, %v97, 0.0
  %185 = vadd.xlane.f32.xlu0 %v184
  %v186 = vpop.xlane.xlu0 %185
  %v187 = vsel %vm102, %v98, 0.0
  %188 = vadd.xlane.f32.xlu0 %v187
  %v189 = vpop.xlane.xlu0 %188
  %v190 = vsel %vm102, %v99, 0.0
  %191 = vadd.xlane.f32.xlu0 %v190
  %v192 = vpop.xlane.xlu0 %191
  %v193 = vsel %vm102, %v100, 0.0
  %194 = vadd.xlane.f32.xlu0 %v193
  %v195 = vpop.xlane.xlu0 %194
  %v196 = vsel %vm102, %v101, 0.0
  %197 = vadd.xlane.f32.xlu0 %v196
  %v198 = vpop.xlane.xlu0 %197
  %v199 = vld [vmem:[%s4] sm:$0x7]
  %v201 = vsel %vm102, %v38, 0
  %v204 = vsel %vm102, %v39, 0
  %v207 = vsel %vm102, %v40, 0
  %v210 = vsel %vm102, %v41, 0
  %v213 = vsel %vm102, %v42, 0
  %v216 = vsel %vm102, %v43, 0
  %v219 = vsel %vm102, %v44, 0
  %v222 = vsel %vm102, %v45, 0
  %v225 = vsel %vm102, %v46, 0
  %v228 = vsel %vm102, %v47, 0
  %v231 = vsel %vm102, %v48, 0
  %v234 = vsel %vm102, %v49, 0
  %v237 = vsel %vm102, %v50, 0
  %v240 = vsel %vm102, %v51, 0
  %v243 = vsel %vm102, %v52, 0
  %v246 = vsel %vm102, %v53, 0
  %v249 = vsel %vm102, %v54, 0
  %v252 = vsel %vm102, %v55, 0
  %v255 = vsel %vm102, %v56, 0
  %v258 = vsel %vm102, %v57, 0
  %v261 = vsel %vm102, %v58, 0
  %v264 = vsel %vm102, %v59, 0
  %v267 = vsel %vm102, %v60, 0
  %v270 = vsel %vm102, %v61, 0
  %v273 = vsel %vm102, %v62, 0
  %v276 = vsel %vm102, %v63, 0
  %v279 = vsel %vm102, %v64, 0
  %v282 = vsel %vm102, %v65, 0
  %v285 = vsel %vm102, %v66, 0
  %v288 = vsel %vm102, %v67, 0
  %v291 = vsel %vm102, %v68, 0
  %v294 = vsel %vm102, %v69, 0
  %vm296 = vcmask 1042432
  %v298 = vsel %vm296, %v199, 0
  %300 = vmatprep.subr.mxu0 0.0
  %301 = vmatpush1.msra.mxu0 %v298
  %302 = vmatprep.subr.mxu0 0.0
  %303 = vmatpush1.msra.mxu0 0.0
  %304 = vmatprep.subr.mxu0 0.0
  %305 = vmatpush1.msra.mxu0 0.0
  %306 = vmatprep.subr.mxu0 0.0
  %307 = vmatpush1.msra.mxu0 0.0
  %308 = vmatprep.subr.mxu0 0.0
  %309 = vmatpush1.msra.mxu0 0.0
  %310 = vmatprep.subr.mxu0 0.0
  %311 = vmatpush1.msra.mxu0 0.0
  %312 = vmatprep.subr.mxu0 0.0
  %313 = vmatpush1.msra.mxu0 0.0
  %314 = vmatprep.subr.mxu0 0.0
  %315 = vmatpush1.msra.mxu0 0.0
  %316 = vmatprep.subr.mxu0 0.0
  %317 = vmatpush1.msra.mxu0 0.0
  %318 = vmatprep.subr.mxu0 0.0
  %319 = vmatpush1.msra.mxu0 0.0
  %320 = vmatprep.subr.mxu0 0.0
  %321 = vmatpush1.msra.mxu0 0.0
  %322 = vmatprep.subr.mxu0 0.0
  %323 = vmatpush1.msra.mxu0 0.0
  %324 = vmatprep.subr.mxu0 0.0
  %325 = vmatpush1.msra.mxu0 0.0
  %326 = vmatprep.subr.mxu0 0.0
  %327 = vmatpush1.msra.mxu0 0.0
  %328 = vmatprep.subr.mxu0 0.0
  %329 = vmatpush1.msra.mxu0 0.0
  %330 = vmatprep.subr.mxu0 0.0
  %331 = vmatpush1.msra.mxu0 0.0
  %332 = vmatprep.subr.mxu0 0.0
  %333 = vmatpush1.msra.mxu0 0.0
  %334 = vmatprep.subr.mxu0 0.0
  %335 = vmatpush1.msra.mxu0 0.0
  %336 = vmatprep.subr.mxu0 0.0
  %337 = vmatpush1.msra.mxu0 0.0
  %338 = vmatprep.subr.mxu0 0.0
  %339 = vmatpush1.msra.mxu0 0.0
  %340 = vmatprep.subr.mxu0 0.0
  %341 = vmatpush1.msra.mxu0 0.0
  %342 = vmatprep.subr.mxu0 0.0
  %343 = vmatpush1.msra.mxu0 0.0
  %344 = vmatprep.subr.mxu0 0.0
  %345 = vmatpush1.msra.mxu0 0.0
  %346 = vmatprep.subr.mxu0 0.0
  %347 = vmatpush1.msra.mxu0 0.0
  %348 = vmatprep.subr.mxu0 0.0
  %349 = vmatpush1.msra.mxu0 0.0
  %350 = vmatprep.subr.mxu0 0.0
  %351 = vmatpush1.msra.mxu0 0.0
  %352 = vmatprep.subr.mxu0 0.0
  %353 = vmatpush1.msra.mxu0 0.0
  %354 = vmatprep.subr.mxu0 0.0
  %355 = vmatpush1.msra.mxu0 0.0
  %356 = vmatprep.subr.mxu0 0.0
  %357 = vmatpush1.msra.mxu0 0.0
  %358 = vmatprep.subr.mxu0 0.0
  %359 = vmatpush1.msra.mxu0 0.0
  %360 = vmatprep.subr.mxu0 0.0
  %361 = vmatpush1.msra.mxu0 0.0
  %362 = vmatprep.subr.mxu0 0.0
  %363 = vmatpush1.msra.mxu0 0.0
  %364 = vmatprep.mubr.f32.mxu0 0.0
  %365 = vmatmul.mubr.f32.gmra.mrb[0].mxu0 %v201
  %v366 = vpop.f32.mrb[0].mxu0
  %v367 = vadd.f32 0.0, %v366
  %v368 = vpop.f32.mrb[0].mxu0
  %369 = vmatprep.mubr.f32.mxu0 0.0
  %370 = vmatmul.mubr.f32.gmra.mrb[0].mxu0 %v204
  %v371 = vpop.f32.mrb[0].mxu0
  %v372 = vadd.f32 0.0, %v371
  %v373 = vpop.f32.mrb[0].mxu0
  %374 = vmatprep.mubr.f32.mxu0 0.0
  %375 = vmatmul.mubr.f32.gmra.mrb[0].mxu0 %v207
  %v376 = vpop.f32.mrb[0].mxu0
  %v377 = vadd.f32 0.0, %v376
  %v378 = vpop.f32.mrb[0].mxu0
  %379 = vmatprep.mubr.f32.mxu0 0.0
  %380 = vmatmul.mubr.f32.gmra.mrb[0].mxu0 %v210
  %v381 = vpop.f32.mrb[0].mxu0
  %v382 = vadd.f32 0.0, %v381
  %v383 = vpop.f32.mrb[0].mxu0
  %384 = vmatprep.mubr.f32.mxu0 0.0
  %385 = vmatmul.mubr.f32.gmra.mrb[0].mxu0 %v213
  %v386 = vpop.f32.mrb[0].mxu0
  %v387 = vadd.f32 0.0, %v386
  %v388 = vpop.f32.mrb[0].mxu0
  %389 = vmatprep.mubr.f32.mxu0 0.0
  %390 = vmatmul.mubr.f32.gmra.mrb[0].mxu0 %v216
  %v391 = vpop.f32.mrb[0].mxu0
  %v392 = vadd.f32 0.0, %v391
  %v393 = vpop.f32.mrb[0].mxu0
  %394 = vmatprep.mubr.f32.mxu0 0.0
  %395 = vmatmul.mubr.f32.gmra.mrb[0].mxu0 %v219
  %v396 = vpop.f32.mrb[0].mxu0
  %v397 = vadd.f32 0.0, %v396
  %v398 = vpop.f32.mrb[0].mxu0
  %399 = vmatprep.mubr.f32.mxu0 0.0
  %400 = vmatmul.mubr.f32.gmra.mrb[0].mxu0 %v222
  %v401 = vpop.f32.mrb[0].mxu0
  %v402 = vadd.f32 0.0, %v401
  %v403 = vpop.f32.mrb[0].mxu0
  %404 = vmatprep.mubr.f32.mxu0 0.0
  %405 = vmatmul.mubr.f32.gmra.mrb[0].mxu0 %v225
  %v406 = vpop.f32.mrb[0].mxu0
  %v407 = vadd.f32 0.0, %v406
  %v408 = vpop.f32.mrb[0].mxu0
  %409 = vmatprep.mubr.f32.mxu0 0.0
  %410 = vmatmul.mubr.f32.gmra.mrb[0].mxu0 %v228
  %v411 = vpop.f32.mrb[0].mxu0
  %v412 = vadd.f32 0.0, %v411
  %v413 = vpop.f32.mrb[0].mxu0
  %414 = vmatprep.mubr.f32.mxu0 0.0
  %415 = vmatmul.mubr.f32.gmra.mrb[0].mxu0 %v231
  %v416 = vpop.f32.mrb[0].mxu0
  %v417 = vadd.f32 0.0, %v416
  %v418 = vpop.f32.mrb[0].mxu0
  %419 = vmatprep.mubr.f32.mxu0 0.0
  %420 = vmatmul.mubr.f32.gmra.mrb[0].mxu0 %v234
  %v421 = vpop.f32.mrb[0].mxu0
  %v422 = vadd.f32 0.0, %v421
  %v423 = vpop.f32.mrb[0].mxu0
  %424 = vmatprep.mubr.f32.mxu0 0.0
  %425 = vmatmul.mubr.f32.gmra.mrb[0].mxu0 %v237
  %v426 = vpop.f32.mrb[0].mxu0
  %v427 = vadd.f32 0.0, %v426
  %v428 = vpop.f32.mrb[0].mxu0
  %429 = vmatprep.mubr.f32.mxu0 0.0
  %430 = vmatmul.mubr.f32.gmra.mrb[0].mxu0 %v240
  %v431 = vpop.f32.mrb[0].mxu0
  %v432 = vadd.f32 0.0, %v431
  %v433 = vpop.f32.mrb[0].mxu0
  %434 = vmatprep.mubr.f32.mxu0 0.0
  %435 = vmatmul.mubr.f32.gmra.mrb[0].mxu0 %v243
  %v436 = vpop.f32.mrb[0].mxu0
  %v437 = vadd.f32 0.0, %v436
  %v438 = vpop.f32.mrb[0].mxu0
  %439 = vmatprep.mubr.f32.mxu0 0.0
  %440 = vmatmul.mubr.f32.gmra.mrb[0].mxu0 %v246
  %v441 = vpop.f32.mrb[0].mxu0
  %v442 = vadd.f32 0.0, %v441
  %v443 = vpop.f32.mrb[0].mxu0
  %444 = vmatprep.mubr.f32.mxu0 0.0
  %445 = vmatmul.mubr.f32.gmra.mrb[0].mxu0 %v249
  %v446 = vpop.f32.mrb[0].mxu0
  %v447 = vadd.f32 0.0, %v446
  %v448 = vpop.f32.mrb[0].mxu0
  %449 = vmatprep.mubr.f32.mxu0 0.0
  %450 = vmatmul.mubr.f32.gmra.mrb[0].mxu0 %v252
  %v451 = vpop.f32.mrb[0].mxu0
  %v452 = vadd.f32 0.0, %v451
  %v453 = vpop.f32.mrb[0].mxu0
  %454 = vmatprep.mubr.f32.mxu0 0.0
  %455 = vmatmul.mubr.f32.gmra.mrb[0].mxu0 %v255
  %v456 = vpop.f32.mrb[0].mxu0
  %v457 = vadd.f32 0.0, %v456
  %v458 = vpop.f32.mrb[0].mxu0
  %459 = vmatprep.mubr.f32.mxu0 0.0
  %460 = vmatmul.mubr.f32.gmra.mrb[0].mxu0 %v258
  %v461 = vpop.f32.mrb[0].mxu0
  %v462 = vadd.f32 0.0, %v461
  %v463 = vpop.f32.mrb[0].mxu0
  %464 = vmatprep.mubr.f32.mxu0 0.0
  %465 = vmatmul.mubr.f32.gmra.mrb[0].mxu0 %v261
  %v466 = vpop.f32.mrb[0].mxu0
  %v467 = vadd.f32 0.0, %v466
  %v468 = vpop.f32.mrb[0].mxu0
  %469 = vmatprep.mubr.f32.mxu0 0.0
  %470 = vmatmul.mubr.f32.gmra.mrb[0].mxu0 %v264
  %v471 = vpop.f32.mrb[0].mxu0
  %v472 = vadd.f32 0.0, %v471
  %v473 = vpop.f32.mrb[0].mxu0
  %474 = vmatprep.mubr.f32.mxu0 0.0
  %475 = vmatmul.mubr.f32.gmra.mrb[0].mxu0 %v267
  %v476 = vpop.f32.mrb[0].mxu0
  %v477 = vadd.f32 0.0, %v476
  %v478 = vpop.f32.mrb[0].mxu0
  %479 = vmatprep.mubr.f32.mxu0 0.0
  %480 = vmatmul.mubr.f32.gmra.mrb[0].mxu0 %v270
  %v481 = vpop.f32.mrb[0].mxu0
  %v482 = vadd.f32 0.0, %v481
  %v483 = vpop.f32.mrb[0].mxu0
  %484 = vmatprep.mubr.f32.mxu0 0.0
  %485 = vmatmul.mubr.f32.gmra.mrb[0].mxu0 %v273
  %v486 = vpop.f32.mrb[0].mxu0
  %v487 = vadd.f32 0.0, %v486
  %v488 = vpop.f32.mrb[0].mxu0
  %489 = vmatprep.mubr.f32.mxu0 0.0
  %490 = vmatmul.mubr.f32.gmra.mrb[0].mxu0 %v276
  %v491 = vpop.f32.mrb[0].mxu0
  %v492 = vadd.f32 0.0, %v491
  %v493 = vpop.f32.mrb[0].mxu0
  %494 = vmatprep.mubr.f32.mxu0 0.0
  %495 = vmatmul.mubr.f32.gmra.mrb[0].mxu0 %v279
  %v496 = vpop.f32.mrb[0].mxu0
  %v497 = vadd.f32 0.0, %v496
  %v498 = vpop.f32.mrb[0].mxu0
  %499 = vmatprep.mubr.f32.mxu0 0.0
  %500 = vmatmul.mubr.f32.gmra.mrb[0].mxu0 %v282
  %v501 = vpop.f32.mrb[0].mxu0
  %v502 = vadd.f32 0.0, %v501
  %v503 = vpop.f32.mrb[0].mxu0
  %504 = vmatprep.mubr.f32.mxu0 0.0
  %505 = vmatmul.mubr.f32.gmra.mrb[0].mxu0 %v285
  %v506 = vpop.f32.mrb[0].mxu0
  %v507 = vadd.f32 0.0, %v506
  %v508 = vpop.f32.mrb[0].mxu0
  %509 = vmatprep.mubr.f32.mxu0 0.0
  %510 = vmatmul.mubr.f32.gmra.mrb[0].mxu0 %v288
  %v511 = vpop.f32.mrb[0].mxu0
  %v512 = vadd.f32 0.0, %v511
  %v513 = vpop.f32.mrb[0].mxu0
  %514 = vmatprep.mubr.f32.mxu0 0.0
  %515 = vmatmul.mubr.f32.gmra.mrb[0].mxu0 %v291
  %v516 = vpop.f32.mrb[0].mxu0
  %v517 = vadd.f32 0.0, %v516
  %v518 = vpop.f32.mrb[0].mxu0
  %519 = vmatprep.mubr.f32.mxu0 0.0
  %520 = vmatmul.mubr.f32.gmra.mrb[0].mxu0 %v294
  %v521 = vpop.f32.mrb[0].mxu0
  %v522 = vadd.f32 0.0, %v521
  %v523 = vpop.f32.mrb[0].mxu0
  %524 = vdwg.mxu0
  %v525 = vmul.f32 %v367, 2.0
  %v526 = vmul.f32 %v372, 2.0
  %v527 = vmul.f32 %v377, 2.0
  %v528 = vmul.f32 %v382, 2.0
  %v529 = vmul.f32 %v387, 2.0
  %v530 = vmul.f32 %v392, 2.0
  %v531 = vmul.f32 %v397, 2.0
  %v532 = vmul.f32 %v402, 2.0
  %v533 = vmul.f32 %v407, 2.0
  %v534 = vmul.f32 %v412, 2.0
  %v535 = vmul.f32 %v417, 2.0
  %v536 = vmul.f32 %v422, 2.0
  %v537 = vmul.f32 %v427, 2.0
  %v538 = vmul.f32 %v432, 2.0
  %v539 = vmul.f32 %v437, 2.0
  %v540 = vmul.f32 %v442, 2.0
  %v541 = vmul.f32 %v447, 2.0
  %v542 = vmul.f32 %v452, 2.0
  %v543 = vmul.f32 %v457, 2.0
  %v544 = vmul.f32 %v462, 2.0
  %v545 = vmul.f32 %v467, 2.0
  %v546 = vmul.f32 %v472, 2.0
  %v547 = vmul.f32 %v477, 2.0
  %v548 = vmul.f32 %v482, 2.0
  %v549 = vmul.f32 %v487, 2.0
  %v550 = vmul.f32 %v492, 2.0
  %v551 = vmul.f32 %v497, 2.0
  %v552 = vmul.f32 %v502, 2.0
  %v553 = vmul.f32 %v507, 2.0
  %v554 = vmul.f32 %v512, 2.0
  %v555 = vmul.f32 %v517, 2.0
  %v556 = vmul.f32 %v522, 2.0
  %v557 = vsub.f32 %v105, %v525
  %v558 = vsub.f32 %v108, %v526
  %v559 = vsub.f32 %v111, %v527
  %v560 = vsub.f32 %v114, %v528
  %v561 = vsub.f32 %v117, %v529
  %v562 = vsub.f32 %v120, %v530
  %v563 = vsub.f32 %v123, %v531
  %v564 = vsub.f32 %v126, %v532
  %v565 = vsub.f32 %v129, %v533
  %v566 = vsub.f32 %v132, %v534
  %v567 = vsub.f32 %v135, %v535
  %v568 = vsub.f32 %v138, %v536
  %v569 = vsub.f32 %v141, %v537
  %v570 = vsub.f32 %v144, %v538
  %v571 = vsub.f32 %v147, %v539
  %v572 = vsub.f32 %v150, %v540
  %v573 = vsub.f32 %v153, %v541
  %v574 = vsub.f32 %v156, %v542
  %v575 = vsub.f32 %v159, %v543
  %v576 = vsub.f32 %v162, %v544
  %v577 = vsub.f32 %v165, %v545
  %v578 = vsub.f32 %v168, %v546
  %v579 = vsub.f32 %v171, %v547
  %v580 = vsub.f32 %v174, %v548
  %v581 = vsub.f32 %v177, %v549
  %v582 = vsub.f32 %v180, %v550
  %v583 = vsub.f32 %v183, %v551
  %v584 = vsub.f32 %v186, %v552
  %v585 = vsub.f32 %v189, %v553
  %v586 = vsub.f32 %v192, %v554
  %v587 = vsub.f32 %v195, %v555
  %v588 = vsub.f32 %v198, %v556
  %v589 = vld [vmem:[%s5] sm:$0x1]
  %v591 = vlaneseq
  %v592 = vshrl.u32 %v591, 7
  %v593 = vsub.s32 0, %v592
  %v594 = vrot.slane %v589, %v593
  %v596 = vadd.f32 %v557, %v594
  %v597 = vadd.f32 %v558, %v594
  %v598 = vadd.f32 %v559, %v594
  %v599 = vadd.f32 %v560, %v594
  %v600 = vadd.f32 %v561, %v594
  %v601 = vadd.f32 %v562, %v594
  %v602 = vadd.f32 %v563, %v594
  %v603 = vadd.f32 %v564, %v594
  %v604 = vadd.f32 %v565, %v594
  %v605 = vadd.f32 %v566, %v594
  %v606 = vadd.f32 %v567, %v594
  %v607 = vadd.f32 %v568, %v594
  %v608 = vadd.f32 %v569, %v594
  %v609 = vadd.f32 %v570, %v594
  %v610 = vadd.f32 %v571, %v594
  %v611 = vadd.f32 %v572, %v594
  %v612 = vadd.f32 %v573, %v594
  %v613 = vadd.f32 %v574, %v594
  %v614 = vadd.f32 %v575, %v594
  %v615 = vadd.f32 %v576, %v594
  %v616 = vadd.f32 %v577, %v594
  %v617 = vadd.f32 %v578, %v594
  %v618 = vadd.f32 %v579, %v594
  %v619 = vadd.f32 %v580, %v594
  %v620 = vadd.f32 %v581, %v594
  %v621 = vadd.f32 %v582, %v594
  %v622 = vadd.f32 %v583, %v594
  %v623 = vadd.f32 %v584, %v594
  %v624 = vadd.f32 %v585, %v594
  %v625 = vadd.f32 %v586, %v594
  %v626 = vadd.f32 %v587, %v594
  %v627 = vadd.f32 %v588, %v594
  %v628 = vmax.f32 %v596, 0.0
  %v629 = vmax.f32 %v597, 0.0
  %v630 = vmax.f32 %v598, 0.0
  %v631 = vmax.f32 %v599, 0.0
  %v632 = vmax.f32 %v600, 0.0
  %v633 = vmax.f32 %v601, 0.0
  %v634 = vmax.f32 %v602, 0.0
  %v635 = vmax.f32 %v603, 0.0
  %v636 = vmax.f32 %v604, 0.0
  %v637 = vmax.f32 %v605, 0.0
  %v638 = vmax.f32 %v606, 0.0
  %v639 = vmax.f32 %v607, 0.0
  %v640 = vmax.f32 %v608, 0.0
  %v641 = vmax.f32 %v609, 0.0
  %v642 = vmax.f32 %v610, 0.0
  %v643 = vmax.f32 %v611, 0.0
  %v644 = vmax.f32 %v612, 0.0
  %v645 = vmax.f32 %v613, 0.0
  %v646 = vmax.f32 %v614, 0.0
  %v647 = vmax.f32 %v615, 0.0
  %v648 = vmax.f32 %v616, 0.0
  %v649 = vmax.f32 %v617, 0.0
  %v650 = vmax.f32 %v618, 0.0
  %v651 = vmax.f32 %v619, 0.0
  %v652 = vmax.f32 %v620, 0.0
  %v653 = vmax.f32 %v621, 0.0
  %v654 = vmax.f32 %v622, 0.0
  %v655 = vmax.f32 %v623, 0.0
  %v656 = vmax.f32 %v624, 0.0
  %v657 = vmax.f32 %v625, 0.0
  %v658 = vmax.f32 %v626, 0.0
  %v659 = vmax.f32 %v627, 0.0
  %v660 = vrsqrt.pop %v628
  %v661 = vmul.f32 %v628, %v660
  %vm662 = vcmp.eq.f32.partialorder %v628, inf
  %v663 = vsel %vm662, %v628, %v661
  %vm664 = vcmp.eq.f32.partialorder %v628, 0.0
  %v665 = vand.u32 %v628, 2147483648
  %v666 = vsel %vm664, %v665, %v663
  %v667 = vrsqrt.pop %v629
  %v668 = vmul.f32 %v629, %v667
  %vm669 = vcmp.eq.f32.partialorder %v629, inf
  %v670 = vsel %vm669, %v629, %v668
  %vm671 = vcmp.eq.f32.partialorder %v629, 0.0
  %v672 = vand.u32 %v629, 2147483648
  %v673 = vsel %vm671, %v672, %v670
  %v674 = vrsqrt.pop %v630
  %v675 = vmul.f32 %v630, %v674
  %vm676 = vcmp.eq.f32.partialorder %v630, inf
  %v677 = vsel %vm676, %v630, %v675
  %vm678 = vcmp.eq.f32.partialorder %v630, 0.0
  %v679 = vand.u32 %v630, 2147483648
  %v680 = vsel %vm678, %v679, %v677
  %v681 = vrsqrt.pop %v631
  %v682 = vmul.f32 %v631, %v681
  %vm683 = vcmp.eq.f32.partialorder %v631, inf
  %v684 = vsel %vm683, %v631, %v682
  %vm685 = vcmp.eq.f32.partialorder %v631, 0.0
  %v686 = vand.u32 %v631, 2147483648
  %v687 = vsel %vm685, %v686, %v684
  %v688 = vrsqrt.pop %v632
  %v689 = vmul.f32 %v632, %v688
  %vm690 = vcmp.eq.f32.partialorder %v632, inf
  %v691 = vsel %vm690, %v632, %v689
  %vm692 = vcmp.eq.f32.partialorder %v632, 0.0
  %v693 = vand.u32 %v632, 2147483648
  %v694 = vsel %vm692, %v693, %v691
  %v695 = vrsqrt.pop %v633
  %v696 = vmul.f32 %v633, %v695
  %vm697 = vcmp.eq.f32.partialorder %v633, inf
  %v698 = vsel %vm697, %v633, %v696
  %vm699 = vcmp.eq.f32.partialorder %v633, 0.0
  %v700 = vand.u32 %v633, 2147483648
  %v701 = vsel %vm699, %v700, %v698
  %v702 = vrsqrt.pop %v634
  %v703 = vmul.f32 %v634, %v702
  %vm704 = vcmp.eq.f32.partialorder %v634, inf
  %v705 = vsel %vm704, %v634, %v703
  %vm706 = vcmp.eq.f32.partialorder %v634, 0.0
  %v707 = vand.u32 %v634, 2147483648
  %v708 = vsel %vm706, %v707, %v705
  %v709 = vrsqrt.pop %v635
  %v710 = vmul.f32 %v635, %v709
  %vm711 = vcmp.eq.f32.partialorder %v635, inf
  %v712 = vsel %vm711, %v635, %v710
  %vm713 = vcmp.eq.f32.partialorder %v635, 0.0
  %v714 = vand.u32 %v635, 2147483648
  %v715 = vsel %vm713, %v714, %v712
  %v716 = vrsqrt.pop %v636
  %v717 = vmul.f32 %v636, %v716
  %vm718 = vcmp.eq.f32.partialorder %v636, inf
  %v719 = vsel %vm718, %v636, %v717
  %vm720 = vcmp.eq.f32.partialorder %v636, 0.0
  %v721 = vand.u32 %v636, 2147483648
  %v722 = vsel %vm720, %v721, %v719
  %v723 = vrsqrt.pop %v637
  %v724 = vmul.f32 %v637, %v723
  %vm725 = vcmp.eq.f32.partialorder %v637, inf
  %v726 = vsel %vm725, %v637, %v724
  %vm727 = vcmp.eq.f32.partialorder %v637, 0.0
  %v728 = vand.u32 %v637, 2147483648
  %v729 = vsel %vm727, %v728, %v726
  %v730 = vrsqrt.pop %v638
  %v731 = vmul.f32 %v638, %v730
  %vm732 = vcmp.eq.f32.partialorder %v638, inf
  %v733 = vsel %vm732, %v638, %v731
  %vm734 = vcmp.eq.f32.partialorder %v638, 0.0
  %v735 = vand.u32 %v638, 2147483648
  %v736 = vsel %vm734, %v735, %v733
  %v737 = vrsqrt.pop %v639
  %v738 = vmul.f32 %v639, %v737
  %vm739 = vcmp.eq.f32.partialorder %v639, inf
  %v740 = vsel %vm739, %v639, %v738
  %vm741 = vcmp.eq.f32.partialorder %v639, 0.0
  %v742 = vand.u32 %v639, 2147483648
  %v743 = vsel %vm741, %v742, %v740
  %v744 = vrsqrt.pop %v640
  %v745 = vmul.f32 %v640, %v744
  %vm746 = vcmp.eq.f32.partialorder %v640, inf
  %v747 = vsel %vm746, %v640, %v745
  %vm748 = vcmp.eq.f32.partialorder %v640, 0.0
  %v749 = vand.u32 %v640, 2147483648
  %v750 = vsel %vm748, %v749, %v747
  %v751 = vrsqrt.pop %v641
  %v752 = vmul.f32 %v641, %v751
  %vm753 = vcmp.eq.f32.partialorder %v641, inf
  %v754 = vsel %vm753, %v641, %v752
  %vm755 = vcmp.eq.f32.partialorder %v641, 0.0
  %v756 = vand.u32 %v641, 2147483648
  %v757 = vsel %vm755, %v756, %v754
  %v758 = vrsqrt.pop %v642
  %v759 = vmul.f32 %v642, %v758
  %vm760 = vcmp.eq.f32.partialorder %v642, inf
  %v761 = vsel %vm760, %v642, %v759
  %vm762 = vcmp.eq.f32.partialorder %v642, 0.0
  %v763 = vand.u32 %v642, 2147483648
  %v764 = vsel %vm762, %v763, %v761
  %v765 = vrsqrt.pop %v643
  %v766 = vmul.f32 %v643, %v765
  %vm767 = vcmp.eq.f32.partialorder %v643, inf
  %v768 = vsel %vm767, %v643, %v766
  %vm769 = vcmp.eq.f32.partialorder %v643, 0.0
  %v770 = vand.u32 %v643, 2147483648
  %v771 = vsel %vm769, %v770, %v768
  %v772 = vrsqrt.pop %v644
  %v773 = vmul.f32 %v644, %v772
  %vm774 = vcmp.eq.f32.partialorder %v644, inf
  %v775 = vsel %vm774, %v644, %v773
  %vm776 = vcmp.eq.f32.partialorder %v644, 0.0
  %v777 = vand.u32 %v644, 2147483648
  %v778 = vsel %vm776, %v777, %v775
  %v779 = vrsqrt.pop %v645
  %v780 = vmul.f32 %v645, %v779
  %vm781 = vcmp.eq.f32.partialorder %v645, inf
  %v782 = vsel %vm781, %v645, %v780
  %vm783 = vcmp.eq.f32.partialorder %v645, 0.0
  %v784 = vand.u32 %v645, 2147483648
  %v785 = vsel %vm783, %v784, %v782
  %v786 = vrsqrt.pop %v646
  %v787 = vmul.f32 %v646, %v786
  %vm788 = vcmp.eq.f32.partialorder %v646, inf
  %v789 = vsel %vm788, %v646, %v787
  %vm790 = vcmp.eq.f32.partialorder %v646, 0.0
  %v791 = vand.u32 %v646, 2147483648
  %v792 = vsel %vm790, %v791, %v789
  %v793 = vrsqrt.pop %v647
  %v794 = vmul.f32 %v647, %v793
  %vm795 = vcmp.eq.f32.partialorder %v647, inf
  %v796 = vsel %vm795, %v647, %v794
  %vm797 = vcmp.eq.f32.partialorder %v647, 0.0
  %v798 = vand.u32 %v647, 2147483648
  %v799 = vsel %vm797, %v798, %v796
  %v800 = vrsqrt.pop %v648
  %v801 = vmul.f32 %v648, %v800
  %vm802 = vcmp.eq.f32.partialorder %v648, inf
  %v803 = vsel %vm802, %v648, %v801
  %vm804 = vcmp.eq.f32.partialorder %v648, 0.0
  %v805 = vand.u32 %v648, 2147483648
  %v806 = vsel %vm804, %v805, %v803
  %v807 = vrsqrt.pop %v649
  %v808 = vmul.f32 %v649, %v807
  %vm809 = vcmp.eq.f32.partialorder %v649, inf
  %v810 = vsel %vm809, %v649, %v808
  %vm811 = vcmp.eq.f32.partialorder %v649, 0.0
  %v812 = vand.u32 %v649, 2147483648
  %v813 = vsel %vm811, %v812, %v810
  %v814 = vrsqrt.pop %v650
  %v815 = vmul.f32 %v650, %v814
  %vm816 = vcmp.eq.f32.partialorder %v650, inf
  %v817 = vsel %vm816, %v650, %v815
  %vm818 = vcmp.eq.f32.partialorder %v650, 0.0
  %v819 = vand.u32 %v650, 2147483648
  %v820 = vsel %vm818, %v819, %v817
  %v821 = vrsqrt.pop %v651
  %v822 = vmul.f32 %v651, %v821
  %vm823 = vcmp.eq.f32.partialorder %v651, inf
  %v824 = vsel %vm823, %v651, %v822
  %vm825 = vcmp.eq.f32.partialorder %v651, 0.0
  %v826 = vand.u32 %v651, 2147483648
  %v827 = vsel %vm825, %v826, %v824
  %v828 = vrsqrt.pop %v652
  %v829 = vmul.f32 %v652, %v828
  %vm830 = vcmp.eq.f32.partialorder %v652, inf
  %v831 = vsel %vm830, %v652, %v829
  %vm832 = vcmp.eq.f32.partialorder %v652, 0.0
  %v833 = vand.u32 %v652, 2147483648
  %v834 = vsel %vm832, %v833, %v831
  %v835 = vrsqrt.pop %v653
  %v836 = vmul.f32 %v653, %v835
  %vm837 = vcmp.eq.f32.partialorder %v653, inf
  %v838 = vsel %vm837, %v653, %v836
  %vm839 = vcmp.eq.f32.partialorder %v653, 0.0
  %v840 = vand.u32 %v653, 2147483648
  %v841 = vsel %vm839, %v840, %v838
  %v842 = vrsqrt.pop %v654
  %v843 = vmul.f32 %v654, %v842
  %vm844 = vcmp.eq.f32.partialorder %v654, inf
  %v845 = vsel %vm844, %v654, %v843
  %vm846 = vcmp.eq.f32.partialorder %v654, 0.0
  %v847 = vand.u32 %v654, 2147483648
  %v848 = vsel %vm846, %v847, %v845
  %v849 = vrsqrt.pop %v655
  %v850 = vmul.f32 %v655, %v849
  %vm851 = vcmp.eq.f32.partialorder %v655, inf
  %v852 = vsel %vm851, %v655, %v850
  %vm853 = vcmp.eq.f32.partialorder %v655, 0.0
  %v854 = vand.u32 %v655, 2147483648
  %v855 = vsel %vm853, %v854, %v852
  %v856 = vrsqrt.pop %v656
  %v857 = vmul.f32 %v656, %v856
  %vm858 = vcmp.eq.f32.partialorder %v656, inf
  %v859 = vsel %vm858, %v656, %v857
  %vm860 = vcmp.eq.f32.partialorder %v656, 0.0
  %v861 = vand.u32 %v656, 2147483648
  %v862 = vsel %vm860, %v861, %v859
  %v863 = vrsqrt.pop %v657
  %v864 = vmul.f32 %v657, %v863
  %vm865 = vcmp.eq.f32.partialorder %v657, inf
  %v866 = vsel %vm865, %v657, %v864
  %vm867 = vcmp.eq.f32.partialorder %v657, 0.0
  %v868 = vand.u32 %v657, 2147483648
  %v869 = vsel %vm867, %v868, %v866
  %v870 = vrsqrt.pop %v658
  %v871 = vmul.f32 %v658, %v870
  %vm872 = vcmp.eq.f32.partialorder %v658, inf
  %v873 = vsel %vm872, %v658, %v871
  %vm874 = vcmp.eq.f32.partialorder %v658, 0.0
  %v875 = vand.u32 %v658, 2147483648
  %v876 = vsel %vm874, %v875, %v873
  %v877 = vrsqrt.pop %v659
  %v878 = vmul.f32 %v659, %v877
  %vm879 = vcmp.eq.f32.partialorder %v659, inf
  %v880 = vsel %vm879, %v659, %v878
  %vm881 = vcmp.eq.f32.partialorder %v659, 0.0
  %v882 = vand.u32 %v659, 2147483648
  %v883 = vsel %vm881, %v882, %v880
  %v884 = vmul.f32 %v666, 10.0
  %v885 = vmul.f32 %v673, 10.0
  %v886 = vmul.f32 %v680, 10.0
  %v887 = vmul.f32 %v687, 10.0
  %v888 = vmul.f32 %v694, 10.0
  %v889 = vmul.f32 %v701, 10.0
  %v890 = vmul.f32 %v708, 10.0
  %v891 = vmul.f32 %v715, 10.0
  %v892 = vmul.f32 %v722, 10.0
  %v893 = vmul.f32 %v729, 10.0
  %v894 = vmul.f32 %v736, 10.0
  %v895 = vmul.f32 %v743, 10.0
  %v896 = vmul.f32 %v750, 10.0
  %v897 = vmul.f32 %v757, 10.0
  %v898 = vmul.f32 %v764, 10.0
  %v899 = vmul.f32 %v771, 10.0
  %v900 = vmul.f32 %v778, 10.0
  %v901 = vmul.f32 %v785, 10.0
  %v902 = vmul.f32 %v792, 10.0
  %v903 = vmul.f32 %v799, 10.0
  %v904 = vmul.f32 %v806, 10.0
  %v905 = vmul.f32 %v813, 10.0
  %v906 = vmul.f32 %v820, 10.0
  %v907 = vmul.f32 %v827, 10.0
  %v908 = vmul.f32 %v834, 10.0
  %v909 = vmul.f32 %v841, 10.0
  %v910 = vmul.f32 %v848, 10.0
  %v911 = vmul.f32 %v855, 10.0
  %v912 = vmul.f32 %v862, 10.0
  %v913 = vmul.f32 %v869, 10.0
  %v914 = vmul.f32 %v876, 10.0
  %v915 = vmul.f32 %v883, 10.0
  %v916 = vsub.f32 1.0, %v884
  %v917 = vsub.f32 1.0, %v885
  %v918 = vsub.f32 1.0, %v886
  %v919 = vsub.f32 1.0, %v887
  %v920 = vsub.f32 1.0, %v888
  %v921 = vsub.f32 1.0, %v889
  %v922 = vsub.f32 1.0, %v890
  %v923 = vsub.f32 1.0, %v891
  %v924 = vsub.f32 1.0, %v892
  %v925 = vsub.f32 1.0, %v893
  %v926 = vsub.f32 1.0, %v894
  %v927 = vsub.f32 1.0, %v895
  %v928 = vsub.f32 1.0, %v896
  %v929 = vsub.f32 1.0, %v897
  %v930 = vsub.f32 1.0, %v898
  %v931 = vsub.f32 1.0, %v899
  %v932 = vsub.f32 1.0, %v900
  %v933 = vsub.f32 1.0, %v901
  %v934 = vsub.f32 1.0, %v902
  %v935 = vsub.f32 1.0, %v903
  %v936 = vsub.f32 1.0, %v904
  %v937 = vsub.f32 1.0, %v905
  %v938 = vsub.f32 1.0, %v906
  %v939 = vsub.f32 1.0, %v907
  %v940 = vsub.f32 1.0, %v908
  %v941 = vsub.f32 1.0, %v909
  %v942 = vsub.f32 1.0, %v910
  %v943 = vsub.f32 1.0, %v911
  %v944 = vsub.f32 1.0, %v912
  %v945 = vsub.f32 1.0, %v913
  %v946 = vsub.f32 1.0, %v914
  %v947 = vsub.f32 1.0, %v915
  %v948 = vmax.f32 %v916, 0.0
  %v949 = vmax.f32 %v917, 0.0
  %v950 = vmax.f32 %v918, 0.0
  %v951 = vmax.f32 %v919, 0.0
  %v952 = vmax.f32 %v920, 0.0
  %v953 = vmax.f32 %v921, 0.0
  %v954 = vmax.f32 %v922, 0.0
  %v955 = vmax.f32 %v923, 0.0
  %v956 = vmax.f32 %v924, 0.0
  %v957 = vmax.f32 %v925, 0.0
  %v958 = vmax.f32 %v926, 0.0
  %v959 = vmax.f32 %v927, 0.0
  %v960 = vmax.f32 %v928, 0.0
  %v961 = vmax.f32 %v929, 0.0
  %v962 = vmax.f32 %v930, 0.0
  %v963 = vmax.f32 %v931, 0.0
  %v964 = vmax.f32 %v932, 0.0
  %v965 = vmax.f32 %v933, 0.0
  %v966 = vmax.f32 %v934, 0.0
  %v967 = vmax.f32 %v935, 0.0
  %v968 = vmax.f32 %v936, 0.0
  %v969 = vmax.f32 %v937, 0.0
  %v970 = vmax.f32 %v938, 0.0
  %v971 = vmax.f32 %v939, 0.0
  %v972 = vmax.f32 %v940, 0.0
  %v973 = vmax.f32 %v941, 0.0
  %v974 = vmax.f32 %v942, 0.0
  %v975 = vmax.f32 %v943, 0.0
  %v976 = vmax.f32 %v944, 0.0
  %v977 = vmax.f32 %v945, 0.0
  %v978 = vmax.f32 %v946, 0.0
  %v979 = vmax.f32 %v947, 0.0
  %v980 = vld [vmem:[%s2] sm:$0xff]
  %v981 = vld [vmem:[%s2 + $0x8] sm:$0xff]
  %v982 = vld [vmem:[%s2 + $0x10] sm:$0xff]
  %v983 = vld [vmem:[%s2 + $0x18] sm:$0xff]
  %v984 = vld [vmem:[%s2 + $0x20] sm:$0xff]
  %v985 = vld [vmem:[%s2 + $0x28] sm:$0xff]
  %v986 = vld [vmem:[%s2 + $0x30] sm:$0xff]
  %v987 = vld [vmem:[%s2 + $0x38] sm:$0xff]
  %v988 = vld [vmem:[%s2 + $0x40] sm:$0xff]
  %v989 = vld [vmem:[%s2 + $0x48] sm:$0xff]
  %v990 = vld [vmem:[%s2 + $0x50] sm:$0xff]
  %v991 = vld [vmem:[%s2 + $0x58] sm:$0xff]
  %v992 = vld [vmem:[%s2 + $0x60] sm:$0xff]
  %v993 = vld [vmem:[%s2 + $0x68] sm:$0xff]
  %v994 = vld [vmem:[%s2 + $0x70] sm:$0xff]
  %v995 = vld [vmem:[%s2 + $0x78] sm:$0xff]
  %v996 = vld [vmem:[%s2 + $0x80] sm:$0xff]
  %v997 = vld [vmem:[%s2 + $0x88] sm:$0xff]
  %v998 = vld [vmem:[%s2 + $0x90] sm:$0xff]
  %v999 = vld [vmem:[%s2 + $0x98] sm:$0xff]
  %v1000 = vld [vmem:[%s2 + $0xa0] sm:$0xff]
  %v1001 = vld [vmem:[%s2 + $0xa8] sm:$0xff]
  %v1002 = vld [vmem:[%s2 + $0xb0] sm:$0xff]
  %v1003 = vld [vmem:[%s2 + $0xb8] sm:$0xff]
  %v1004 = vld [vmem:[%s2 + $0xc0] sm:$0xff]
  %v1005 = vld [vmem:[%s2 + $0xc8] sm:$0xff]
  %v1006 = vld [vmem:[%s2 + $0xd0] sm:$0xff]
  %v1007 = vld [vmem:[%s2 + $0xd8] sm:$0xff]
  %v1008 = vld [vmem:[%s2 + $0xe0] sm:$0xff]
  %v1009 = vld [vmem:[%s2 + $0xe8] sm:$0xff]
  %v1010 = vld [vmem:[%s2 + $0xf0] sm:$0xff]
  %v1011 = vld [vmem:[%s2 + $0xf8] sm:$0xff]
  %1013 = vset.pattern.permute.xlu0 0
  %1014 = vperm.xlu0 %1013, %v980
  %v1015 = vpop.permute.xlu0 %1014
  %1018 = vset.pattern.permute.xlu0 0
  %1019 = vperm.xlu0 %1018, %v981
  %v1020 = vpop.permute.xlu0 %1019
  %1023 = vset.pattern.permute.xlu0 0
  %1024 = vperm.xlu0 %1023, %v982
  %v1025 = vpop.permute.xlu0 %1024
  %1028 = vset.pattern.permute.xlu0 0
  %1029 = vperm.xlu0 %1028, %v983
  %v1030 = vpop.permute.xlu0 %1029
  %1033 = vset.pattern.permute.xlu0 0
  %1034 = vperm.xlu0 %1033, %v984
  %v1035 = vpop.permute.xlu0 %1034
  %1038 = vset.pattern.permute.xlu0 0
  %1039 = vperm.xlu0 %1038, %v985
  %v1040 = vpop.permute.xlu0 %1039
  %1043 = vset.pattern.permute.xlu0 0
  %1044 = vperm.xlu0 %1043, %v986
  %v1045 = vpop.permute.xlu0 %1044
  %1048 = vset.pattern.permute.xlu0 0
  %1049 = vperm.xlu0 %1048, %v987
  %v1050 = vpop.permute.xlu0 %1049
  %1053 = vset.pattern.permute.xlu0 0
  %1054 = vperm.xlu0 %1053, %v988
  %v1055 = vpop.permute.xlu0 %1054
  %1058 = vset.pattern.permute.xlu0 0
  %1059 = vperm.xlu0 %1058, %v989
  %v1060 = vpop.permute.xlu0 %1059
  %1063 = vset.pattern.permute.xlu0 0
  %1064 = vperm.xlu0 %1063, %v990
  %v1065 = vpop.permute.xlu0 %1064
  %1068 = vset.pattern.permute.xlu0 0
  %1069 = vperm.xlu0 %1068, %v991
  %v1070 = vpop.permute.xlu0 %1069
  %1073 = vset.pattern.permute.xlu0 0
  %1074 = vperm.xlu0 %1073, %v992
  %v1075 = vpop.permute.xlu0 %1074
  %1078 = vset.pattern.permute.xlu0 0
  %1079 = vperm.xlu0 %1078, %v993
  %v1080 = vpop.permute.xlu0 %1079
  %1083 = vset.pattern.permute.xlu0 0
  %1084 = vperm.xlu0 %1083, %v994
  %v1085 = vpop.permute.xlu0 %1084
  %1088 = vset.pattern.permute.xlu0 0
  %1089 = vperm.xlu0 %1088, %v995
  %v1090 = vpop.permute.xlu0 %1089
  %1093 = vset.pattern.permute.xlu0 0
  %1094 = vperm.xlu0 %1093, %v996
  %v1095 = vpop.permute.xlu0 %1094
  %1098 = vset.pattern.permute.xlu0 0
  %1099 = vperm.xlu0 %1098, %v997
  %v1100 = vpop.permute.xlu0 %1099
  %1103 = vset.pattern.permute.xlu0 0
  %1104 = vperm.xlu0 %1103, %v998
  %v1105 = vpop.permute.xlu0 %1104
  %1108 = vset.pattern.permute.xlu0 0
  %1109 = vperm.xlu0 %1108, %v999
  %v1110 = vpop.permute.xlu0 %1109
  %1113 = vset.pattern.permute.xlu0 0
  %1114 = vperm.xlu0 %1113, %v1000
  %v1115 = vpop.permute.xlu0 %1114
  %1118 = vset.pattern.permute.xlu0 0
  %1119 = vperm.xlu0 %1118, %v1001
  %v1120 = vpop.permute.xlu0 %1119
  %1123 = vset.pattern.permute.xlu0 0
  %1124 = vperm.xlu0 %1123, %v1002
  %v1125 = vpop.permute.xlu0 %1124
  %1128 = vset.pattern.permute.xlu0 0
  %1129 = vperm.xlu0 %1128, %v1003
  %v1130 = vpop.permute.xlu0 %1129
  %1133 = vset.pattern.permute.xlu0 0
  %1134 = vperm.xlu0 %1133, %v1004
  %v1135 = vpop.permute.xlu0 %1134
  %1138 = vset.pattern.permute.xlu0 0
  %1139 = vperm.xlu0 %1138, %v1005
  %v1140 = vpop.permute.xlu0 %1139
  %1143 = vset.pattern.permute.xlu0 0
  %1144 = vperm.xlu0 %1143, %v1006
  %v1145 = vpop.permute.xlu0 %1144
  %1148 = vset.pattern.permute.xlu0 0
  %1149 = vperm.xlu0 %1148, %v1007
  %v1150 = vpop.permute.xlu0 %1149
  %1153 = vset.pattern.permute.xlu0 0
  %1154 = vperm.xlu0 %1153, %v1008
  %v1155 = vpop.permute.xlu0 %1154
  %1158 = vset.pattern.permute.xlu0 0
  %1159 = vperm.xlu0 %1158, %v1009
  %v1160 = vpop.permute.xlu0 %1159
  %1163 = vset.pattern.permute.xlu0 0
  %1164 = vperm.xlu0 %1163, %v1010
  %v1165 = vpop.permute.xlu0 %1164
  %1168 = vset.pattern.permute.xlu0 0
  %1169 = vperm.xlu0 %1168, %v1011
  %v1170 = vpop.permute.xlu0 %1169
  %v1172 = vmul.f32 %v948, %v1015
  %v1173 = vmul.f32 %v949, %v1020
  %v1174 = vmul.f32 %v950, %v1025
  %v1175 = vmul.f32 %v951, %v1030
  %v1176 = vmul.f32 %v952, %v1035
  %v1177 = vmul.f32 %v953, %v1040
  %v1178 = vmul.f32 %v954, %v1045
  %v1179 = vmul.f32 %v955, %v1050
  %v1180 = vmul.f32 %v956, %v1055
  %v1181 = vmul.f32 %v957, %v1060
  %v1182 = vmul.f32 %v958, %v1065
  %v1183 = vmul.f32 %v959, %v1070
  %v1184 = vmul.f32 %v960, %v1075
  %v1185 = vmul.f32 %v961, %v1080
  %v1186 = vmul.f32 %v962, %v1085
  %v1187 = vmul.f32 %v963, %v1090
  %v1188 = vmul.f32 %v964, %v1095
  %v1189 = vmul.f32 %v965, %v1100
  %v1190 = vmul.f32 %v966, %v1105
  %v1191 = vmul.f32 %v967, %v1110
  %v1192 = vmul.f32 %v968, %v1115
  %v1193 = vmul.f32 %v969, %v1120
  %v1194 = vmul.f32 %v970, %v1125
  %v1195 = vmul.f32 %v971, %v1130
  %v1196 = vmul.f32 %v972, %v1135
  %v1197 = vmul.f32 %v973, %v1140
  %v1198 = vmul.f32 %v974, %v1145
  %v1199 = vmul.f32 %v975, %v1150
  %v1200 = vmul.f32 %v976, %v1155
  %v1201 = vmul.f32 %v977, %v1160
  %v1202 = vmul.f32 %v978, %v1165
  %v1203 = vmul.f32 %v979, %v1170
  %v1204 = vld [vmem:[%s1] sm:$0xf]
  %v1205 = vld [vmem:[%s1 + $0x4] sm:$0xf]
  %v1206 = vld [vmem:[%s1 + $0x8] sm:$0xf]
  %v1207 = vld [vmem:[%s1 + $0xc] sm:$0xf]
  %v1208 = vld [vmem:[%s1 + $0x10] sm:$0xf]
  %v1209 = vld [vmem:[%s1 + $0x14] sm:$0xf]
  %v1210 = vld [vmem:[%s1 + $0x18] sm:$0xf]
  %v1211 = vld [vmem:[%s1 + $0x1c] sm:$0xf]
  %v1212 = vld [vmem:[%s1 + $0x20] sm:$0xf]
  %v1213 = vld [vmem:[%s1 + $0x24] sm:$0xf]
  %v1214 = vld [vmem:[%s1 + $0x28] sm:$0xf]
  %v1215 = vld [vmem:[%s1 + $0x2c] sm:$0xf]
  %v1216 = vld [vmem:[%s1 + $0x30] sm:$0xf]
  %v1217 = vld [vmem:[%s1 + $0x34] sm:$0xf]
  %v1218 = vld [vmem:[%s1 + $0x38] sm:$0xf]
  %v1219 = vld [vmem:[%s1 + $0x3c] sm:$0xf]
  %v1220 = vld [vmem:[%s1 + $0x40] sm:$0xf]
  %v1221 = vld [vmem:[%s1 + $0x44] sm:$0xf]
  %v1222 = vld [vmem:[%s1 + $0x48] sm:$0xf]
  %v1223 = vld [vmem:[%s1 + $0x4c] sm:$0xf]
  %v1224 = vld [vmem:[%s1 + $0x50] sm:$0xf]
  %v1225 = vld [vmem:[%s1 + $0x54] sm:$0xf]
  %v1226 = vld [vmem:[%s1 + $0x58] sm:$0xf]
  %v1227 = vld [vmem:[%s1 + $0x5c] sm:$0xf]
  %v1228 = vld [vmem:[%s1 + $0x60] sm:$0xf]
  %v1229 = vld [vmem:[%s1 + $0x64] sm:$0xf]
  %v1230 = vld [vmem:[%s1 + $0x68] sm:$0xf]
  %v1231 = vld [vmem:[%s1 + $0x6c] sm:$0xf]
  %v1232 = vld [vmem:[%s1 + $0x70] sm:$0xf]
  %v1233 = vld [vmem:[%s1 + $0x74] sm:$0xf]
  %v1234 = vld [vmem:[%s1 + $0x78] sm:$0xf]
  %v1235 = vld [vmem:[%s1 + $0x7c] sm:$0xf]
  %vm1236 = vcmask 64512
  %v1238 = vsel %vm1236, %v1204, 0
  %1240 = vmatprep.subr.mxu0 0.0
  %1241 = vmatpush1.msra.mxu0 %v1172
  %1242 = vmatprep.subr.mxu0 0.0
  %1243 = vmatpush1.msra.mxu0 0.0
  %1244 = vmatprep.subr.mxu0 0.0
  %1245 = vmatpush1.msra.mxu0 0.0
  %1246 = vmatprep.subr.mxu0 0.0
  %1247 = vmatpush1.msra.mxu0 0.0
  %1248 = vmatprep.subr.mxu0 0.0
  %1249 = vmatpush1.msra.mxu0 0.0
  %1250 = vmatprep.subr.mxu0 0.0
  %1251 = vmatpush1.msra.mxu0 0.0
  %1252 = vmatprep.subr.mxu0 0.0
  %1253 = vmatpush1.msra.mxu0 0.0
  %1254 = vmatprep.subr.mxu0 0.0
  %1255 = vmatpush1.msra.mxu0 0.0
  %1256 = vmatprep.subr.mxu0 0.0
  %1257 = vmatpush1.msra.mxu0 0.0
  %1258 = vmatprep.subr.mxu0 0.0
  %1259 = vmatpush1.msra.mxu0 0.0
  %1260 = vmatprep.subr.mxu0 0.0
  %1261 = vmatpush1.msra.mxu0 0.0
  %1262 = vmatprep.subr.mxu0 0.0
  %1263 = vmatpush1.msra.mxu0 0.0
  %1264 = vmatprep.subr.mxu0 0.0
  %1265 = vmatpush1.msra.mxu0 0.0
  %1266 = vmatprep.subr.mxu0 0.0
  %1267 = vmatpush1.msra.mxu0 0.0
  %1268 = vmatprep.subr.mxu0 0.0
  %1269 = vmatpush1.msra.mxu0 0.0
  %1270 = vmatprep.subr.mxu0 0.0
  %1271 = vmatpush1.msra.mxu0 0.0
  %1272 = vmatprep.subr.mxu0 0.0
  %1273 = vmatpush1.msra.mxu0 0.0
  %1274 = vmatprep.subr.mxu0 0.0
  %1275 = vmatpush1.msra.mxu0 0.0
  %1276 = vmatprep.subr.mxu0 0.0
  %1277 = vmatpush1.msra.mxu0 0.0
  %1278 = vmatprep.subr.mxu0 0.0
  %1279 = vmatpush1.msra.mxu0 0.0
  %1280 = vmatprep.subr.mxu0 0.0
  %1281 = vmatpush1.msra.mxu0 0.0
  %1282 = vmatprep.subr.mxu0 0.0
  %1283 = vmatpush1.msra.mxu0 0.0
  %1284 = vmatprep.subr.mxu0 0.0
  %1285 = vmatpush1.msra.mxu0 0.0
  %1286 = vmatprep.subr.mxu0 0.0
  %1287 = vmatpush1.msra.mxu0 0.0
  %1288 = vmatprep.subr.mxu0 0.0
  %1289 = vmatpush1.msra.mxu0 0.0
  %1290 = vmatprep.subr.mxu0 0.0
  %1291 = vmatpush1.msra.mxu0 0.0
  %1292 = vmatprep.subr.mxu0 0.0
  %1293 = vmatpush1.msra.mxu0 0.0
  %1294 = vmatprep.subr.mxu0 0.0
  %1295 = vmatpush1.msra.mxu0 0.0
  %1296 = vmatprep.subr.mxu0 0.0
  %1297 = vmatpush1.msra.mxu0 0.0
  %1298 = vmatprep.subr.mxu0 0.0
  %1299 = vmatpush1.msra.mxu0 0.0
  %1300 = vmatprep.subr.mxu0 0.0
  %1301 = vmatpush1.msra.mxu0 0.0
  %1302 = vmatprep.subr.mxu0 0.0
  %1303 = vmatpush1.msra.mxu0 0.0
  %1304 = vmatprep.mubr.f32.mxu0 0.0
  %1305 = vmatmul.mubr.f32.gmra.mrb[0].mxu0 %v1238
  %v1306 = vpop.f32.mrb[0].mxu0
  %v1307 = vadd.f32 0.0, %v1306
  %v1308 = vpop.f32.mrb[0].mxu0
  %1309 = vdwg.mxu0
  %v1311 = vsel %vm1236, %v1205, 0
  %1313 = vmatprep.subr.mxu0 0.0
  %1314 = vmatpush1.msra.mxu0 %v1173
  %1315 = vmatprep.subr.mxu0 0.0
  %1316 = vmatpush1.msra.mxu0 0.0
  %1317 = vmatprep.subr.mxu0 0.0
  %1318 = vmatpush1.msra.mxu0 0.0
  %1319 = vmatprep.subr.mxu0 0.0
  %1320 = vmatpush1.msra.mxu0 0.0
  %1321 = vmatprep.subr.mxu0 0.0
  %1322 = vmatpush1.msra.mxu0 0.0
  %1323 = vmatprep.subr.mxu0 0.0
  %1324 = vmatpush1.msra.mxu0 0.0
  %1325 = vmatprep.subr.mxu0 0.0
  %1326 = vmatpush1.msra.mxu0 0.0
  %1327 = vmatprep.subr.mxu0 0.0
  %1328 = vmatpush1.msra.mxu0 0.0
  %1329 = vmatprep.subr.mxu0 0.0
  %1330 = vmatpush1.msra.mxu0 0.0
  %1331 = vmatprep.subr.mxu0 0.0
  %1332 = vmatpush1.msra.mxu0 0.0
  %1333 = vmatprep.subr.mxu0 0.0
  %1334 = vmatpush1.msra.mxu0 0.0
  %1335 = vmatprep.subr.mxu0 0.0
  %1336 = vmatpush1.msra.mxu0 0.0
  %1337 = vmatprep.subr.mxu0 0.0
  %1338 = vmatpush1.msra.mxu0 0.0
  %1339 = vmatprep.subr.mxu0 0.0
  %1340 = vmatpush1.msra.mxu0 0.0
  %1341 = vmatprep.subr.mxu0 0.0
  %1342 = vmatpush1.msra.mxu0 0.0
  %1343 = vmatprep.subr.mxu0 0.0
  %1344 = vmatpush1.msra.mxu0 0.0
  %1345 = vmatprep.subr.mxu0 0.0
  %1346 = vmatpush1.msra.mxu0 0.0
  %1347 = vmatprep.subr.mxu0 0.0
  %1348 = vmatpush1.msra.mxu0 0.0
  %1349 = vmatprep.subr.mxu0 0.0
  %1350 = vmatpush1.msra.mxu0 0.0
  %1351 = vmatprep.subr.mxu0 0.0
  %1352 = vmatpush1.msra.mxu0 0.0
  %1353 = vmatprep.subr.mxu0 0.0
  %1354 = vmatpush1.msra.mxu0 0.0
  %1355 = vmatprep.subr.mxu0 0.0
  %1356 = vmatpush1.msra.mxu0 0.0
  %1357 = vmatprep.subr.mxu0 0.0
  %1358 = vmatpush1.msra.mxu0 0.0
  %1359 = vmatprep.subr.mxu0 0.0
  %1360 = vmatpush1.msra.mxu0 0.0
  %1361 = vmatprep.subr.mxu0 0.0
  %1362 = vmatpush1.msra.mxu0 0.0
  %1363 = vmatprep.subr.mxu0 0.0
  %1364 = vmatpush1.msra.mxu0 0.0
  %1365 = vmatprep.subr.mxu0 0.0
  %1366 = vmatpush1.msra.mxu0 0.0
  %1367 = vmatprep.subr.mxu0 0.0
  %1368 = vmatpush1.msra.mxu0 0.0
  %1369 = vmatprep.subr.mxu0 0.0
  %1370 = vmatpush1.msra.mxu0 0.0
  %1371 = vmatprep.subr.mxu0 0.0
  %1372 = vmatpush1.msra.mxu0 0.0
  %1373 = vmatprep.subr.mxu0 0.0
  %1374 = vmatpush1.msra.mxu0 0.0
  %1375 = vmatprep.subr.mxu0 0.0
  %1376 = vmatpush1.msra.mxu0 0.0
  %1377 = vmatprep.mubr.f32.mxu0 0.0
  %1378 = vmatmul.mubr.f32.gmra.mrb[0].mxu0 %v1311
  %v1379 = vpop.f32.mrb[0].mxu0
  %v1380 = vadd.f32 0.0, %v1379
  %v1381 = vpop.f32.mrb[0].mxu0
  %1382 = vdwg.mxu0
  %v1384 = vsel %vm1236, %v1206, 0
  %1386 = vmatprep.subr.mxu0 0.0
  %1387 = vmatpush1.msra.mxu0 %v1174
  %1388 = vmatprep.subr.mxu0 0.0
  %1389 = vmatpush1.msra.mxu0 0.0
  %1390 = vmatprep.subr.mxu0 0.0
  %1391 = vmatpush1.msra.mxu0 0.0
  %1392 = vmatprep.subr.mxu0 0.0
  %1393 = vmatpush1.msra.mxu0 0.0
  %1394 = vmatprep.subr.mxu0 0.0
  %1395 = vmatpush1.msra.mxu0 0.0
  %1396 = vmatprep.subr.mxu0 0.0
  %1397 = vmatpush1.msra.mxu0 0.0
  %1398 = vmatprep.subr.mxu0 0.0
  %1399 = vmatpush1.msra.mxu0 0.0
  %1400 = vmatprep.subr.mxu0 0.0
  %1401 = vmatpush1.msra.mxu0 0.0
  %1402 = vmatprep.subr.mxu0 0.0
  %1403 = vmatpush1.msra.mxu0 0.0
  %1404 = vmatprep.subr.mxu0 0.0
  %1405 = vmatpush1.msra.mxu0 0.0
  %1406 = vmatprep.subr.mxu0 0.0
  %1407 = vmatpush1.msra.mxu0 0.0
  %1408 = vmatprep.subr.mxu0 0.0
  %1409 = vmatpush1.msra.mxu0 0.0
  %1410 = vmatprep.subr.mxu0 0.0
  %1411 = vmatpush1.msra.mxu0 0.0
  %1412 = vmatprep.subr.mxu0 0.0
  %1413 = vmatpush1.msra.mxu0 0.0
  %1414 = vmatprep.subr.mxu0 0.0
  %1415 = vmatpush1.msra.mxu0 0.0
  %1416 = vmatprep.subr.mxu0 0.0
  %1417 = vmatpush1.msra.mxu0 0.0
  %1418 = vmatprep.subr.mxu0 0.0
  %1419 = vmatpush1.msra.mxu0 0.0
  %1420 = vmatprep.subr.mxu0 0.0
  %1421 = vmatpush1.msra.mxu0 0.0
  %1422 = vmatprep.subr.mxu0 0.0
  %1423 = vmatpush1.msra.mxu0 0.0
  %1424 = vmatprep.subr.mxu0 0.0
  %1425 = vmatpush1.msra.mxu0 0.0
  %1426 = vmatprep.subr.mxu0 0.0
  %1427 = vmatpush1.msra.mxu0 0.0
  %1428 = vmatprep.subr.mxu0 0.0
  %1429 = vmatpush1.msra.mxu0 0.0
  %1430 = vmatprep.subr.mxu0 0.0
  %1431 = vmatpush1.msra.mxu0 0.0
  %1432 = vmatprep.subr.mxu0 0.0
  %1433 = vmatpush1.msra.mxu0 0.0
  %1434 = vmatprep.subr.mxu0 0.0
  %1435 = vmatpush1.msra.mxu0 0.0
  %1436 = vmatprep.subr.mxu0 0.0
  %1437 = vmatpush1.msra.mxu0 0.0
  %1438 = vmatprep.subr.mxu0 0.0
  %1439 = vmatpush1.msra.mxu0 0.0
  %1440 = vmatprep.subr.mxu0 0.0
  %1441 = vmatpush1.msra.mxu0 0.0
  %1442 = vmatprep.subr.mxu0 0.0
  %1443 = vmatpush1.msra.mxu0 0.0
  %1444 = vmatprep.subr.mxu0 0.0
  %1445 = vmatpush1.msra.mxu0 0.0
  %1446 = vmatprep.subr.mxu0 0.0
  %1447 = vmatpush1.msra.mxu0 0.0
  %1448 = vmatprep.subr.mxu0 0.0
  %1449 = vmatpush1.msra.mxu0 0.0
  %1450 = vmatprep.mubr.f32.mxu0 0.0
  %1451 = vmatmul.mubr.f32.gmra.mrb[0].mxu0 %v1384
  %v1452 = vpop.f32.mrb[0].mxu0
  %v1453 = vadd.f32 0.0, %v1452
  %v1454 = vpop.f32.mrb[0].mxu0
  %1455 = vdwg.mxu0
  %v1457 = vsel %vm1236, %v1207, 0
  %1459 = vmatprep.subr.mxu0 0.0
  %1460 = vmatpush1.msra.mxu0 %v1175
  %1461 = vmatprep.subr.mxu0 0.0
  %1462 = vmatpush1.msra.mxu0 0.0
  %1463 = vmatprep.subr.mxu0 0.0
  %1464 = vmatpush1.msra.mxu0 0.0
  %1465 = vmatprep.subr.mxu0 0.0
  %1466 = vmatpush1.msra.mxu0 0.0
  %1467 = vmatprep.subr.mxu0 0.0
  %1468 = vmatpush1.msra.mxu0 0.0
  %1469 = vmatprep.subr.mxu0 0.0
  %1470 = vmatpush1.msra.mxu0 0.0
  %1471 = vmatprep.subr.mxu0 0.0
  %1472 = vmatpush1.msra.mxu0 0.0
  %1473 = vmatprep.subr.mxu0 0.0
  %1474 = vmatpush1.msra.mxu0 0.0
  %1475 = vmatprep.subr.mxu0 0.0
  %1476 = vmatpush1.msra.mxu0 0.0
  %1477 = vmatprep.subr.mxu0 0.0
  %1478 = vmatpush1.msra.mxu0 0.0
  %1479 = vmatprep.subr.mxu0 0.0
  %1480 = vmatpush1.msra.mxu0 0.0
  %1481 = vmatprep.subr.mxu0 0.0
  %1482 = vmatpush1.msra.mxu0 0.0
  %1483 = vmatprep.subr.mxu0 0.0
  %1484 = vmatpush1.msra.mxu0 0.0
  %1485 = vmatprep.subr.mxu0 0.0
  %1486 = vmatpush1.msra.mxu0 0.0
  %1487 = vmatprep.subr.mxu0 0.0
  %1488 = vmatpush1.msra.mxu0 0.0
  %1489 = vmatprep.subr.mxu0 0.0
  %1490 = vmatpush1.msra.mxu0 0.0
  %1491 = vmatprep.subr.mxu0 0.0
  %1492 = vmatpush1.msra.mxu0 0.0
  %1493 = vmatprep.subr.mxu0 0.0
  %1494 = vmatpush1.msra.mxu0 0.0
  %1495 = vmatprep.subr.mxu0 0.0
  %1496 = vmatpush1.msra.mxu0 0.0
  %1497 = vmatprep.subr.mxu0 0.0
  %1498 = vmatpush1.msra.mxu0 0.0
  %1499 = vmatprep.subr.mxu0 0.0
  %1500 = vmatpush1.msra.mxu0 0.0
  %1501 = vmatprep.subr.mxu0 0.0
  %1502 = vmatpush1.msra.mxu0 0.0
  %1503 = vmatprep.subr.mxu0 0.0
  %1504 = vmatpush1.msra.mxu0 0.0
  %1505 = vmatprep.subr.mxu0 0.0
  %1506 = vmatpush1.msra.mxu0 0.0
  %1507 = vmatprep.subr.mxu0 0.0
  %1508 = vmatpush1.msra.mxu0 0.0
  %1509 = vmatprep.subr.mxu0 0.0
  %1510 = vmatpush1.msra.mxu0 0.0
  %1511 = vmatprep.subr.mxu0 0.0
  %1512 = vmatpush1.msra.mxu0 0.0
  %1513 = vmatprep.subr.mxu0 0.0
  %1514 = vmatpush1.msra.mxu0 0.0
  %1515 = vmatprep.subr.mxu0 0.0
  %1516 = vmatpush1.msra.mxu0 0.0
  %1517 = vmatprep.subr.mxu0 0.0
  %1518 = vmatpush1.msra.mxu0 0.0
  %1519 = vmatprep.subr.mxu0 0.0
  %1520 = vmatpush1.msra.mxu0 0.0
  %1521 = vmatprep.subr.mxu0 0.0
  %1522 = vmatpush1.msra.mxu0 0.0
  %1523 = vmatprep.mubr.f32.mxu0 0.0
  %1524 = vmatmul.mubr.f32.gmra.mrb[0].mxu0 %v1457
  %v1525 = vpop.f32.mrb[0].mxu0
  %v1526 = vadd.f32 0.0, %v1525
  %v1527 = vpop.f32.mrb[0].mxu0
  %1528 = vdwg.mxu0
  %v1530 = vsel %vm1236, %v1208, 0
  %1532 = vmatprep.subr.mxu0 0.0
  %1533 = vmatpush1.msra.mxu0 %v1176
  %1534 = vmatprep.subr.mxu0 0.0
  %1535 = vmatpush1.msra.mxu0 0.0
  %1536 = vmatprep.subr.mxu0 0.0
  %1537 = vmatpush1.msra.mxu0 0.0
  %1538 = vmatprep.subr.mxu0 0.0
  %1539 = vmatpush1.msra.mxu0 0.0
  %1540 = vmatprep.subr.mxu0 0.0
  %1541 = vmatpush1.msra.mxu0 0.0
  %1542 = vmatprep.subr.mxu0 0.0
  %1543 = vmatpush1.msra.mxu0 0.0
  %1544 = vmatprep.subr.mxu0 0.0
  %1545 = vmatpush1.msra.mxu0 0.0
  %1546 = vmatprep.subr.mxu0 0.0
  %1547 = vmatpush1.msra.mxu0 0.0
  %1548 = vmatprep.subr.mxu0 0.0
  %1549 = vmatpush1.msra.mxu0 0.0
  %1550 = vmatprep.subr.mxu0 0.0
  %1551 = vmatpush1.msra.mxu0 0.0
  %1552 = vmatprep.subr.mxu0 0.0
  %1553 = vmatpush1.msra.mxu0 0.0
  %1554 = vmatprep.subr.mxu0 0.0
  %1555 = vmatpush1.msra.mxu0 0.0
  %1556 = vmatprep.subr.mxu0 0.0
  %1557 = vmatpush1.msra.mxu0 0.0
  %1558 = vmatprep.subr.mxu0 0.0
  %1559 = vmatpush1.msra.mxu0 0.0
  %1560 = vmatprep.subr.mxu0 0.0
  %1561 = vmatpush1.msra.mxu0 0.0
  %1562 = vmatprep.subr.mxu0 0.0
  %1563 = vmatpush1.msra.mxu0 0.0
  %1564 = vmatprep.subr.mxu0 0.0
  %1565 = vmatpush1.msra.mxu0 0.0
  %1566 = vmatprep.subr.mxu0 0.0
  %1567 = vmatpush1.msra.mxu0 0.0
  %1568 = vmatprep.subr.mxu0 0.0
  %1569 = vmatpush1.msra.mxu0 0.0
  %1570 = vmatprep.subr.mxu0 0.0
  %1571 = vmatpush1.msra.mxu0 0.0
  %1572 = vmatprep.subr.mxu0 0.0
  %1573 = vmatpush1.msra.mxu0 0.0
  %1574 = vmatprep.subr.mxu0 0.0
  %1575 = vmatpush1.msra.mxu0 0.0
  %1576 = vmatprep.subr.mxu0 0.0
  %1577 = vmatpush1.msra.mxu0 0.0
  %1578 = vmatprep.subr.mxu0 0.0
  %1579 = vmatpush1.msra.mxu0 0.0
  %1580 = vmatprep.subr.mxu0 0.0
  %1581 = vmatpush1.msra.mxu0 0.0
  %1582 = vmatprep.subr.mxu0 0.0
  %1583 = vmatpush1.msra.mxu0 0.0
  %1584 = vmatprep.subr.mxu0 0.0
  %1585 = vmatpush1.msra.mxu0 0.0
  %1586 = vmatprep.subr.mxu0 0.0
  %1587 = vmatpush1.msra.mxu0 0.0
  %1588 = vmatprep.subr.mxu0 0.0
  %1589 = vmatpush1.msra.mxu0 0.0
  %1590 = vmatprep.subr.mxu0 0.0
  %1591 = vmatpush1.msra.mxu0 0.0
  %1592 = vmatprep.subr.mxu0 0.0
  %1593 = vmatpush1.msra.mxu0 0.0
  %1594 = vmatprep.subr.mxu0 0.0
  %1595 = vmatpush1.msra.mxu0 0.0
  %1596 = vmatprep.mubr.f32.mxu0 0.0
  %1597 = vmatmul.mubr.f32.gmra.mrb[0].mxu0 %v1530
  %v1598 = vpop.f32.mrb[0].mxu0
  %v1599 = vadd.f32 0.0, %v1598
  %v1600 = vpop.f32.mrb[0].mxu0
  %1601 = vdwg.mxu0
  %v1603 = vsel %vm1236, %v1209, 0
  %1605 = vmatprep.subr.mxu0 0.0
  %1606 = vmatpush1.msra.mxu0 %v1177
  %1607 = vmatprep.subr.mxu0 0.0
  %1608 = vmatpush1.msra.mxu0 0.0
  %1609 = vmatprep.subr.mxu0 0.0
  %1610 = vmatpush1.msra.mxu0 0.0
  %1611 = vmatprep.subr.mxu0 0.0
  %1612 = vmatpush1.msra.mxu0 0.0
  %1613 = vmatprep.subr.mxu0 0.0
  %1614 = vmatpush1.msra.mxu0 0.0
  %1615 = vmatprep.subr.mxu0 0.0
  %1616 = vmatpush1.msra.mxu0 0.0
  %1617 = vmatprep.subr.mxu0 0.0
  %1618 = vmatpush1.msra.mxu0 0.0
  %1619 = vmatprep.subr.mxu0 0.0
  %1620 = vmatpush1.msra.mxu0 0.0
  %1621 = vmatprep.subr.mxu0 0.0
  %1622 = vmatpush1.msra.mxu0 0.0
  %1623 = vmatprep.subr.mxu0 0.0
  %1624 = vmatpush1.msra.mxu0 0.0
  %1625 = vmatprep.subr.mxu0 0.0
  %1626 = vmatpush1.msra.mxu0 0.0
  %1627 = vmatprep.subr.mxu0 0.0
  %1628 = vmatpush1.msra.mxu0 0.0
  %1629 = vmatprep.subr.mxu0 0.0
  %1630 = vmatpush1.msra.mxu0 0.0
  %1631 = vmatprep.subr.mxu0 0.0
  %1632 = vmatpush1.msra.mxu0 0.0
  %1633 = vmatprep.subr.mxu0 0.0
  %1634 = vmatpush1.msra.mxu0 0.0
  %1635 = vmatprep.subr.mxu0 0.0
  %1636 = vmatpush1.msra.mxu0 0.0
  %1637 = vmatprep.subr.mxu0 0.0
  %1638 = vmatpush1.msra.mxu0 0.0
  %1639 = vmatprep.subr.mxu0 0.0
  %1640 = vmatpush1.msra.mxu0 0.0
  %1641 = vmatprep.subr.mxu0 0.0
  %1642 = vmatpush1.msra.mxu0 0.0
  %1643 = vmatprep.subr.mxu0 0.0
  %1644 = vmatpush1.msra.mxu0 0.0
  %1645 = vmatprep.subr.mxu0 0.0
  %1646 = vmatpush1.msra.mxu0 0.0
  %1647 = vmatprep.subr.mxu0 0.0
  %1648 = vmatpush1.msra.mxu0 0.0
  %1649 = vmatprep.subr.mxu0 0.0
  %1650 = vmatpush1.msra.mxu0 0.0
  %1651 = vmatprep.subr.mxu0 0.0
  %1652 = vmatpush1.msra.mxu0 0.0
  %1653 = vmatprep.subr.mxu0 0.0
  %1654 = vmatpush1.msra.mxu0 0.0
  %1655 = vmatprep.subr.mxu0 0.0
  %1656 = vmatpush1.msra.mxu0 0.0
  %1657 = vmatprep.subr.mxu0 0.0
  %1658 = vmatpush1.msra.mxu0 0.0
  %1659 = vmatprep.subr.mxu0 0.0
  %1660 = vmatpush1.msra.mxu0 0.0
  %1661 = vmatprep.subr.mxu0 0.0
  %1662 = vmatpush1.msra.mxu0 0.0
  %1663 = vmatprep.subr.mxu0 0.0
  %1664 = vmatpush1.msra.mxu0 0.0
  %1665 = vmatprep.subr.mxu0 0.0
  %1666 = vmatpush1.msra.mxu0 0.0
  %1667 = vmatprep.subr.mxu0 0.0
  %1668 = vmatpush1.msra.mxu0 0.0
  %1669 = vmatprep.mubr.f32.mxu0 0.0
  %1670 = vmatmul.mubr.f32.gmra.mrb[0].mxu0 %v1603
  %v1671 = vpop.f32.mrb[0].mxu0
  %v1672 = vadd.f32 0.0, %v1671
  %v1673 = vpop.f32.mrb[0].mxu0
  %1674 = vdwg.mxu0
  %v1676 = vsel %vm1236, %v1210, 0
  %1678 = vmatprep.subr.mxu0 0.0
  %1679 = vmatpush1.msra.mxu0 %v1178
  %1680 = vmatprep.subr.mxu0 0.0
  %1681 = vmatpush1.msra.mxu0 0.0
  %1682 = vmatprep.subr.mxu0 0.0
  %1683 = vmatpush1.msra.mxu0 0.0
  %1684 = vmatprep.subr.mxu0 0.0
  %1685 = vmatpush1.msra.mxu0 0.0
  %1686 = vmatprep.subr.mxu0 0.0
  %1687 = vmatpush1.msra.mxu0 0.0
  %1688 = vmatprep.subr.mxu0 0.0
  %1689 = vmatpush1.msra.mxu0 0.0
  %1690 = vmatprep.subr.mxu0 0.0
  %1691 = vmatpush1.msra.mxu0 0.0
  %1692 = vmatprep.subr.mxu0 0.0
  %1693 = vmatpush1.msra.mxu0 0.0
  %1694 = vmatprep.subr.mxu0 0.0
  %1695 = vmatpush1.msra.mxu0 0.0
  %1696 = vmatprep.subr.mxu0 0.0
  %1697 = vmatpush1.msra.mxu0 0.0
  %1698 = vmatprep.subr.mxu0 0.0
  %1699 = vmatpush1.msra.mxu0 0.0
  %1700 = vmatprep.subr.mxu0 0.0
  %1701 = vmatpush1.msra.mxu0 0.0
  %1702 = vmatprep.subr.mxu0 0.0
  %1703 = vmatpush1.msra.mxu0 0.0
  %1704 = vmatprep.subr.mxu0 0.0
  %1705 = vmatpush1.msra.mxu0 0.0
  %1706 = vmatprep.subr.mxu0 0.0
  %1707 = vmatpush1.msra.mxu0 0.0
  %1708 = vmatprep.subr.mxu0 0.0
  %1709 = vmatpush1.msra.mxu0 0.0
  %1710 = vmatprep.subr.mxu0 0.0
  %1711 = vmatpush1.msra.mxu0 0.0
  %1712 = vmatprep.subr.mxu0 0.0
  %1713 = vmatpush1.msra.mxu0 0.0
  %1714 = vmatprep.subr.mxu0 0.0
  %1715 = vmatpush1.msra.mxu0 0.0
  %1716 = vmatprep.subr.mxu0 0.0
  %1717 = vmatpush1.msra.mxu0 0.0
  %1718 = vmatprep.subr.mxu0 0.0
  %1719 = vmatpush1.msra.mxu0 0.0
  %1720 = vmatprep.subr.mxu0 0.0
  %1721 = vmatpush1.msra.mxu0 0.0
  %1722 = vmatprep.subr.mxu0 0.0
  %1723 = vmatpush1.msra.mxu0 0.0
  %1724 = vmatprep.subr.mxu0 0.0
  %1725 = vmatpush1.msra.mxu0 0.0
  %1726 = vmatprep.subr.mxu0 0.0
  %1727 = vmatpush1.msra.mxu0 0.0
  %1728 = vmatprep.subr.mxu0 0.0
  %1729 = vmatpush1.msra.mxu0 0.0
  %1730 = vmatprep.subr.mxu0 0.0
  %1731 = vmatpush1.msra.mxu0 0.0
  %1732 = vmatprep.subr.mxu0 0.0
  %1733 = vmatpush1.msra.mxu0 0.0
  %1734 = vmatprep.subr.mxu0 0.0
  %1735 = vmatpush1.msra.mxu0 0.0
  %1736 = vmatprep.subr.mxu0 0.0
  %1737 = vmatpush1.msra.mxu0 0.0
  %1738 = vmatprep.subr.mxu0 0.0
  %1739 = vmatpush1.msra.mxu0 0.0
  %1740 = vmatprep.subr.mxu0 0.0
  %1741 = vmatpush1.msra.mxu0 0.0
  %1742 = vmatprep.mubr.f32.mxu0 0.0
  %1743 = vmatmul.mubr.f32.gmra.mrb[0].mxu0 %v1676
  %v1744 = vpop.f32.mrb[0].mxu0
  %v1745 = vadd.f32 0.0, %v1744
  %v1746 = vpop.f32.mrb[0].mxu0
  %1747 = vdwg.mxu0
  %v1749 = vsel %vm1236, %v1211, 0
  %1751 = vmatprep.subr.mxu0 0.0
  %1752 = vmatpush1.msra.mxu0 %v1179
  %1753 = vmatprep.subr.mxu0 0.0
  %1754 = vmatpush1.msra.mxu0 0.0
  %1755 = vmatprep.subr.mxu0 0.0
  %1756 = vmatpush1.msra.mxu0 0.0
  %1757 = vmatprep.subr.mxu0 0.0
  %1758 = vmatpush1.msra.mxu0 0.0
  %1759 = vmatprep.subr.mxu0 0.0
  %1760 = vmatpush1.msra.mxu0 0.0
  %1761 = vmatprep.subr.mxu0 0.0
  %1762 = vmatpush1.msra.mxu0 0.0
  %1763 = vmatprep.subr.mxu0 0.0
  %1764 = vmatpush1.msra.mxu0 0.0
  %1765 = vmatprep.subr.mxu0 0.0
  %1766 = vmatpush1.msra.mxu0 0.0
  %1767 = vmatprep.subr.mxu0 0.0
  %1768 = vmatpush1.msra.mxu0 0.0
  %1769 = vmatprep.subr.mxu0 0.0
  %1770 = vmatpush1.msra.mxu0 0.0
  %1771 = vmatprep.subr.mxu0 0.0
  %1772 = vmatpush1.msra.mxu0 0.0
  %1773 = vmatprep.subr.mxu0 0.0
  %1774 = vmatpush1.msra.mxu0 0.0
  %1775 = vmatprep.subr.mxu0 0.0
  %1776 = vmatpush1.msra.mxu0 0.0
  %1777 = vmatprep.subr.mxu0 0.0
  %1778 = vmatpush1.msra.mxu0 0.0
  %1779 = vmatprep.subr.mxu0 0.0
  %1780 = vmatpush1.msra.mxu0 0.0
  %1781 = vmatprep.subr.mxu0 0.0
  %1782 = vmatpush1.msra.mxu0 0.0
  %1783 = vmatprep.subr.mxu0 0.0
  %1784 = vmatpush1.msra.mxu0 0.0
  %1785 = vmatprep.subr.mxu0 0.0
  %1786 = vmatpush1.msra.mxu0 0.0
  %1787 = vmatprep.subr.mxu0 0.0
  %1788 = vmatpush1.msra.mxu0 0.0
  %1789 = vmatprep.subr.mxu0 0.0
  %1790 = vmatpush1.msra.mxu0 0.0
  %1791 = vmatprep.subr.mxu0 0.0
  %1792 = vmatpush1.msra.mxu0 0.0
  %1793 = vmatprep.subr.mxu0 0.0
  %1794 = vmatpush1.msra.mxu0 0.0
  %1795 = vmatprep.subr.mxu0 0.0
  %1796 = vmatpush1.msra.mxu0 0.0
  %1797 = vmatprep.subr.mxu0 0.0
  %1798 = vmatpush1.msra.mxu0 0.0
  %1799 = vmatprep.subr.mxu0 0.0
  %1800 = vmatpush1.msra.mxu0 0.0
  %1801 = vmatprep.subr.mxu0 0.0
  %1802 = vmatpush1.msra.mxu0 0.0
  %1803 = vmatprep.subr.mxu0 0.0
  %1804 = vmatpush1.msra.mxu0 0.0
  %1805 = vmatprep.subr.mxu0 0.0
  %1806 = vmatpush1.msra.mxu0 0.0
  %1807 = vmatprep.subr.mxu0 0.0
  %1808 = vmatpush1.msra.mxu0 0.0
  %1809 = vmatprep.subr.mxu0 0.0
  %1810 = vmatpush1.msra.mxu0 0.0
  %1811 = vmatprep.subr.mxu0 0.0
  %1812 = vmatpush1.msra.mxu0 0.0
  %1813 = vmatprep.subr.mxu0 0.0
  %1814 = vmatpush1.msra.mxu0 0.0
  %1815 = vmatprep.mubr.f32.mxu0 0.0
  %1816 = vmatmul.mubr.f32.gmra.mrb[0].mxu0 %v1749
  %v1817 = vpop.f32.mrb[0].mxu0
  %v1818 = vadd.f32 0.0, %v1817
  %v1819 = vpop.f32.mrb[0].mxu0
  %1820 = vdwg.mxu0
  %v1822 = vsel %vm1236, %v1212, 0
  %1824 = vmatprep.subr.mxu0 0.0
  %1825 = vmatpush1.msra.mxu0 %v1180
  %1826 = vmatprep.subr.mxu0 0.0
  %1827 = vmatpush1.msra.mxu0 0.0
  %1828 = vmatprep.subr.mxu0 0.0
  %1829 = vmatpush1.msra.mxu0 0.0
  %1830 = vmatprep.subr.mxu0 0.0
  %1831 = vmatpush1.msra.mxu0 0.0
  %1832 = vmatprep.subr.mxu0 0.0
  %1833 = vmatpush1.msra.mxu0 0.0
  %1834 = vmatprep.subr.mxu0 0.0
  %1835 = vmatpush1.msra.mxu0 0.0
  %1836 = vmatprep.subr.mxu0 0.0
  %1837 = vmatpush1.msra.mxu0 0.0
  %1838 = vmatprep.subr.mxu0 0.0
  %1839 = vmatpush1.msra.mxu0 0.0
  %1840 = vmatprep.subr.mxu0 0.0
  %1841 = vmatpush1.msra.mxu0 0.0
  %1842 = vmatprep.subr.mxu0 0.0
  %1843 = vmatpush1.msra.mxu0 0.0
  %1844 = vmatprep.subr.mxu0 0.0
  %1845 = vmatpush1.msra.mxu0 0.0
  %1846 = vmatprep.subr.mxu0 0.0
  %1847 = vmatpush1.msra.mxu0 0.0
  %1848 = vmatprep.subr.mxu0 0.0
  %1849 = vmatpush1.msra.mxu0 0.0
  %1850 = vmatprep.subr.mxu0 0.0
  %1851 = vmatpush1.msra.mxu0 0.0
  %1852 = vmatprep.subr.mxu0 0.0
  %1853 = vmatpush1.msra.mxu0 0.0
  %1854 = vmatprep.subr.mxu0 0.0
  %1855 = vmatpush1.msra.mxu0 0.0
  %1856 = vmatprep.subr.mxu0 0.0
  %1857 = vmatpush1.msra.mxu0 0.0
  %1858 = vmatprep.subr.mxu0 0.0
  %1859 = vmatpush1.msra.mxu0 0.0
  %1860 = vmatprep.subr.mxu0 0.0
  %1861 = vmatpush1.msra.mxu0 0.0
  %1862 = vmatprep.subr.mxu0 0.0
  %1863 = vmatpush1.msra.mxu0 0.0
  %1864 = vmatprep.subr.mxu0 0.0
  %1865 = vmatpush1.msra.mxu0 0.0
  %1866 = vmatprep.subr.mxu0 0.0
  %1867 = vmatpush1.msra.mxu0 0.0
  %1868 = vmatprep.subr.mxu0 0.0
  %1869 = vmatpush1.msra.mxu0 0.0
  %1870 = vmatprep.subr.mxu0 0.0
  %1871 = vmatpush1.msra.mxu0 0.0
  %1872 = vmatprep.subr.mxu0 0.0
  %1873 = vmatpush1.msra.mxu0 0.0
  %1874 = vmatprep.subr.mxu0 0.0
  %1875 = vmatpush1.msra.mxu0 0.0
  %1876 = vmatprep.subr.mxu0 0.0
  %1877 = vmatpush1.msra.mxu0 0.0
  %1878 = vmatprep.subr.mxu0 0.0
  %1879 = vmatpush1.msra.mxu0 0.0
  %1880 = vmatprep.subr.mxu0 0.0
  %1881 = vmatpush1.msra.mxu0 0.0
  %1882 = vmatprep.subr.mxu0 0.0
  %1883 = vmatpush1.msra.mxu0 0.0
  %1884 = vmatprep.subr.mxu0 0.0
  %1885 = vmatpush1.msra.mxu0 0.0
  %1886 = vmatprep.subr.mxu0 0.0
  %1887 = vmatpush1.msra.mxu0 0.0
  %1888 = vmatprep.mubr.f32.mxu0 0.0
  %1889 = vmatmul.mubr.f32.gmra.mrb[0].mxu0 %v1822
  %v1890 = vpop.f32.mrb[0].mxu0
  %v1891 = vadd.f32 0.0, %v1890
  %v1892 = vpop.f32.mrb[0].mxu0
  %1893 = vdwg.mxu0
  %v1895 = vsel %vm1236, %v1213, 0
  %1897 = vmatprep.subr.mxu0 0.0
  %1898 = vmatpush1.msra.mxu0 %v1181
  %1899 = vmatprep.subr.mxu0 0.0
  %1900 = vmatpush1.msra.mxu0 0.0
  %1901 = vmatprep.subr.mxu0 0.0
  %1902 = vmatpush1.msra.mxu0 0.0
  %1903 = vmatprep.subr.mxu0 0.0
  %1904 = vmatpush1.msra.mxu0 0.0
  %1905 = vmatprep.subr.mxu0 0.0
  %1906 = vmatpush1.msra.mxu0 0.0
  %1907 = vmatprep.subr.mxu0 0.0
  %1908 = vmatpush1.msra.mxu0 0.0
  %1909 = vmatprep.subr.mxu0 0.0
  %1910 = vmatpush1.msra.mxu0 0.0
  %1911 = vmatprep.subr.mxu0 0.0
  %1912 = vmatpush1.msra.mxu0 0.0
  %1913 = vmatprep.subr.mxu0 0.0
  %1914 = vmatpush1.msra.mxu0 0.0
  %1915 = vmatprep.subr.mxu0 0.0
  %1916 = vmatpush1.msra.mxu0 0.0
  %1917 = vmatprep.subr.mxu0 0.0
  %1918 = vmatpush1.msra.mxu0 0.0
  %1919 = vmatprep.subr.mxu0 0.0
  %1920 = vmatpush1.msra.mxu0 0.0
  %1921 = vmatprep.subr.mxu0 0.0
  %1922 = vmatpush1.msra.mxu0 0.0
  %1923 = vmatprep.subr.mxu0 0.0
  %1924 = vmatpush1.msra.mxu0 0.0
  %1925 = vmatprep.subr.mxu0 0.0
  %1926 = vmatpush1.msra.mxu0 0.0
  %1927 = vmatprep.subr.mxu0 0.0
  %1928 = vmatpush1.msra.mxu0 0.0
  %1929 = vmatprep.subr.mxu0 0.0
  %1930 = vmatpush1.msra.mxu0 0.0
  %1931 = vmatprep.subr.mxu0 0.0
  %1932 = vmatpush1.msra.mxu0 0.0
  %1933 = vmatprep.subr.mxu0 0.0
  %1934 = vmatpush1.msra.mxu0 0.0
  %1935 = vmatprep.subr.mxu0 0.0
  %1936 = vmatpush1.msra.mxu0 0.0
  %1937 = vmatprep.subr.mxu0 0.0
  %1938 = vmatpush1.msra.mxu0 0.0
  %1939 = vmatprep.subr.mxu0 0.0
  %1940 = vmatpush1.msra.mxu0 0.0
  %1941 = vmatprep.subr.mxu0 0.0
  %1942 = vmatpush1.msra.mxu0 0.0
  %1943 = vmatprep.subr.mxu0 0.0
  %1944 = vmatpush1.msra.mxu0 0.0
  %1945 = vmatprep.subr.mxu0 0.0
  %1946 = vmatpush1.msra.mxu0 0.0
  %1947 = vmatprep.subr.mxu0 0.0
  %1948 = vmatpush1.msra.mxu0 0.0
  %1949 = vmatprep.subr.mxu0 0.0
  %1950 = vmatpush1.msra.mxu0 0.0
  %1951 = vmatprep.subr.mxu0 0.0
  %1952 = vmatpush1.msra.mxu0 0.0
  %1953 = vmatprep.subr.mxu0 0.0
  %1954 = vmatpush1.msra.mxu0 0.0
  %1955 = vmatprep.subr.mxu0 0.0
  %1956 = vmatpush1.msra.mxu0 0.0
  %1957 = vmatprep.subr.mxu0 0.0
  %1958 = vmatpush1.msra.mxu0 0.0
  %1959 = vmatprep.subr.mxu0 0.0
  %1960 = vmatpush1.msra.mxu0 0.0
  %1961 = vmatprep.mubr.f32.mxu0 0.0
  %1962 = vmatmul.mubr.f32.gmra.mrb[0].mxu0 %v1895
  %v1963 = vpop.f32.mrb[0].mxu0
  %v1964 = vadd.f32 0.0, %v1963
  %v1965 = vpop.f32.mrb[0].mxu0
  %1966 = vdwg.mxu0
  %v1968 = vsel %vm1236, %v1214, 0
  %1970 = vmatprep.subr.mxu0 0.0
  %1971 = vmatpush1.msra.mxu0 %v1182
  %1972 = vmatprep.subr.mxu0 0.0
  %1973 = vmatpush1.msra.mxu0 0.0
  %1974 = vmatprep.subr.mxu0 0.0
  %1975 = vmatpush1.msra.mxu0 0.0
  %1976 = vmatprep.subr.mxu0 0.0
  %1977 = vmatpush1.msra.mxu0 0.0
  %1978 = vmatprep.subr.mxu0 0.0
  %1979 = vmatpush1.msra.mxu0 0.0
  %1980 = vmatprep.subr.mxu0 0.0
  %1981 = vmatpush1.msra.mxu0 0.0
  %1982 = vmatprep.subr.mxu0 0.0
  %1983 = vmatpush1.msra.mxu0 0.0
  %1984 = vmatprep.subr.mxu0 0.0
  %1985 = vmatpush1.msra.mxu0 0.0
  %1986 = vmatprep.subr.mxu0 0.0
  %1987 = vmatpush1.msra.mxu0 0.0
  %1988 = vmatprep.subr.mxu0 0.0
  %1989 = vmatpush1.msra.mxu0 0.0
  %1990 = vmatprep.subr.mxu0 0.0
  %1991 = vmatpush1.msra.mxu0 0.0
  %1992 = vmatprep.subr.mxu0 0.0
  %1993 = vmatpush1.msra.mxu0 0.0
  %1994 = vmatprep.subr.mxu0 0.0
  %1995 = vmatpush1.msra.mxu0 0.0
  %1996 = vmatprep.subr.mxu0 0.0
  %1997 = vmatpush1.msra.mxu0 0.0
  %1998 = vmatprep.subr.mxu0 0.0
  %1999 = vmatpush1.msra.mxu0 0.0
  %2000 = vmatprep.subr.mxu0 0.0
  %2001 = vmatpush1.msra.mxu0 0.0
  %2002 = vmatprep.subr.mxu0 0.0
  %2003 = vmatpush1.msra.mxu0 0.0
  %2004 = vmatprep.subr.mxu0 0.0
  %2005 = vmatpush1.msra.mxu0 0.0
  %2006 = vmatprep.subr.mxu0 0.0
  %2007 = vmatpush1.msra.mxu0 0.0
  %2008 = vmatprep.subr.mxu0 0.0
  %2009 = vmatpush1.msra.mxu0 0.0
  %2010 = vmatprep.subr.mxu0 0.0
  %2011 = vmatpush1.msra.mxu0 0.0
  %2012 = vmatprep.subr.mxu0 0.0
  %2013 = vmatpush1.msra.mxu0 0.0
  %2014 = vmatprep.subr.mxu0 0.0
  %2015 = vmatpush1.msra.mxu0 0.0
  %2016 = vmatprep.subr.mxu0 0.0
  %2017 = vmatpush1.msra.mxu0 0.0
  %2018 = vmatprep.subr.mxu0 0.0
  %2019 = vmatpush1.msra.mxu0 0.0
  %2020 = vmatprep.subr.mxu0 0.0
  %2021 = vmatpush1.msra.mxu0 0.0
  %2022 = vmatprep.subr.mxu0 0.0
  %2023 = vmatpush1.msra.mxu0 0.0
  %2024 = vmatprep.subr.mxu0 0.0
  %2025 = vmatpush1.msra.mxu0 0.0
  %2026 = vmatprep.subr.mxu0 0.0
  %2027 = vmatpush1.msra.mxu0 0.0
  %2028 = vmatprep.subr.mxu0 0.0
  %2029 = vmatpush1.msra.mxu0 0.0
  %2030 = vmatprep.subr.mxu0 0.0
  %2031 = vmatpush1.msra.mxu0 0.0
  %2032 = vmatprep.subr.mxu0 0.0
  %2033 = vmatpush1.msra.mxu0 0.0
  %2034 = vmatprep.mubr.f32.mxu0 0.0
  %2035 = vmatmul.mubr.f32.gmra.mrb[0].mxu0 %v1968
  %v2036 = vpop.f32.mrb[0].mxu0
  %v2037 = vadd.f32 0.0, %v2036
  %v2038 = vpop.f32.mrb[0].mxu0
  %2039 = vdwg.mxu0
  %v2041 = vsel %vm1236, %v1215, 0
  %2043 = vmatprep.subr.mxu0 0.0
  %2044 = vmatpush1.msra.mxu0 %v1183
  %2045 = vmatprep.subr.mxu0 0.0
  %2046 = vmatpush1.msra.mxu0 0.0
  %2047 = vmatprep.subr.mxu0 0.0
  %2048 = vmatpush1.msra.mxu0 0.0
  %2049 = vmatprep.subr.mxu0 0.0
  %2050 = vmatpush1.msra.mxu0 0.0
  %2051 = vmatprep.subr.mxu0 0.0
  %2052 = vmatpush1.msra.mxu0 0.0
  %2053 = vmatprep.subr.mxu0 0.0
  %2054 = vmatpush1.msra.mxu0 0.0
  %2055 = vmatprep.subr.mxu0 0.0
  %2056 = vmatpush1.msra.mxu0 0.0
  %2057 = vmatprep.subr.mxu0 0.0
  %2058 = vmatpush1.msra.mxu0 0.0
  %2059 = vmatprep.subr.mxu0 0.0
  %2060 = vmatpush1.msra.mxu0 0.0
  %2061 = vmatprep.subr.mxu0 0.0
  %2062 = vmatpush1.msra.mxu0 0.0
  %2063 = vmatprep.subr.mxu0 0.0
  %2064 = vmatpush1.msra.mxu0 0.0
  %2065 = vmatprep.subr.mxu0 0.0
  %2066 = vmatpush1.msra.mxu0 0.0
  %2067 = vmatprep.subr.mxu0 0.0
  %2068 = vmatpush1.msra.mxu0 0.0
  %2069 = vmatprep.subr.mxu0 0.0
  %2070 = vmatpush1.msra.mxu0 0.0
  %2071 = vmatprep.subr.mxu0 0.0
  %2072 = vmatpush1.msra.mxu0 0.0
  %2073 = vmatprep.subr.mxu0 0.0
  %2074 = vmatpush1.msra.mxu0 0.0
  %2075 = vmatprep.subr.mxu0 0.0
  %2076 = vmatpush1.msra.mxu0 0.0
  %2077 = vmatprep.subr.mxu0 0.0
  %2078 = vmatpush1.msra.mxu0 0.0
  %2079 = vmatprep.subr.mxu0 0.0
  %2080 = vmatpush1.msra.mxu0 0.0
  %2081 = vmatprep.subr.mxu0 0.0
  %2082 = vmatpush1.msra.mxu0 0.0
  %2083 = vmatprep.subr.mxu0 0.0
  %2084 = vmatpush1.msra.mxu0 0.0
  %2085 = vmatprep.subr.mxu0 0.0
  %2086 = vmatpush1.msra.mxu0 0.0
  %2087 = vmatprep.subr.mxu0 0.0
  %2088 = vmatpush1.msra.mxu0 0.0
  %2089 = vmatprep.subr.mxu0 0.0
  %2090 = vmatpush1.msra.mxu0 0.0
  %2091 = vmatprep.subr.mxu0 0.0
  %2092 = vmatpush1.msra.mxu0 0.0
  %2093 = vmatprep.subr.mxu0 0.0
  %2094 = vmatpush1.msra.mxu0 0.0
  %2095 = vmatprep.subr.mxu0 0.0
  %2096 = vmatpush1.msra.mxu0 0.0
  %2097 = vmatprep.subr.mxu0 0.0
  %2098 = vmatpush1.msra.mxu0 0.0
  %2099 = vmatprep.subr.mxu0 0.0
  %2100 = vmatpush1.msra.mxu0 0.0
  %2101 = vmatprep.subr.mxu0 0.0
  %2102 = vmatpush1.msra.mxu0 0.0
  %2103 = vmatprep.subr.mxu0 0.0
  %2104 = vmatpush1.msra.mxu0 0.0
  %2105 = vmatprep.subr.mxu0 0.0
  %2106 = vmatpush1.msra.mxu0 0.0
  %2107 = vmatprep.mubr.f32.mxu0 0.0
  %2108 = vmatmul.mubr.f32.gmra.mrb[0].mxu0 %v2041
  %v2109 = vpop.f32.mrb[0].mxu0
  %v2110 = vadd.f32 0.0, %v2109
  %v2111 = vpop.f32.mrb[0].mxu0
  %2112 = vdwg.mxu0
  %v2114 = vsel %vm1236, %v1216, 0
  %2116 = vmatprep.subr.mxu0 0.0
  %2117 = vmatpush1.msra.mxu0 %v1184
  %2118 = vmatprep.subr.mxu0 0.0
  %2119 = vmatpush1.msra.mxu0 0.0
  %2120 = vmatprep.subr.mxu0 0.0
  %2121 = vmatpush1.msra.mxu0 0.0
  %2122 = vmatprep.subr.mxu0 0.0
  %2123 = vmatpush1.msra.mxu0 0.0
  %2124 = vmatprep.subr.mxu0 0.0
  %2125 = vmatpush1.msra.mxu0 0.0
  %2126 = vmatprep.subr.mxu0 0.0
  %2127 = vmatpush1.msra.mxu0 0.0
  %2128 = vmatprep.subr.mxu0 0.0
  %2129 = vmatpush1.msra.mxu0 0.0
  %2130 = vmatprep.subr.mxu0 0.0
  %2131 = vmatpush1.msra.mxu0 0.0
  %2132 = vmatprep.subr.mxu0 0.0
  %2133 = vmatpush1.msra.mxu0 0.0
  %2134 = vmatprep.subr.mxu0 0.0
  %2135 = vmatpush1.msra.mxu0 0.0
  %2136 = vmatprep.subr.mxu0 0.0
  %2137 = vmatpush1.msra.mxu0 0.0
  %2138 = vmatprep.subr.mxu0 0.0
  %2139 = vmatpush1.msra.mxu0 0.0
  %2140 = vmatprep.subr.mxu0 0.0
  %2141 = vmatpush1.msra.mxu0 0.0
  %2142 = vmatprep.subr.mxu0 0.0
  %2143 = vmatpush1.msra.mxu0 0.0
  %2144 = vmatprep.subr.mxu0 0.0
  %2145 = vmatpush1.msra.mxu0 0.0
  %2146 = vmatprep.subr.mxu0 0.0
  %2147 = vmatpush1.msra.mxu0 0.0
  %2148 = vmatprep.subr.mxu0 0.0
  %2149 = vmatpush1.msra.mxu0 0.0
  %2150 = vmatprep.subr.mxu0 0.0
  %2151 = vmatpush1.msra.mxu0 0.0
  %2152 = vmatprep.subr.mxu0 0.0
  %2153 = vmatpush1.msra.mxu0 0.0
  %2154 = vmatprep.subr.mxu0 0.0
  %2155 = vmatpush1.msra.mxu0 0.0
  %2156 = vmatprep.subr.mxu0 0.0
  %2157 = vmatpush1.msra.mxu0 0.0
  %2158 = vmatprep.subr.mxu0 0.0
  %2159 = vmatpush1.msra.mxu0 0.0
  %2160 = vmatprep.subr.mxu0 0.0
  %2161 = vmatpush1.msra.mxu0 0.0
  %2162 = vmatprep.subr.mxu0 0.0
  %2163 = vmatpush1.msra.mxu0 0.0
  %2164 = vmatprep.subr.mxu0 0.0
  %2165 = vmatpush1.msra.mxu0 0.0
  %2166 = vmatprep.subr.mxu0 0.0
  %2167 = vmatpush1.msra.mxu0 0.0
  %2168 = vmatprep.subr.mxu0 0.0
  %2169 = vmatpush1.msra.mxu0 0.0
  %2170 = vmatprep.subr.mxu0 0.0
  %2171 = vmatpush1.msra.mxu0 0.0
  %2172 = vmatprep.subr.mxu0 0.0
  %2173 = vmatpush1.msra.mxu0 0.0
  %2174 = vmatprep.subr.mxu0 0.0
  %2175 = vmatpush1.msra.mxu0 0.0
  %2176 = vmatprep.subr.mxu0 0.0
  %2177 = vmatpush1.msra.mxu0 0.0
  %2178 = vmatprep.subr.mxu0 0.0
  %2179 = vmatpush1.msra.mxu0 0.0
  %2180 = vmatprep.mubr.f32.mxu0 0.0
  %2181 = vmatmul.mubr.f32.gmra.mrb[0].mxu0 %v2114
  %v2182 = vpop.f32.mrb[0].mxu0
  %v2183 = vadd.f32 0.0, %v2182
  %v2184 = vpop.f32.mrb[0].mxu0
  %2185 = vdwg.mxu0
  %v2187 = vsel %vm1236, %v1217, 0
  %2189 = vmatprep.subr.mxu0 0.0
  %2190 = vmatpush1.msra.mxu0 %v1185
  %2191 = vmatprep.subr.mxu0 0.0
  %2192 = vmatpush1.msra.mxu0 0.0
  %2193 = vmatprep.subr.mxu0 0.0
  %2194 = vmatpush1.msra.mxu0 0.0
  %2195 = vmatprep.subr.mxu0 0.0
  %2196 = vmatpush1.msra.mxu0 0.0
  %2197 = vmatprep.subr.mxu0 0.0
  %2198 = vmatpush1.msra.mxu0 0.0
  %2199 = vmatprep.subr.mxu0 0.0
  %2200 = vmatpush1.msra.mxu0 0.0
  %2201 = vmatprep.subr.mxu0 0.0
  %2202 = vmatpush1.msra.mxu0 0.0
  %2203 = vmatprep.subr.mxu0 0.0
  %2204 = vmatpush1.msra.mxu0 0.0
  %2205 = vmatprep.subr.mxu0 0.0
  %2206 = vmatpush1.msra.mxu0 0.0
  %2207 = vmatprep.subr.mxu0 0.0
  %2208 = vmatpush1.msra.mxu0 0.0
  %2209 = vmatprep.subr.mxu0 0.0
  %2210 = vmatpush1.msra.mxu0 0.0
  %2211 = vmatprep.subr.mxu0 0.0
  %2212 = vmatpush1.msra.mxu0 0.0
  %2213 = vmatprep.subr.mxu0 0.0
  %2214 = vmatpush1.msra.mxu0 0.0
  %2215 = vmatprep.subr.mxu0 0.0
  %2216 = vmatpush1.msra.mxu0 0.0
  %2217 = vmatprep.subr.mxu0 0.0
  %2218 = vmatpush1.msra.mxu0 0.0
  %2219 = vmatprep.subr.mxu0 0.0
  %2220 = vmatpush1.msra.mxu0 0.0
  %2221 = vmatprep.subr.mxu0 0.0
  %2222 = vmatpush1.msra.mxu0 0.0
  %2223 = vmatprep.subr.mxu0 0.0
  %2224 = vmatpush1.msra.mxu0 0.0
  %2225 = vmatprep.subr.mxu0 0.0
  %2226 = vmatpush1.msra.mxu0 0.0
  %2227 = vmatprep.subr.mxu0 0.0
  %2228 = vmatpush1.msra.mxu0 0.0
  %2229 = vmatprep.subr.mxu0 0.0
  %2230 = vmatpush1.msra.mxu0 0.0
  %2231 = vmatprep.subr.mxu0 0.0
  %2232 = vmatpush1.msra.mxu0 0.0
  %2233 = vmatprep.subr.mxu0 0.0
  %2234 = vmatpush1.msra.mxu0 0.0
  %2235 = vmatprep.subr.mxu0 0.0
  %2236 = vmatpush1.msra.mxu0 0.0
  %2237 = vmatprep.subr.mxu0 0.0
  %2238 = vmatpush1.msra.mxu0 0.0
  %2239 = vmatprep.subr.mxu0 0.0
  %2240 = vmatpush1.msra.mxu0 0.0
  %2241 = vmatprep.subr.mxu0 0.0
  %2242 = vmatpush1.msra.mxu0 0.0
  %2243 = vmatprep.subr.mxu0 0.0
  %2244 = vmatpush1.msra.mxu0 0.0
  %2245 = vmatprep.subr.mxu0 0.0
  %2246 = vmatpush1.msra.mxu0 0.0
  %2247 = vmatprep.subr.mxu0 0.0
  %2248 = vmatpush1.msra.mxu0 0.0
  %2249 = vmatprep.subr.mxu0 0.0
  %2250 = vmatpush1.msra.mxu0 0.0
  %2251 = vmatprep.subr.mxu0 0.0
  %2252 = vmatpush1.msra.mxu0 0.0
  %2253 = vmatprep.mubr.f32.mxu0 0.0
  %2254 = vmatmul.mubr.f32.gmra.mrb[0].mxu0 %v2187
  %v2255 = vpop.f32.mrb[0].mxu0
  %v2256 = vadd.f32 0.0, %v2255
  %v2257 = vpop.f32.mrb[0].mxu0
  %2258 = vdwg.mxu0
  %v2260 = vsel %vm1236, %v1218, 0
  %2262 = vmatprep.subr.mxu0 0.0
  %2263 = vmatpush1.msra.mxu0 %v1186
  %2264 = vmatprep.subr.mxu0 0.0
  %2265 = vmatpush1.msra.mxu0 0.0
  %2266 = vmatprep.subr.mxu0 0.0
  %2267 = vmatpush1.msra.mxu0 0.0
  %2268 = vmatprep.subr.mxu0 0.0
  %2269 = vmatpush1.msra.mxu0 0.0
  %2270 = vmatprep.subr.mxu0 0.0
  %2271 = vmatpush1.msra.mxu0 0.0
  %2272 = vmatprep.subr.mxu0 0.0
  %2273 = vmatpush1.msra.mxu0 0.0
  %2274 = vmatprep.subr.mxu0 0.0
  %2275 = vmatpush1.msra.mxu0 0.0
  %2276 = vmatprep.subr.mxu0 0.0
  %2277 = vmatpush1.msra.mxu0 0.0
  %2278 = vmatprep.subr.mxu0 0.0
  %2279 = vmatpush1.msra.mxu0 0.0
  %2280 = vmatprep.subr.mxu0 0.0
  %2281 = vmatpush1.msra.mxu0 0.0
  %2282 = vmatprep.subr.mxu0 0.0
  %2283 = vmatpush1.msra.mxu0 0.0
  %2284 = vmatprep.subr.mxu0 0.0
  %2285 = vmatpush1.msra.mxu0 0.0
  %2286 = vmatprep.subr.mxu0 0.0
  %2287 = vmatpush1.msra.mxu0 0.0
  %2288 = vmatprep.subr.mxu0 0.0
  %2289 = vmatpush1.msra.mxu0 0.0
  %2290 = vmatprep.subr.mxu0 0.0
  %2291 = vmatpush1.msra.mxu0 0.0
  %2292 = vmatprep.subr.mxu0 0.0
  %2293 = vmatpush1.msra.mxu0 0.0
  %2294 = vmatprep.subr.mxu0 0.0
  %2295 = vmatpush1.msra.mxu0 0.0
  %2296 = vmatprep.subr.mxu0 0.0
  %2297 = vmatpush1.msra.mxu0 0.0
  %2298 = vmatprep.subr.mxu0 0.0
  %2299 = vmatpush1.msra.mxu0 0.0
  %2300 = vmatprep.subr.mxu0 0.0
  %2301 = vmatpush1.msra.mxu0 0.0
  %2302 = vmatprep.subr.mxu0 0.0
  %2303 = vmatpush1.msra.mxu0 0.0
  %2304 = vmatprep.subr.mxu0 0.0
  %2305 = vmatpush1.msra.mxu0 0.0
  %2306 = vmatprep.subr.mxu0 0.0
  %2307 = vmatpush1.msra.mxu0 0.0
  %2308 = vmatprep.subr.mxu0 0.0
  %2309 = vmatpush1.msra.mxu0 0.0
  %2310 = vmatprep.subr.mxu0 0.0
  %2311 = vmatpush1.msra.mxu0 0.0
  %2312 = vmatprep.subr.mxu0 0.0
  %2313 = vmatpush1.msra.mxu0 0.0
  %2314 = vmatprep.subr.mxu0 0.0
  %2315 = vmatpush1.msra.mxu0 0.0
  %2316 = vmatprep.subr.mxu0 0.0
  %2317 = vmatpush1.msra.mxu0 0.0
  %2318 = vmatprep.subr.mxu0 0.0
  %2319 = vmatpush1.msra.mxu0 0.0
  %2320 = vmatprep.subr.mxu0 0.0
  %2321 = vmatpush1.msra.mxu0 0.0
  %2322 = vmatprep.subr.mxu0 0.0
  %2323 = vmatpush1.msra.mxu0 0.0
  %2324 = vmatprep.subr.mxu0 0.0
  %2325 = vmatpush1.msra.mxu0 0.0
  %2326 = vmatprep.mubr.f32.mxu0 0.0
  %2327 = vmatmul.mubr.f32.gmra.mrb[0].mxu0 %v2260
  %v2328 = vpop.f32.mrb[0].mxu0
  %v2329 = vadd.f32 0.0, %v2328
  %v2330 = vpop.f32.mrb[0].mxu0
  %2331 = vdwg.mxu0
  %v2333 = vsel %vm1236, %v1219, 0
  %2335 = vmatprep.subr.mxu0 0.0
  %2336 = vmatpush1.msra.mxu0 %v1187
  %2337 = vmatprep.subr.mxu0 0.0
  %2338 = vmatpush1.msra.mxu0 0.0
  %2339 = vmatprep.subr.mxu0 0.0
  %2340 = vmatpush1.msra.mxu0 0.0
  %2341 = vmatprep.subr.mxu0 0.0
  %2342 = vmatpush1.msra.mxu0 0.0
  %2343 = vmatprep.subr.mxu0 0.0
  %2344 = vmatpush1.msra.mxu0 0.0
  %2345 = vmatprep.subr.mxu0 0.0
  %2346 = vmatpush1.msra.mxu0 0.0
  %2347 = vmatprep.subr.mxu0 0.0
  %2348 = vmatpush1.msra.mxu0 0.0
  %2349 = vmatprep.subr.mxu0 0.0
  %2350 = vmatpush1.msra.mxu0 0.0
  %2351 = vmatprep.subr.mxu0 0.0
  %2352 = vmatpush1.msra.mxu0 0.0
  %2353 = vmatprep.subr.mxu0 0.0
  %2354 = vmatpush1.msra.mxu0 0.0
  %2355 = vmatprep.subr.mxu0 0.0
  %2356 = vmatpush1.msra.mxu0 0.0
  %2357 = vmatprep.subr.mxu0 0.0
  %2358 = vmatpush1.msra.mxu0 0.0
  %2359 = vmatprep.subr.mxu0 0.0
  %2360 = vmatpush1.msra.mxu0 0.0
  %2361 = vmatprep.subr.mxu0 0.0
  %2362 = vmatpush1.msra.mxu0 0.0
  %2363 = vmatprep.subr.mxu0 0.0
  %2364 = vmatpush1.msra.mxu0 0.0
  %2365 = vmatprep.subr.mxu0 0.0
  %2366 = vmatpush1.msra.mxu0 0.0
  %2367 = vmatprep.subr.mxu0 0.0
  %2368 = vmatpush1.msra.mxu0 0.0
  %2369 = vmatprep.subr.mxu0 0.0
  %2370 = vmatpush1.msra.mxu0 0.0
  %2371 = vmatprep.subr.mxu0 0.0
  %2372 = vmatpush1.msra.mxu0 0.0
  %2373 = vmatprep.subr.mxu0 0.0
  %2374 = vmatpush1.msra.mxu0 0.0
  %2375 = vmatprep.subr.mxu0 0.0
  %2376 = vmatpush1.msra.mxu0 0.0
  %2377 = vmatprep.subr.mxu0 0.0
  %2378 = vmatpush1.msra.mxu0 0.0
  %2379 = vmatprep.subr.mxu0 0.0
  %2380 = vmatpush1.msra.mxu0 0.0
  %2381 = vmatprep.subr.mxu0 0.0
  %2382 = vmatpush1.msra.mxu0 0.0
  %2383 = vmatprep.subr.mxu0 0.0
  %2384 = vmatpush1.msra.mxu0 0.0
  %2385 = vmatprep.subr.mxu0 0.0
  %2386 = vmatpush1.msra.mxu0 0.0
  %2387 = vmatprep.subr.mxu0 0.0
  %2388 = vmatpush1.msra.mxu0 0.0
  %2389 = vmatprep.subr.mxu0 0.0
  %2390 = vmatpush1.msra.mxu0 0.0
  %2391 = vmatprep.subr.mxu0 0.0
  %2392 = vmatpush1.msra.mxu0 0.0
  %2393 = vmatprep.subr.mxu0 0.0
  %2394 = vmatpush1.msra.mxu0 0.0
  %2395 = vmatprep.subr.mxu0 0.0
  %2396 = vmatpush1.msra.mxu0 0.0
  %2397 = vmatprep.subr.mxu0 0.0
  %2398 = vmatpush1.msra.mxu0 0.0
  %2399 = vmatprep.mubr.f32.mxu0 0.0
  %2400 = vmatmul.mubr.f32.gmra.mrb[0].mxu0 %v2333
  %v2401 = vpop.f32.mrb[0].mxu0
  %v2402 = vadd.f32 0.0, %v2401
  %v2403 = vpop.f32.mrb[0].mxu0
  %2404 = vdwg.mxu0
  %v2406 = vsel %vm1236, %v1220, 0
  %2408 = vmatprep.subr.mxu0 0.0
  %2409 = vmatpush1.msra.mxu0 %v1188
  %2410 = vmatprep.subr.mxu0 0.0
  %2411 = vmatpush1.msra.mxu0 0.0
  %2412 = vmatprep.subr.mxu0 0.0
  %2413 = vmatpush1.msra.mxu0 0.0
  %2414 = vmatprep.subr.mxu0 0.0
  %2415 = vmatpush1.msra.mxu0 0.0
  %2416 = vmatprep.subr.mxu0 0.0
  %2417 = vmatpush1.msra.mxu0 0.0
  %2418 = vmatprep.subr.mxu0 0.0
  %2419 = vmatpush1.msra.mxu0 0.0
  %2420 = vmatprep.subr.mxu0 0.0
  %2421 = vmatpush1.msra.mxu0 0.0
  %2422 = vmatprep.subr.mxu0 0.0
  %2423 = vmatpush1.msra.mxu0 0.0
  %2424 = vmatprep.subr.mxu0 0.0
  %2425 = vmatpush1.msra.mxu0 0.0
  %2426 = vmatprep.subr.mxu0 0.0
  %2427 = vmatpush1.msra.mxu0 0.0
  %2428 = vmatprep.subr.mxu0 0.0
  %2429 = vmatpush1.msra.mxu0 0.0
  %2430 = vmatprep.subr.mxu0 0.0
  %2431 = vmatpush1.msra.mxu0 0.0
  %2432 = vmatprep.subr.mxu0 0.0
  %2433 = vmatpush1.msra.mxu0 0.0
  %2434 = vmatprep.subr.mxu0 0.0
  %2435 = vmatpush1.msra.mxu0 0.0
  %2436 = vmatprep.subr.mxu0 0.0
  %2437 = vmatpush1.msra.mxu0 0.0
  %2438 = vmatprep.subr.mxu0 0.0
  %2439 = vmatpush1.msra.mxu0 0.0
  %2440 = vmatprep.subr.mxu0 0.0
  %2441 = vmatpush1.msra.mxu0 0.0
  %2442 = vmatprep.subr.mxu0 0.0
  %2443 = vmatpush1.msra.mxu0 0.0
  %2444 = vmatprep.subr.mxu0 0.0
  %2445 = vmatpush1.msra.mxu0 0.0
  %2446 = vmatprep.subr.mxu0 0.0
  %2447 = vmatpush1.msra.mxu0 0.0
  %2448 = vmatprep.subr.mxu0 0.0
  %2449 = vmatpush1.msra.mxu0 0.0
  %2450 = vmatprep.subr.mxu0 0.0
  %2451 = vmatpush1.msra.mxu0 0.0
  %2452 = vmatprep.subr.mxu0 0.0
  %2453 = vmatpush1.msra.mxu0 0.0
  %2454 = vmatprep.subr.mxu0 0.0
  %2455 = vmatpush1.msra.mxu0 0.0
  %2456 = vmatprep.subr.mxu0 0.0
  %2457 = vmatpush1.msra.mxu0 0.0
  %2458 = vmatprep.subr.mxu0 0.0
  %2459 = vmatpush1.msra.mxu0 0.0
  %2460 = vmatprep.subr.mxu0 0.0
  %2461 = vmatpush1.msra.mxu0 0.0
  %2462 = vmatprep.subr.mxu0 0.0
  %2463 = vmatpush1.msra.mxu0 0.0
  %2464 = vmatprep.subr.mxu0 0.0
  %2465 = vmatpush1.msra.mxu0 0.0
  %2466 = vmatprep.subr.mxu0 0.0
  %2467 = vmatpush1.msra.mxu0 0.0
  %2468 = vmatprep.subr.mxu0 0.0
  %2469 = vmatpush1.msra.mxu0 0.0
  %2470 = vmatprep.subr.mxu0 0.0
  %2471 = vmatpush1.msra.mxu0 0.0
  %2472 = vmatprep.mubr.f32.mxu0 0.0
  %2473 = vmatmul.mubr.f32.gmra.mrb[0].mxu0 %v2406
  %v2474 = vpop.f32.mrb[0].mxu0
  %v2475 = vadd.f32 0.0, %v2474
  %v2476 = vpop.f32.mrb[0].mxu0
  %2477 = vdwg.mxu0
  %v2479 = vsel %vm1236, %v1221, 0
  %2481 = vmatprep.subr.mxu0 0.0
  %2482 = vmatpush1.msra.mxu0 %v1189
  %2483 = vmatprep.subr.mxu0 0.0
  %2484 = vmatpush1.msra.mxu0 0.0
  %2485 = vmatprep.subr.mxu0 0.0
  %2486 = vmatpush1.msra.mxu0 0.0
  %2487 = vmatprep.subr.mxu0 0.0
  %2488 = vmatpush1.msra.mxu0 0.0
  %2489 = vmatprep.subr.mxu0 0.0
  %2490 = vmatpush1.msra.mxu0 0.0
  %2491 = vmatprep.subr.mxu0 0.0
  %2492 = vmatpush1.msra.mxu0 0.0
  %2493 = vmatprep.subr.mxu0 0.0
  %2494 = vmatpush1.msra.mxu0 0.0
  %2495 = vmatprep.subr.mxu0 0.0
  %2496 = vmatpush1.msra.mxu0 0.0
  %2497 = vmatprep.subr.mxu0 0.0
  %2498 = vmatpush1.msra.mxu0 0.0
  %2499 = vmatprep.subr.mxu0 0.0
  %2500 = vmatpush1.msra.mxu0 0.0
  %2501 = vmatprep.subr.mxu0 0.0
  %2502 = vmatpush1.msra.mxu0 0.0
  %2503 = vmatprep.subr.mxu0 0.0
  %2504 = vmatpush1.msra.mxu0 0.0
  %2505 = vmatprep.subr.mxu0 0.0
  %2506 = vmatpush1.msra.mxu0 0.0
  %2507 = vmatprep.subr.mxu0 0.0
  %2508 = vmatpush1.msra.mxu0 0.0
  %2509 = vmatprep.subr.mxu0 0.0
  %2510 = vmatpush1.msra.mxu0 0.0
  %2511 = vmatprep.subr.mxu0 0.0
  %2512 = vmatpush1.msra.mxu0 0.0
  %2513 = vmatprep.subr.mxu0 0.0
  %2514 = vmatpush1.msra.mxu0 0.0
  %2515 = vmatprep.subr.mxu0 0.0
  %2516 = vmatpush1.msra.mxu0 0.0
  %2517 = vmatprep.subr.mxu0 0.0
  %2518 = vmatpush1.msra.mxu0 0.0
  %2519 = vmatprep.subr.mxu0 0.0
  %2520 = vmatpush1.msra.mxu0 0.0
  %2521 = vmatprep.subr.mxu0 0.0
  %2522 = vmatpush1.msra.mxu0 0.0
  %2523 = vmatprep.subr.mxu0 0.0
  %2524 = vmatpush1.msra.mxu0 0.0
  %2525 = vmatprep.subr.mxu0 0.0
  %2526 = vmatpush1.msra.mxu0 0.0
  %2527 = vmatprep.subr.mxu0 0.0
  %2528 = vmatpush1.msra.mxu0 0.0
  %2529 = vmatprep.subr.mxu0 0.0
  %2530 = vmatpush1.msra.mxu0 0.0
  %2531 = vmatprep.subr.mxu0 0.0
  %2532 = vmatpush1.msra.mxu0 0.0
  %2533 = vmatprep.subr.mxu0 0.0
  %2534 = vmatpush1.msra.mxu0 0.0
  %2535 = vmatprep.subr.mxu0 0.0
  %2536 = vmatpush1.msra.mxu0 0.0
  %2537 = vmatprep.subr.mxu0 0.0
  %2538 = vmatpush1.msra.mxu0 0.0
  %2539 = vmatprep.subr.mxu0 0.0
  %2540 = vmatpush1.msra.mxu0 0.0
  %2541 = vmatprep.subr.mxu0 0.0
  %2542 = vmatpush1.msra.mxu0 0.0
  %2543 = vmatprep.subr.mxu0 0.0
  %2544 = vmatpush1.msra.mxu0 0.0
  %2545 = vmatprep.mubr.f32.mxu0 0.0
  %2546 = vmatmul.mubr.f32.gmra.mrb[0].mxu0 %v2479
  %v2547 = vpop.f32.mrb[0].mxu0
  %v2548 = vadd.f32 0.0, %v2547
  %v2549 = vpop.f32.mrb[0].mxu0
  %2550 = vdwg.mxu0
  %v2552 = vsel %vm1236, %v1222, 0
  %2554 = vmatprep.subr.mxu0 0.0
  %2555 = vmatpush1.msra.mxu0 %v1190
  %2556 = vmatprep.subr.mxu0 0.0
  %2557 = vmatpush1.msra.mxu0 0.0
  %2558 = vmatprep.subr.mxu0 0.0
  %2559 = vmatpush1.msra.mxu0 0.0
  %2560 = vmatprep.subr.mxu0 0.0
  %2561 = vmatpush1.msra.mxu0 0.0
  %2562 = vmatprep.subr.mxu0 0.0
  %2563 = vmatpush1.msra.mxu0 0.0
  %2564 = vmatprep.subr.mxu0 0.0
  %2565 = vmatpush1.msra.mxu0 0.0
  %2566 = vmatprep.subr.mxu0 0.0
  %2567 = vmatpush1.msra.mxu0 0.0
  %2568 = vmatprep.subr.mxu0 0.0
  %2569 = vmatpush1.msra.mxu0 0.0
  %2570 = vmatprep.subr.mxu0 0.0
  %2571 = vmatpush1.msra.mxu0 0.0
  %2572 = vmatprep.subr.mxu0 0.0
  %2573 = vmatpush1.msra.mxu0 0.0
  %2574 = vmatprep.subr.mxu0 0.0
  %2575 = vmatpush1.msra.mxu0 0.0
  %2576 = vmatprep.subr.mxu0 0.0
  %2577 = vmatpush1.msra.mxu0 0.0
  %2578 = vmatprep.subr.mxu0 0.0
  %2579 = vmatpush1.msra.mxu0 0.0
  %2580 = vmatprep.subr.mxu0 0.0
  %2581 = vmatpush1.msra.mxu0 0.0
  %2582 = vmatprep.subr.mxu0 0.0
  %2583 = vmatpush1.msra.mxu0 0.0
  %2584 = vmatprep.subr.mxu0 0.0
  %2585 = vmatpush1.msra.mxu0 0.0
  %2586 = vmatprep.subr.mxu0 0.0
  %2587 = vmatpush1.msra.mxu0 0.0
  %2588 = vmatprep.subr.mxu0 0.0
  %2589 = vmatpush1.msra.mxu0 0.0
  %2590 = vmatprep.subr.mxu0 0.0
  %2591 = vmatpush1.msra.mxu0 0.0
  %2592 = vmatprep.subr.mxu0 0.0
  %2593 = vmatpush1.msra.mxu0 0.0
  %2594 = vmatprep.subr.mxu0 0.0
  %2595 = vmatpush1.msra.mxu0 0.0
  %2596 = vmatprep.subr.mxu0 0.0
  %2597 = vmatpush1.msra.mxu0 0.0
  %2598 = vmatprep.subr.mxu0 0.0
  %2599 = vmatpush1.msra.mxu0 0.0
  %2600 = vmatprep.subr.mxu0 0.0
  %2601 = vmatpush1.msra.mxu0 0.0
  %2602 = vmatprep.subr.mxu0 0.0
  %2603 = vmatpush1.msra.mxu0 0.0
  %2604 = vmatprep.subr.mxu0 0.0
  %2605 = vmatpush1.msra.mxu0 0.0
  %2606 = vmatprep.subr.mxu0 0.0
  %2607 = vmatpush1.msra.mxu0 0.0
  %2608 = vmatprep.subr.mxu0 0.0
  %2609 = vmatpush1.msra.mxu0 0.0
  %2610 = vmatprep.subr.mxu0 0.0
  %2611 = vmatpush1.msra.mxu0 0.0
  %2612 = vmatprep.subr.mxu0 0.0
  %2613 = vmatpush1.msra.mxu0 0.0
  %2614 = vmatprep.subr.mxu0 0.0
  %2615 = vmatpush1.msra.mxu0 0.0
  %2616 = vmatprep.subr.mxu0 0.0
  %2617 = vmatpush1.msra.mxu0 0.0
  %2618 = vmatprep.mubr.f32.mxu0 0.0
  %2619 = vmatmul.mubr.f32.gmra.mrb[0].mxu0 %v2552
  %v2620 = vpop.f32.mrb[0].mxu0
  %v2621 = vadd.f32 0.0, %v2620
  %v2622 = vpop.f32.mrb[0].mxu0
  %2623 = vdwg.mxu0
  %v2625 = vsel %vm1236, %v1223, 0
  %2627 = vmatprep.subr.mxu0 0.0
  %2628 = vmatpush1.msra.mxu0 %v1191
  %2629 = vmatprep.subr.mxu0 0.0
  %2630 = vmatpush1.msra.mxu0 0.0
  %2631 = vmatprep.subr.mxu0 0.0
  %2632 = vmatpush1.msra.mxu0 0.0
  %2633 = vmatprep.subr.mxu0 0.0
  %2634 = vmatpush1.msra.mxu0 0.0
  %2635 = vmatprep.subr.mxu0 0.0
  %2636 = vmatpush1.msra.mxu0 0.0
  %2637 = vmatprep.subr.mxu0 0.0
  %2638 = vmatpush1.msra.mxu0 0.0
  %2639 = vmatprep.subr.mxu0 0.0
  %2640 = vmatpush1.msra.mxu0 0.0
  %2641 = vmatprep.subr.mxu0 0.0
  %2642 = vmatpush1.msra.mxu0 0.0
  %2643 = vmatprep.subr.mxu0 0.0
  %2644 = vmatpush1.msra.mxu0 0.0
  %2645 = vmatprep.subr.mxu0 0.0
  %2646 = vmatpush1.msra.mxu0 0.0
  %2647 = vmatprep.subr.mxu0 0.0
  %2648 = vmatpush1.msra.mxu0 0.0
  %2649 = vmatprep.subr.mxu0 0.0
  %2650 = vmatpush1.msra.mxu0 0.0
  %2651 = vmatprep.subr.mxu0 0.0
  %2652 = vmatpush1.msra.mxu0 0.0
  %2653 = vmatprep.subr.mxu0 0.0
  %2654 = vmatpush1.msra.mxu0 0.0
  %2655 = vmatprep.subr.mxu0 0.0
  %2656 = vmatpush1.msra.mxu0 0.0
  %2657 = vmatprep.subr.mxu0 0.0
  %2658 = vmatpush1.msra.mxu0 0.0
  %2659 = vmatprep.subr.mxu0 0.0
  %2660 = vmatpush1.msra.mxu0 0.0
  %2661 = vmatprep.subr.mxu0 0.0
  %2662 = vmatpush1.msra.mxu0 0.0
  %2663 = vmatprep.subr.mxu0 0.0
  %2664 = vmatpush1.msra.mxu0 0.0
  %2665 = vmatprep.subr.mxu0 0.0
  %2666 = vmatpush1.msra.mxu0 0.0
  %2667 = vmatprep.subr.mxu0 0.0
  %2668 = vmatpush1.msra.mxu0 0.0
  %2669 = vmatprep.subr.mxu0 0.0
  %2670 = vmatpush1.msra.mxu0 0.0
  %2671 = vmatprep.subr.mxu0 0.0
  %2672 = vmatpush1.msra.mxu0 0.0
  %2673 = vmatprep.subr.mxu0 0.0
  %2674 = vmatpush1.msra.mxu0 0.0
  %2675 = vmatprep.subr.mxu0 0.0
  %2676 = vmatpush1.msra.mxu0 0.0
  %2677 = vmatprep.subr.mxu0 0.0
  %2678 = vmatpush1.msra.mxu0 0.0
  %2679 = vmatprep.subr.mxu0 0.0
  %2680 = vmatpush1.msra.mxu0 0.0
  %2681 = vmatprep.subr.mxu0 0.0
  %2682 = vmatpush1.msra.mxu0 0.0
  %2683 = vmatprep.subr.mxu0 0.0
  %2684 = vmatpush1.msra.mxu0 0.0
  %2685 = vmatprep.subr.mxu0 0.0
  %2686 = vmatpush1.msra.mxu0 0.0
  %2687 = vmatprep.subr.mxu0 0.0
  %2688 = vmatpush1.msra.mxu0 0.0
  %2689 = vmatprep.subr.mxu0 0.0
  %2690 = vmatpush1.msra.mxu0 0.0
  %2691 = vmatprep.mubr.f32.mxu0 0.0
  %2692 = vmatmul.mubr.f32.gmra.mrb[0].mxu0 %v2625
  %v2693 = vpop.f32.mrb[0].mxu0
  %v2694 = vadd.f32 0.0, %v2693
  %v2695 = vpop.f32.mrb[0].mxu0
  %2696 = vdwg.mxu0
  %v2698 = vsel %vm1236, %v1224, 0
  %2700 = vmatprep.subr.mxu0 0.0
  %2701 = vmatpush1.msra.mxu0 %v1192
  %2702 = vmatprep.subr.mxu0 0.0
  %2703 = vmatpush1.msra.mxu0 0.0
  %2704 = vmatprep.subr.mxu0 0.0
  %2705 = vmatpush1.msra.mxu0 0.0
  %2706 = vmatprep.subr.mxu0 0.0
  %2707 = vmatpush1.msra.mxu0 0.0
  %2708 = vmatprep.subr.mxu0 0.0
  %2709 = vmatpush1.msra.mxu0 0.0
  %2710 = vmatprep.subr.mxu0 0.0
  %2711 = vmatpush1.msra.mxu0 0.0
  %2712 = vmatprep.subr.mxu0 0.0
  %2713 = vmatpush1.msra.mxu0 0.0
  %2714 = vmatprep.subr.mxu0 0.0
  %2715 = vmatpush1.msra.mxu0 0.0
  %2716 = vmatprep.subr.mxu0 0.0
  %2717 = vmatpush1.msra.mxu0 0.0
  %2718 = vmatprep.subr.mxu0 0.0
  %2719 = vmatpush1.msra.mxu0 0.0
  %2720 = vmatprep.subr.mxu0 0.0
  %2721 = vmatpush1.msra.mxu0 0.0
  %2722 = vmatprep.subr.mxu0 0.0
  %2723 = vmatpush1.msra.mxu0 0.0
  %2724 = vmatprep.subr.mxu0 0.0
  %2725 = vmatpush1.msra.mxu0 0.0
  %2726 = vmatprep.subr.mxu0 0.0
  %2727 = vmatpush1.msra.mxu0 0.0
  %2728 = vmatprep.subr.mxu0 0.0
  %2729 = vmatpush1.msra.mxu0 0.0
  %2730 = vmatprep.subr.mxu0 0.0
  %2731 = vmatpush1.msra.mxu0 0.0
  %2732 = vmatprep.subr.mxu0 0.0
  %2733 = vmatpush1.msra.mxu0 0.0
  %2734 = vmatprep.subr.mxu0 0.0
  %2735 = vmatpush1.msra.mxu0 0.0
  %2736 = vmatprep.subr.mxu0 0.0
  %2737 = vmatpush1.msra.mxu0 0.0
  %2738 = vmatprep.subr.mxu0 0.0
  %2739 = vmatpush1.msra.mxu0 0.0
  %2740 = vmatprep.subr.mxu0 0.0
  %2741 = vmatpush1.msra.mxu0 0.0
  %2742 = vmatprep.subr.mxu0 0.0
  %2743 = vmatpush1.msra.mxu0 0.0
  %2744 = vmatprep.subr.mxu0 0.0
  %2745 = vmatpush1.msra.mxu0 0.0
  %2746 = vmatprep.subr.mxu0 0.0
  %2747 = vmatpush1.msra.mxu0 0.0
  %2748 = vmatprep.subr.mxu0 0.0
  %2749 = vmatpush1.msra.mxu0 0.0
  %2750 = vmatprep.subr.mxu0 0.0
  %2751 = vmatpush1.msra.mxu0 0.0
  %2752 = vmatprep.subr.mxu0 0.0
  %2753 = vmatpush1.msra.mxu0 0.0
  %2754 = vmatprep.subr.mxu0 0.0
  %2755 = vmatpush1.msra.mxu0 0.0
  %2756 = vmatprep.subr.mxu0 0.0
  %2757 = vmatpush1.msra.mxu0 0.0
  %2758 = vmatprep.subr.mxu0 0.0
  %2759 = vmatpush1.msra.mxu0 0.0
  %2760 = vmatprep.subr.mxu0 0.0
  %2761 = vmatpush1.msra.mxu0 0.0
  %2762 = vmatprep.subr.mxu0 0.0
  %2763 = vmatpush1.msra.mxu0 0.0
  %2764 = vmatprep.mubr.f32.mxu0 0.0
  %2765 = vmatmul.mubr.f32.gmra.mrb[0].mxu0 %v2698
  %v2766 = vpop.f32.mrb[0].mxu0
  %v2767 = vadd.f32 0.0, %v2766
  %v2768 = vpop.f32.mrb[0].mxu0
  %2769 = vdwg.mxu0
  %v2771 = vsel %vm1236, %v1225, 0
  %2773 = vmatprep.subr.mxu0 0.0
  %2774 = vmatpush1.msra.mxu0 %v1193
  %2775 = vmatprep.subr.mxu0 0.0
  %2776 = vmatpush1.msra.mxu0 0.0
  %2777 = vmatprep.subr.mxu0 0.0
  %2778 = vmatpush1.msra.mxu0 0.0
  %2779 = vmatprep.subr.mxu0 0.0
  %2780 = vmatpush1.msra.mxu0 0.0
  %2781 = vmatprep.subr.mxu0 0.0
  %2782 = vmatpush1.msra.mxu0 0.0
  %2783 = vmatprep.subr.mxu0 0.0
  %2784 = vmatpush1.msra.mxu0 0.0
  %2785 = vmatprep.subr.mxu0 0.0
  %2786 = vmatpush1.msra.mxu0 0.0
  %2787 = vmatprep.subr.mxu0 0.0
  %2788 = vmatpush1.msra.mxu0 0.0
  %2789 = vmatprep.subr.mxu0 0.0
  %2790 = vmatpush1.msra.mxu0 0.0
  %2791 = vmatprep.subr.mxu0 0.0
  %2792 = vmatpush1.msra.mxu0 0.0
  %2793 = vmatprep.subr.mxu0 0.0
  %2794 = vmatpush1.msra.mxu0 0.0
  %2795 = vmatprep.subr.mxu0 0.0
  %2796 = vmatpush1.msra.mxu0 0.0
  %2797 = vmatprep.subr.mxu0 0.0
  %2798 = vmatpush1.msra.mxu0 0.0
  %2799 = vmatprep.subr.mxu0 0.0
  %2800 = vmatpush1.msra.mxu0 0.0
  %2801 = vmatprep.subr.mxu0 0.0
  %2802 = vmatpush1.msra.mxu0 0.0
  %2803 = vmatprep.subr.mxu0 0.0
  %2804 = vmatpush1.msra.mxu0 0.0
  %2805 = vmatprep.subr.mxu0 0.0
  %2806 = vmatpush1.msra.mxu0 0.0
  %2807 = vmatprep.subr.mxu0 0.0
  %2808 = vmatpush1.msra.mxu0 0.0
  %2809 = vmatprep.subr.mxu0 0.0
  %2810 = vmatpush1.msra.mxu0 0.0
  %2811 = vmatprep.subr.mxu0 0.0
  %2812 = vmatpush1.msra.mxu0 0.0
  %2813 = vmatprep.subr.mxu0 0.0
  %2814 = vmatpush1.msra.mxu0 0.0
  %2815 = vmatprep.subr.mxu0 0.0
  %2816 = vmatpush1.msra.mxu0 0.0
  %2817 = vmatprep.subr.mxu0 0.0
  %2818 = vmatpush1.msra.mxu0 0.0
  %2819 = vmatprep.subr.mxu0 0.0
  %2820 = vmatpush1.msra.mxu0 0.0
  %2821 = vmatprep.subr.mxu0 0.0
  %2822 = vmatpush1.msra.mxu0 0.0
  %2823 = vmatprep.subr.mxu0 0.0
  %2824 = vmatpush1.msra.mxu0 0.0
  %2825 = vmatprep.subr.mxu0 0.0
  %2826 = vmatpush1.msra.mxu0 0.0
  %2827 = vmatprep.subr.mxu0 0.0
  %2828 = vmatpush1.msra.mxu0 0.0
  %2829 = vmatprep.subr.mxu0 0.0
  %2830 = vmatpush1.msra.mxu0 0.0
  %2831 = vmatprep.subr.mxu0 0.0
  %2832 = vmatpush1.msra.mxu0 0.0
  %2833 = vmatprep.subr.mxu0 0.0
  %2834 = vmatpush1.msra.mxu0 0.0
  %2835 = vmatprep.subr.mxu0 0.0
  %2836 = vmatpush1.msra.mxu0 0.0
  %2837 = vmatprep.mubr.f32.mxu0 0.0
  %2838 = vmatmul.mubr.f32.gmra.mrb[0].mxu0 %v2771
  %v2839 = vpop.f32.mrb[0].mxu0
  %v2840 = vadd.f32 0.0, %v2839
  %v2841 = vpop.f32.mrb[0].mxu0
  %2842 = vdwg.mxu0
  %v2844 = vsel %vm1236, %v1226, 0
  %2846 = vmatprep.subr.mxu0 0.0
  %2847 = vmatpush1.msra.mxu0 %v1194
  %2848 = vmatprep.subr.mxu0 0.0
  %2849 = vmatpush1.msra.mxu0 0.0
  %2850 = vmatprep.subr.mxu0 0.0
  %2851 = vmatpush1.msra.mxu0 0.0
  %2852 = vmatprep.subr.mxu0 0.0
  %2853 = vmatpush1.msra.mxu0 0.0
  %2854 = vmatprep.subr.mxu0 0.0
  %2855 = vmatpush1.msra.mxu0 0.0
  %2856 = vmatprep.subr.mxu0 0.0
  %2857 = vmatpush1.msra.mxu0 0.0
  %2858 = vmatprep.subr.mxu0 0.0
  %2859 = vmatpush1.msra.mxu0 0.0
  %2860 = vmatprep.subr.mxu0 0.0
  %2861 = vmatpush1.msra.mxu0 0.0
  %2862 = vmatprep.subr.mxu0 0.0
  %2863 = vmatpush1.msra.mxu0 0.0
  %2864 = vmatprep.subr.mxu0 0.0
  %2865 = vmatpush1.msra.mxu0 0.0
  %2866 = vmatprep.subr.mxu0 0.0
  %2867 = vmatpush1.msra.mxu0 0.0
  %2868 = vmatprep.subr.mxu0 0.0
  %2869 = vmatpush1.msra.mxu0 0.0
  %2870 = vmatprep.subr.mxu0 0.0
  %2871 = vmatpush1.msra.mxu0 0.0
  %2872 = vmatprep.subr.mxu0 0.0
  %2873 = vmatpush1.msra.mxu0 0.0
  %2874 = vmatprep.subr.mxu0 0.0
  %2875 = vmatpush1.msra.mxu0 0.0
  %2876 = vmatprep.subr.mxu0 0.0
  %2877 = vmatpush1.msra.mxu0 0.0
  %2878 = vmatprep.subr.mxu0 0.0
  %2879 = vmatpush1.msra.mxu0 0.0
  %2880 = vmatprep.subr.mxu0 0.0
  %2881 = vmatpush1.msra.mxu0 0.0
  %2882 = vmatprep.subr.mxu0 0.0
  %2883 = vmatpush1.msra.mxu0 0.0
  %2884 = vmatprep.subr.mxu0 0.0
  %2885 = vmatpush1.msra.mxu0 0.0
  %2886 = vmatprep.subr.mxu0 0.0
  %2887 = vmatpush1.msra.mxu0 0.0
  %2888 = vmatprep.subr.mxu0 0.0
  %2889 = vmatpush1.msra.mxu0 0.0
  %2890 = vmatprep.subr.mxu0 0.0
  %2891 = vmatpush1.msra.mxu0 0.0
  %2892 = vmatprep.subr.mxu0 0.0
  %2893 = vmatpush1.msra.mxu0 0.0
  %2894 = vmatprep.subr.mxu0 0.0
  %2895 = vmatpush1.msra.mxu0 0.0
  %2896 = vmatprep.subr.mxu0 0.0
  %2897 = vmatpush1.msra.mxu0 0.0
  %2898 = vmatprep.subr.mxu0 0.0
  %2899 = vmatpush1.msra.mxu0 0.0
  %2900 = vmatprep.subr.mxu0 0.0
  %2901 = vmatpush1.msra.mxu0 0.0
  %2902 = vmatprep.subr.mxu0 0.0
  %2903 = vmatpush1.msra.mxu0 0.0
  %2904 = vmatprep.subr.mxu0 0.0
  %2905 = vmatpush1.msra.mxu0 0.0
  %2906 = vmatprep.subr.mxu0 0.0
  %2907 = vmatpush1.msra.mxu0 0.0
  %2908 = vmatprep.subr.mxu0 0.0
  %2909 = vmatpush1.msra.mxu0 0.0
  %2910 = vmatprep.mubr.f32.mxu0 0.0
  %2911 = vmatmul.mubr.f32.gmra.mrb[0].mxu0 %v2844
  %v2912 = vpop.f32.mrb[0].mxu0
  %v2913 = vadd.f32 0.0, %v2912
  %v2914 = vpop.f32.mrb[0].mxu0
  %2915 = vdwg.mxu0
  %v2917 = vsel %vm1236, %v1227, 0
  %2919 = vmatprep.subr.mxu0 0.0
  %2920 = vmatpush1.msra.mxu0 %v1195
  %2921 = vmatprep.subr.mxu0 0.0
  %2922 = vmatpush1.msra.mxu0 0.0
  %2923 = vmatprep.subr.mxu0 0.0
  %2924 = vmatpush1.msra.mxu0 0.0
  %2925 = vmatprep.subr.mxu0 0.0
  %2926 = vmatpush1.msra.mxu0 0.0
  %2927 = vmatprep.subr.mxu0 0.0
  %2928 = vmatpush1.msra.mxu0 0.0
  %2929 = vmatprep.subr.mxu0 0.0
  %2930 = vmatpush1.msra.mxu0 0.0
  %2931 = vmatprep.subr.mxu0 0.0
  %2932 = vmatpush1.msra.mxu0 0.0
  %2933 = vmatprep.subr.mxu0 0.0
  %2934 = vmatpush1.msra.mxu0 0.0
  %2935 = vmatprep.subr.mxu0 0.0
  %2936 = vmatpush1.msra.mxu0 0.0
  %2937 = vmatprep.subr.mxu0 0.0
  %2938 = vmatpush1.msra.mxu0 0.0
  %2939 = vmatprep.subr.mxu0 0.0
  %2940 = vmatpush1.msra.mxu0 0.0
  %2941 = vmatprep.subr.mxu0 0.0
  %2942 = vmatpush1.msra.mxu0 0.0
  %2943 = vmatprep.subr.mxu0 0.0
  %2944 = vmatpush1.msra.mxu0 0.0
  %2945 = vmatprep.subr.mxu0 0.0
  %2946 = vmatpush1.msra.mxu0 0.0
  %2947 = vmatprep.subr.mxu0 0.0
  %2948 = vmatpush1.msra.mxu0 0.0
  %2949 = vmatprep.subr.mxu0 0.0
  %2950 = vmatpush1.msra.mxu0 0.0
  %2951 = vmatprep.subr.mxu0 0.0
  %2952 = vmatpush1.msra.mxu0 0.0
  %2953 = vmatprep.subr.mxu0 0.0
  %2954 = vmatpush1.msra.mxu0 0.0
  %2955 = vmatprep.subr.mxu0 0.0
  %2956 = vmatpush1.msra.mxu0 0.0
  %2957 = vmatprep.subr.mxu0 0.0
  %2958 = vmatpush1.msra.mxu0 0.0
  %2959 = vmatprep.subr.mxu0 0.0
  %2960 = vmatpush1.msra.mxu0 0.0
  %2961 = vmatprep.subr.mxu0 0.0
  %2962 = vmatpush1.msra.mxu0 0.0
  %2963 = vmatprep.subr.mxu0 0.0
  %2964 = vmatpush1.msra.mxu0 0.0
  %2965 = vmatprep.subr.mxu0 0.0
  %2966 = vmatpush1.msra.mxu0 0.0
  %2967 = vmatprep.subr.mxu0 0.0
  %2968 = vmatpush1.msra.mxu0 0.0
  %2969 = vmatprep.subr.mxu0 0.0
  %2970 = vmatpush1.msra.mxu0 0.0
  %2971 = vmatprep.subr.mxu0 0.0
  %2972 = vmatpush1.msra.mxu0 0.0
  %2973 = vmatprep.subr.mxu0 0.0
  %2974 = vmatpush1.msra.mxu0 0.0
  %2975 = vmatprep.subr.mxu0 0.0
  %2976 = vmatpush1.msra.mxu0 0.0
  %2977 = vmatprep.subr.mxu0 0.0
  %2978 = vmatpush1.msra.mxu0 0.0
  %2979 = vmatprep.subr.mxu0 0.0
  %2980 = vmatpush1.msra.mxu0 0.0
  %2981 = vmatprep.subr.mxu0 0.0
  %2982 = vmatpush1.msra.mxu0 0.0
  %2983 = vmatprep.mubr.f32.mxu0 0.0
  %2984 = vmatmul.mubr.f32.gmra.mrb[0].mxu0 %v2917
  %v2985 = vpop.f32.mrb[0].mxu0
  %v2986 = vadd.f32 0.0, %v2985
  %v2987 = vpop.f32.mrb[0].mxu0
  %2988 = vdwg.mxu0
  %v2990 = vsel %vm1236, %v1228, 0
  %2992 = vmatprep.subr.mxu0 0.0
  %2993 = vmatpush1.msra.mxu0 %v1196
  %2994 = vmatprep.subr.mxu0 0.0
  %2995 = vmatpush1.msra.mxu0 0.0
  %2996 = vmatprep.subr.mxu0 0.0
  %2997 = vmatpush1.msra.mxu0 0.0
  %2998 = vmatprep.subr.mxu0 0.0
  %2999 = vmatpush1.msra.mxu0 0.0
  %3000 = vmatprep.subr.mxu0 0.0
  %3001 = vmatpush1.msra.mxu0 0.0
  %3002 = vmatprep.subr.mxu0 0.0
  %3003 = vmatpush1.msra.mxu0 0.0
  %3004 = vmatprep.subr.mxu0 0.0
  %3005 = vmatpush1.msra.mxu0 0.0
  %3006 = vmatprep.subr.mxu0 0.0
  %3007 = vmatpush1.msra.mxu0 0.0
  %3008 = vmatprep.subr.mxu0 0.0
  %3009 = vmatpush1.msra.mxu0 0.0
  %3010 = vmatprep.subr.mxu0 0.0
  %3011 = vmatpush1.msra.mxu0 0.0
  %3012 = vmatprep.subr.mxu0 0.0
  %3013 = vmatpush1.msra.mxu0 0.0
  %3014 = vmatprep.subr.mxu0 0.0
  %3015 = vmatpush1.msra.mxu0 0.0
  %3016 = vmatprep.subr.mxu0 0.0
  %3017 = vmatpush1.msra.mxu0 0.0
  %3018 = vmatprep.subr.mxu0 0.0
  %3019 = vmatpush1.msra.mxu0 0.0
  %3020 = vmatprep.subr.mxu0 0.0
  %3021 = vmatpush1.msra.mxu0 0.0
  %3022 = vmatprep.subr.mxu0 0.0
  %3023 = vmatpush1.msra.mxu0 0.0
  %3024 = vmatprep.subr.mxu0 0.0
  %3025 = vmatpush1.msra.mxu0 0.0
  %3026 = vmatprep.subr.mxu0 0.0
  %3027 = vmatpush1.msra.mxu0 0.0
  %3028 = vmatprep.subr.mxu0 0.0
  %3029 = vmatpush1.msra.mxu0 0.0
  %3030 = vmatprep.subr.mxu0 0.0
  %3031 = vmatpush1.msra.mxu0 0.0
  %3032 = vmatprep.subr.mxu0 0.0
  %3033 = vmatpush1.msra.mxu0 0.0
  %3034 = vmatprep.subr.mxu0 0.0
  %3035 = vmatpush1.msra.mxu0 0.0
  %3036 = vmatprep.subr.mxu0 0.0
  %3037 = vmatpush1.msra.mxu0 0.0
  %3038 = vmatprep.subr.mxu0 0.0
  %3039 = vmatpush1.msra.mxu0 0.0
  %3040 = vmatprep.subr.mxu0 0.0
  %3041 = vmatpush1.msra.mxu0 0.0
  %3042 = vmatprep.subr.mxu0 0.0
  %3043 = vmatpush1.msra.mxu0 0.0
  %3044 = vmatprep.subr.mxu0 0.0
  %3045 = vmatpush1.msra.mxu0 0.0
  %3046 = vmatprep.subr.mxu0 0.0
  %3047 = vmatpush1.msra.mxu0 0.0
  %3048 = vmatprep.subr.mxu0 0.0
  %3049 = vmatpush1.msra.mxu0 0.0
  %3050 = vmatprep.subr.mxu0 0.0
  %3051 = vmatpush1.msra.mxu0 0.0
  %3052 = vmatprep.subr.mxu0 0.0
  %3053 = vmatpush1.msra.mxu0 0.0
  %3054 = vmatprep.subr.mxu0 0.0
  %3055 = vmatpush1.msra.mxu0 0.0
  %3056 = vmatprep.mubr.f32.mxu0 0.0
  %3057 = vmatmul.mubr.f32.gmra.mrb[0].mxu0 %v2990
  %v3058 = vpop.f32.mrb[0].mxu0
  %v3059 = vadd.f32 0.0, %v3058
  %v3060 = vpop.f32.mrb[0].mxu0
  %3061 = vdwg.mxu0
  %v3063 = vsel %vm1236, %v1229, 0
  %3065 = vmatprep.subr.mxu0 0.0
  %3066 = vmatpush1.msra.mxu0 %v1197
  %3067 = vmatprep.subr.mxu0 0.0
  %3068 = vmatpush1.msra.mxu0 0.0
  %3069 = vmatprep.subr.mxu0 0.0
  %3070 = vmatpush1.msra.mxu0 0.0
  %3071 = vmatprep.subr.mxu0 0.0
  %3072 = vmatpush1.msra.mxu0 0.0
  %3073 = vmatprep.subr.mxu0 0.0
  %3074 = vmatpush1.msra.mxu0 0.0
  %3075 = vmatprep.subr.mxu0 0.0
  %3076 = vmatpush1.msra.mxu0 0.0
  %3077 = vmatprep.subr.mxu0 0.0
  %3078 = vmatpush1.msra.mxu0 0.0
  %3079 = vmatprep.subr.mxu0 0.0
  %3080 = vmatpush1.msra.mxu0 0.0
  %3081 = vmatprep.subr.mxu0 0.0
  %3082 = vmatpush1.msra.mxu0 0.0
  %3083 = vmatprep.subr.mxu0 0.0
  %3084 = vmatpush1.msra.mxu0 0.0
  %3085 = vmatprep.subr.mxu0 0.0
  %3086 = vmatpush1.msra.mxu0 0.0
  %3087 = vmatprep.subr.mxu0 0.0
  %3088 = vmatpush1.msra.mxu0 0.0
  %3089 = vmatprep.subr.mxu0 0.0
  %3090 = vmatpush1.msra.mxu0 0.0
  %3091 = vmatprep.subr.mxu0 0.0
  %3092 = vmatpush1.msra.mxu0 0.0
  %3093 = vmatprep.subr.mxu0 0.0
  %3094 = vmatpush1.msra.mxu0 0.0
  %3095 = vmatprep.subr.mxu0 0.0
  %3096 = vmatpush1.msra.mxu0 0.0
  %3097 = vmatprep.subr.mxu0 0.0
  %3098 = vmatpush1.msra.mxu0 0.0
  %3099 = vmatprep.subr.mxu0 0.0
  %3100 = vmatpush1.msra.mxu0 0.0
  %3101 = vmatprep.subr.mxu0 0.0
  %3102 = vmatpush1.msra.mxu0 0.0
  %3103 = vmatprep.subr.mxu0 0.0
  %3104 = vmatpush1.msra.mxu0 0.0
  %3105 = vmatprep.subr.mxu0 0.0
  %3106 = vmatpush1.msra.mxu0 0.0
  %3107 = vmatprep.subr.mxu0 0.0
  %3108 = vmatpush1.msra.mxu0 0.0
  %3109 = vmatprep.subr.mxu0 0.0
  %3110 = vmatpush1.msra.mxu0 0.0
  %3111 = vmatprep.subr.mxu0 0.0
  %3112 = vmatpush1.msra.mxu0 0.0
  %3113 = vmatprep.subr.mxu0 0.0
  %3114 = vmatpush1.msra.mxu0 0.0
  %3115 = vmatprep.subr.mxu0 0.0
  %3116 = vmatpush1.msra.mxu0 0.0
  %3117 = vmatprep.subr.mxu0 0.0
  %3118 = vmatpush1.msra.mxu0 0.0
  %3119 = vmatprep.subr.mxu0 0.0
  %3120 = vmatpush1.msra.mxu0 0.0
  %3121 = vmatprep.subr.mxu0 0.0
  %3122 = vmatpush1.msra.mxu0 0.0
  %3123 = vmatprep.subr.mxu0 0.0
  %3124 = vmatpush1.msra.mxu0 0.0
  %3125 = vmatprep.subr.mxu0 0.0
  %3126 = vmatpush1.msra.mxu0 0.0
  %3127 = vmatprep.subr.mxu0 0.0
  %3128 = vmatpush1.msra.mxu0 0.0
  %3129 = vmatprep.mubr.f32.mxu0 0.0
  %3130 = vmatmul.mubr.f32.gmra.mrb[0].mxu0 %v3063
  %v3131 = vpop.f32.mrb[0].mxu0
  %v3132 = vadd.f32 0.0, %v3131
  %v3133 = vpop.f32.mrb[0].mxu0
  %3134 = vdwg.mxu0
  %v3136 = vsel %vm1236, %v1230, 0
  %3138 = vmatprep.subr.mxu0 0.0
  %3139 = vmatpush1.msra.mxu0 %v1198
  %3140 = vmatprep.subr.mxu0 0.0
  %3141 = vmatpush1.msra.mxu0 0.0
  %3142 = vmatprep.subr.mxu0 0.0
  %3143 = vmatpush1.msra.mxu0 0.0
  %3144 = vmatprep.subr.mxu0 0.0
  %3145 = vmatpush1.msra.mxu0 0.0
  %3146 = vmatprep.subr.mxu0 0.0
  %3147 = vmatpush1.msra.mxu0 0.0
  %3148 = vmatprep.subr.mxu0 0.0
  %3149 = vmatpush1.msra.mxu0 0.0
  %3150 = vmatprep.subr.mxu0 0.0
  %3151 = vmatpush1.msra.mxu0 0.0
  %3152 = vmatprep.subr.mxu0 0.0
  %3153 = vmatpush1.msra.mxu0 0.0
  %3154 = vmatprep.subr.mxu0 0.0
  %3155 = vmatpush1.msra.mxu0 0.0
  %3156 = vmatprep.subr.mxu0 0.0
  %3157 = vmatpush1.msra.mxu0 0.0
  %3158 = vmatprep.subr.mxu0 0.0
  %3159 = vmatpush1.msra.mxu0 0.0
  %3160 = vmatprep.subr.mxu0 0.0
  %3161 = vmatpush1.msra.mxu0 0.0
  %3162 = vmatprep.subr.mxu0 0.0
  %3163 = vmatpush1.msra.mxu0 0.0
  %3164 = vmatprep.subr.mxu0 0.0
  %3165 = vmatpush1.msra.mxu0 0.0
  %3166 = vmatprep.subr.mxu0 0.0
  %3167 = vmatpush1.msra.mxu0 0.0
  %3168 = vmatprep.subr.mxu0 0.0
  %3169 = vmatpush1.msra.mxu0 0.0
  %3170 = vmatprep.subr.mxu0 0.0
  %3171 = vmatpush1.msra.mxu0 0.0
  %3172 = vmatprep.subr.mxu0 0.0
  %3173 = vmatpush1.msra.mxu0 0.0
  %3174 = vmatprep.subr.mxu0 0.0
  %3175 = vmatpush1.msra.mxu0 0.0
  %3176 = vmatprep.subr.mxu0 0.0
  %3177 = vmatpush1.msra.mxu0 0.0
  %3178 = vmatprep.subr.mxu0 0.0
  %3179 = vmatpush1.msra.mxu0 0.0
  %3180 = vmatprep.subr.mxu0 0.0
  %3181 = vmatpush1.msra.mxu0 0.0
  %3182 = vmatprep.subr.mxu0 0.0
  %3183 = vmatpush1.msra.mxu0 0.0
  %3184 = vmatprep.subr.mxu0 0.0
  %3185 = vmatpush1.msra.mxu0 0.0
  %3186 = vmatprep.subr.mxu0 0.0
  %3187 = vmatpush1.msra.mxu0 0.0
  %3188 = vmatprep.subr.mxu0 0.0
  %3189 = vmatpush1.msra.mxu0 0.0
  %3190 = vmatprep.subr.mxu0 0.0
  %3191 = vmatpush1.msra.mxu0 0.0
  %3192 = vmatprep.subr.mxu0 0.0
  %3193 = vmatpush1.msra.mxu0 0.0
  %3194 = vmatprep.subr.mxu0 0.0
  %3195 = vmatpush1.msra.mxu0 0.0
  %3196 = vmatprep.subr.mxu0 0.0
  %3197 = vmatpush1.msra.mxu0 0.0
  %3198 = vmatprep.subr.mxu0 0.0
  %3199 = vmatpush1.msra.mxu0 0.0
  %3200 = vmatprep.subr.mxu0 0.0
  %3201 = vmatpush1.msra.mxu0 0.0
  %3202 = vmatprep.mubr.f32.mxu0 0.0
  %3203 = vmatmul.mubr.f32.gmra.mrb[0].mxu0 %v3136
  %v3204 = vpop.f32.mrb[0].mxu0
  %v3205 = vadd.f32 0.0, %v3204
  %v3206 = vpop.f32.mrb[0].mxu0
  %3207 = vdwg.mxu0
  %v3209 = vsel %vm1236, %v1231, 0
  %3211 = vmatprep.subr.mxu0 0.0
  %3212 = vmatpush1.msra.mxu0 %v1199
  %3213 = vmatprep.subr.mxu0 0.0
  %3214 = vmatpush1.msra.mxu0 0.0
  %3215 = vmatprep.subr.mxu0 0.0
  %3216 = vmatpush1.msra.mxu0 0.0
  %3217 = vmatprep.subr.mxu0 0.0
  %3218 = vmatpush1.msra.mxu0 0.0
  %3219 = vmatprep.subr.mxu0 0.0
  %3220 = vmatpush1.msra.mxu0 0.0
  %3221 = vmatprep.subr.mxu0 0.0
  %3222 = vmatpush1.msra.mxu0 0.0
  %3223 = vmatprep.subr.mxu0 0.0
  %3224 = vmatpush1.msra.mxu0 0.0
  %3225 = vmatprep.subr.mxu0 0.0
  %3226 = vmatpush1.msra.mxu0 0.0
  %3227 = vmatprep.subr.mxu0 0.0
  %3228 = vmatpush1.msra.mxu0 0.0
  %3229 = vmatprep.subr.mxu0 0.0
  %3230 = vmatpush1.msra.mxu0 0.0
  %3231 = vmatprep.subr.mxu0 0.0
  %3232 = vmatpush1.msra.mxu0 0.0
  %3233 = vmatprep.subr.mxu0 0.0
  %3234 = vmatpush1.msra.mxu0 0.0
  %3235 = vmatprep.subr.mxu0 0.0
  %3236 = vmatpush1.msra.mxu0 0.0
  %3237 = vmatprep.subr.mxu0 0.0
  %3238 = vmatpush1.msra.mxu0 0.0
  %3239 = vmatprep.subr.mxu0 0.0
  %3240 = vmatpush1.msra.mxu0 0.0
  %3241 = vmatprep.subr.mxu0 0.0
  %3242 = vmatpush1.msra.mxu0 0.0
  %3243 = vmatprep.subr.mxu0 0.0
  %3244 = vmatpush1.msra.mxu0 0.0
  %3245 = vmatprep.subr.mxu0 0.0
  %3246 = vmatpush1.msra.mxu0 0.0
  %3247 = vmatprep.subr.mxu0 0.0
  %3248 = vmatpush1.msra.mxu0 0.0
  %3249 = vmatprep.subr.mxu0 0.0
  %3250 = vmatpush1.msra.mxu0 0.0
  %3251 = vmatprep.subr.mxu0 0.0
  %3252 = vmatpush1.msra.mxu0 0.0
  %3253 = vmatprep.subr.mxu0 0.0
  %3254 = vmatpush1.msra.mxu0 0.0
  %3255 = vmatprep.subr.mxu0 0.0
  %3256 = vmatpush1.msra.mxu0 0.0
  %3257 = vmatprep.subr.mxu0 0.0
  %3258 = vmatpush1.msra.mxu0 0.0
  %3259 = vmatprep.subr.mxu0 0.0
  %3260 = vmatpush1.msra.mxu0 0.0
  %3261 = vmatprep.subr.mxu0 0.0
  %3262 = vmatpush1.msra.mxu0 0.0
  %3263 = vmatprep.subr.mxu0 0.0
  %3264 = vmatpush1.msra.mxu0 0.0
  %3265 = vmatprep.subr.mxu0 0.0
  %3266 = vmatpush1.msra.mxu0 0.0
  %3267 = vmatprep.subr.mxu0 0.0
  %3268 = vmatpush1.msra.mxu0 0.0
  %3269 = vmatprep.subr.mxu0 0.0
  %3270 = vmatpush1.msra.mxu0 0.0
  %3271 = vmatprep.subr.mxu0 0.0
  %3272 = vmatpush1.msra.mxu0 0.0
  %3273 = vmatprep.subr.mxu0 0.0
  %3274 = vmatpush1.msra.mxu0 0.0
  %3275 = vmatprep.mubr.f32.mxu0 0.0
  %3276 = vmatmul.mubr.f32.gmra.mrb[0].mxu0 %v3209
  %v3277 = vpop.f32.mrb[0].mxu0
  %v3278 = vadd.f32 0.0, %v3277
  %v3279 = vpop.f32.mrb[0].mxu0
  %3280 = vdwg.mxu0
  %v3282 = vsel %vm1236, %v1232, 0
  %3284 = vmatprep.subr.mxu0 0.0
  %3285 = vmatpush1.msra.mxu0 %v1200
  %3286 = vmatprep.subr.mxu0 0.0
  %3287 = vmatpush1.msra.mxu0 0.0
  %3288 = vmatprep.subr.mxu0 0.0
  %3289 = vmatpush1.msra.mxu0 0.0
  %3290 = vmatprep.subr.mxu0 0.0
  %3291 = vmatpush1.msra.mxu0 0.0
  %3292 = vmatprep.subr.mxu0 0.0
  %3293 = vmatpush1.msra.mxu0 0.0
  %3294 = vmatprep.subr.mxu0 0.0
  %3295 = vmatpush1.msra.mxu0 0.0
  %3296 = vmatprep.subr.mxu0 0.0
  %3297 = vmatpush1.msra.mxu0 0.0
  %3298 = vmatprep.subr.mxu0 0.0
  %3299 = vmatpush1.msra.mxu0 0.0
  %3300 = vmatprep.subr.mxu0 0.0
  %3301 = vmatpush1.msra.mxu0 0.0
  %3302 = vmatprep.subr.mxu0 0.0
  %3303 = vmatpush1.msra.mxu0 0.0
  %3304 = vmatprep.subr.mxu0 0.0
  %3305 = vmatpush1.msra.mxu0 0.0
  %3306 = vmatprep.subr.mxu0 0.0
  %3307 = vmatpush1.msra.mxu0 0.0
  %3308 = vmatprep.subr.mxu0 0.0
  %3309 = vmatpush1.msra.mxu0 0.0
  %3310 = vmatprep.subr.mxu0 0.0
  %3311 = vmatpush1.msra.mxu0 0.0
  %3312 = vmatprep.subr.mxu0 0.0
  %3313 = vmatpush1.msra.mxu0 0.0
  %3314 = vmatprep.subr.mxu0 0.0
  %3315 = vmatpush1.msra.mxu0 0.0
  %3316 = vmatprep.subr.mxu0 0.0
  %3317 = vmatpush1.msra.mxu0 0.0
  %3318 = vmatprep.subr.mxu0 0.0
  %3319 = vmatpush1.msra.mxu0 0.0
  %3320 = vmatprep.subr.mxu0 0.0
  %3321 = vmatpush1.msra.mxu0 0.0
  %3322 = vmatprep.subr.mxu0 0.0
  %3323 = vmatpush1.msra.mxu0 0.0
  %3324 = vmatprep.subr.mxu0 0.0
  %3325 = vmatpush1.msra.mxu0 0.0
  %3326 = vmatprep.subr.mxu0 0.0
  %3327 = vmatpush1.msra.mxu0 0.0
  %3328 = vmatprep.subr.mxu0 0.0
  %3329 = vmatpush1.msra.mxu0 0.0
  %3330 = vmatprep.subr.mxu0 0.0
  %3331 = vmatpush1.msra.mxu0 0.0
  %3332 = vmatprep.subr.mxu0 0.0
  %3333 = vmatpush1.msra.mxu0 0.0
  %3334 = vmatprep.subr.mxu0 0.0
  %3335 = vmatpush1.msra.mxu0 0.0
  %3336 = vmatprep.subr.mxu0 0.0
  %3337 = vmatpush1.msra.mxu0 0.0
  %3338 = vmatprep.subr.mxu0 0.0
  %3339 = vmatpush1.msra.mxu0 0.0
  %3340 = vmatprep.subr.mxu0 0.0
  %3341 = vmatpush1.msra.mxu0 0.0
  %3342 = vmatprep.subr.mxu0 0.0
  %3343 = vmatpush1.msra.mxu0 0.0
  %3344 = vmatprep.subr.mxu0 0.0
  %3345 = vmatpush1.msra.mxu0 0.0
  %3346 = vmatprep.subr.mxu0 0.0
  %3347 = vmatpush1.msra.mxu0 0.0
  %3348 = vmatprep.mubr.f32.mxu0 0.0
  %3349 = vmatmul.mubr.f32.gmra.mrb[0].mxu0 %v3282
  %v3350 = vpop.f32.mrb[0].mxu0
  %v3351 = vadd.f32 0.0, %v3350
  %v3352 = vpop.f32.mrb[0].mxu0
  %3353 = vdwg.mxu0
  %v3355 = vsel %vm1236, %v1233, 0
  %3357 = vmatprep.subr.mxu0 0.0
  %3358 = vmatpush1.msra.mxu0 %v1201
  %3359 = vmatprep.subr.mxu0 0.0
  %3360 = vmatpush1.msra.mxu0 0.0
  %3361 = vmatprep.subr.mxu0 0.0
  %3362 = vmatpush1.msra.mxu0 0.0
  %3363 = vmatprep.subr.mxu0 0.0
  %3364 = vmatpush1.msra.mxu0 0.0
  %3365 = vmatprep.subr.mxu0 0.0
  %3366 = vmatpush1.msra.mxu0 0.0
  %3367 = vmatprep.subr.mxu0 0.0
  %3368 = vmatpush1.msra.mxu0 0.0
  %3369 = vmatprep.subr.mxu0 0.0
  %3370 = vmatpush1.msra.mxu0 0.0
  %3371 = vmatprep.subr.mxu0 0.0
  %3372 = vmatpush1.msra.mxu0 0.0
  %3373 = vmatprep.subr.mxu0 0.0
  %3374 = vmatpush1.msra.mxu0 0.0
  %3375 = vmatprep.subr.mxu0 0.0
  %3376 = vmatpush1.msra.mxu0 0.0
  %3377 = vmatprep.subr.mxu0 0.0
  %3378 = vmatpush1.msra.mxu0 0.0
  %3379 = vmatprep.subr.mxu0 0.0
  %3380 = vmatpush1.msra.mxu0 0.0
  %3381 = vmatprep.subr.mxu0 0.0
  %3382 = vmatpush1.msra.mxu0 0.0
  %3383 = vmatprep.subr.mxu0 0.0
  %3384 = vmatpush1.msra.mxu0 0.0
  %3385 = vmatprep.subr.mxu0 0.0
  %3386 = vmatpush1.msra.mxu0 0.0
  %3387 = vmatprep.subr.mxu0 0.0
  %3388 = vmatpush1.msra.mxu0 0.0
  %3389 = vmatprep.subr.mxu0 0.0
  %3390 = vmatpush1.msra.mxu0 0.0
  %3391 = vmatprep.subr.mxu0 0.0
  %3392 = vmatpush1.msra.mxu0 0.0
  %3393 = vmatprep.subr.mxu0 0.0
  %3394 = vmatpush1.msra.mxu0 0.0
  %3395 = vmatprep.subr.mxu0 0.0
  %3396 = vmatpush1.msra.mxu0 0.0
  %3397 = vmatprep.subr.mxu0 0.0
  %3398 = vmatpush1.msra.mxu0 0.0
  %3399 = vmatprep.subr.mxu0 0.0
  %3400 = vmatpush1.msra.mxu0 0.0
  %3401 = vmatprep.subr.mxu0 0.0
  %3402 = vmatpush1.msra.mxu0 0.0
  %3403 = vmatprep.subr.mxu0 0.0
  %3404 = vmatpush1.msra.mxu0 0.0
  %3405 = vmatprep.subr.mxu0 0.0
  %3406 = vmatpush1.msra.mxu0 0.0
  %3407 = vmatprep.subr.mxu0 0.0
  %3408 = vmatpush1.msra.mxu0 0.0
  %3409 = vmatprep.subr.mxu0 0.0
  %3410 = vmatpush1.msra.mxu0 0.0
  %3411 = vmatprep.subr.mxu0 0.0
  %3412 = vmatpush1.msra.mxu0 0.0
  %3413 = vmatprep.subr.mxu0 0.0
  %3414 = vmatpush1.msra.mxu0 0.0
  %3415 = vmatprep.subr.mxu0 0.0
  %3416 = vmatpush1.msra.mxu0 0.0
  %3417 = vmatprep.subr.mxu0 0.0
  %3418 = vmatpush1.msra.mxu0 0.0
  %3419 = vmatprep.subr.mxu0 0.0
  %3420 = vmatpush1.msra.mxu0 0.0
  %3421 = vmatprep.mubr.f32.mxu0 0.0
  %3422 = vmatmul.mubr.f32.gmra.mrb[0].mxu0 %v3355
  %v3423 = vpop.f32.mrb[0].mxu0
  %v3424 = vadd.f32 0.0, %v3423
  %v3425 = vpop.f32.mrb[0].mxu0
  %3426 = vdwg.mxu0
  %v3428 = vsel %vm1236, %v1234, 0
  %3430 = vmatprep.subr.mxu0 0.0
  %3431 = vmatpush1.msra.mxu0 %v1202
  %3432 = vmatprep.subr.mxu0 0.0
  %3433 = vmatpush1.msra.mxu0 0.0
  %3434 = vmatprep.subr.mxu0 0.0
  %3435 = vmatpush1.msra.mxu0 0.0
  %3436 = vmatprep.subr.mxu0 0.0
  %3437 = vmatpush1.msra.mxu0 0.0
  %3438 = vmatprep.subr.mxu0 0.0
  %3439 = vmatpush1.msra.mxu0 0.0
  %3440 = vmatprep.subr.mxu0 0.0
  %3441 = vmatpush1.msra.mxu0 0.0
  %3442 = vmatprep.subr.mxu0 0.0
  %3443 = vmatpush1.msra.mxu0 0.0
  %3444 = vmatprep.subr.mxu0 0.0
  %3445 = vmatpush1.msra.mxu0 0.0
  %3446 = vmatprep.subr.mxu0 0.0
  %3447 = vmatpush1.msra.mxu0 0.0
  %3448 = vmatprep.subr.mxu0 0.0
  %3449 = vmatpush1.msra.mxu0 0.0
  %3450 = vmatprep.subr.mxu0 0.0
  %3451 = vmatpush1.msra.mxu0 0.0
  %3452 = vmatprep.subr.mxu0 0.0
  %3453 = vmatpush1.msra.mxu0 0.0
  %3454 = vmatprep.subr.mxu0 0.0
  %3455 = vmatpush1.msra.mxu0 0.0
  %3456 = vmatprep.subr.mxu0 0.0
  %3457 = vmatpush1.msra.mxu0 0.0
  %3458 = vmatprep.subr.mxu0 0.0
  %3459 = vmatpush1.msra.mxu0 0.0
  %3460 = vmatprep.subr.mxu0 0.0
  %3461 = vmatpush1.msra.mxu0 0.0
  %3462 = vmatprep.subr.mxu0 0.0
  %3463 = vmatpush1.msra.mxu0 0.0
  %3464 = vmatprep.subr.mxu0 0.0
  %3465 = vmatpush1.msra.mxu0 0.0
  %3466 = vmatprep.subr.mxu0 0.0
  %3467 = vmatpush1.msra.mxu0 0.0
  %3468 = vmatprep.subr.mxu0 0.0
  %3469 = vmatpush1.msra.mxu0 0.0
  %3470 = vmatprep.subr.mxu0 0.0
  %3471 = vmatpush1.msra.mxu0 0.0
  %3472 = vmatprep.subr.mxu0 0.0
  %3473 = vmatpush1.msra.mxu0 0.0
  %3474 = vmatprep.subr.mxu0 0.0
  %3475 = vmatpush1.msra.mxu0 0.0
  %3476 = vmatprep.subr.mxu0 0.0
  %3477 = vmatpush1.msra.mxu0 0.0
  %3478 = vmatprep.subr.mxu0 0.0
  %3479 = vmatpush1.msra.mxu0 0.0
  %3480 = vmatprep.subr.mxu0 0.0
  %3481 = vmatpush1.msra.mxu0 0.0
  %3482 = vmatprep.subr.mxu0 0.0
  %3483 = vmatpush1.msra.mxu0 0.0
  %3484 = vmatprep.subr.mxu0 0.0
  %3485 = vmatpush1.msra.mxu0 0.0
  %3486 = vmatprep.subr.mxu0 0.0
  %3487 = vmatpush1.msra.mxu0 0.0
  %3488 = vmatprep.subr.mxu0 0.0
  %3489 = vmatpush1.msra.mxu0 0.0
  %3490 = vmatprep.subr.mxu0 0.0
  %3491 = vmatpush1.msra.mxu0 0.0
  %3492 = vmatprep.subr.mxu0 0.0
  %3493 = vmatpush1.msra.mxu0 0.0
  %3494 = vmatprep.mubr.f32.mxu0 0.0
  %3495 = vmatmul.mubr.f32.gmra.mrb[0].mxu0 %v3428
  %v3496 = vpop.f32.mrb[0].mxu0
  %v3497 = vadd.f32 0.0, %v3496
  %v3498 = vpop.f32.mrb[0].mxu0
  %3499 = vdwg.mxu0
  %v3501 = vsel %vm1236, %v1235, 0
  %3503 = vmatprep.subr.mxu0 0.0
  %3504 = vmatpush1.msra.mxu0 %v1203
  %3505 = vmatprep.subr.mxu0 0.0
  %3506 = vmatpush1.msra.mxu0 0.0
  %3507 = vmatprep.subr.mxu0 0.0
  %3508 = vmatpush1.msra.mxu0 0.0
  %3509 = vmatprep.subr.mxu0 0.0
  %3510 = vmatpush1.msra.mxu0 0.0
  %3511 = vmatprep.subr.mxu0 0.0
  %3512 = vmatpush1.msra.mxu0 0.0
  %3513 = vmatprep.subr.mxu0 0.0
  %3514 = vmatpush1.msra.mxu0 0.0
  %3515 = vmatprep.subr.mxu0 0.0
  %3516 = vmatpush1.msra.mxu0 0.0
  %3517 = vmatprep.subr.mxu0 0.0
  %3518 = vmatpush1.msra.mxu0 0.0
  %3519 = vmatprep.subr.mxu0 0.0
  %3520 = vmatpush1.msra.mxu0 0.0
  %3521 = vmatprep.subr.mxu0 0.0
  %3522 = vmatpush1.msra.mxu0 0.0
  %3523 = vmatprep.subr.mxu0 0.0
  %3524 = vmatpush1.msra.mxu0 0.0
  %3525 = vmatprep.subr.mxu0 0.0
  %3526 = vmatpush1.msra.mxu0 0.0
  %3527 = vmatprep.subr.mxu0 0.0
  %3528 = vmatpush1.msra.mxu0 0.0
  %3529 = vmatprep.subr.mxu0 0.0
  %3530 = vmatpush1.msra.mxu0 0.0
  %3531 = vmatprep.subr.mxu0 0.0
  %3532 = vmatpush1.msra.mxu0 0.0
  %3533 = vmatprep.subr.mxu0 0.0
  %3534 = vmatpush1.msra.mxu0 0.0
  %3535 = vmatprep.subr.mxu0 0.0
  %3536 = vmatpush1.msra.mxu0 0.0
  %3537 = vmatprep.subr.mxu0 0.0
  %3538 = vmatpush1.msra.mxu0 0.0
  %3539 = vmatprep.subr.mxu0 0.0
  %3540 = vmatpush1.msra.mxu0 0.0
  %3541 = vmatprep.subr.mxu0 0.0
  %3542 = vmatpush1.msra.mxu0 0.0
  %3543 = vmatprep.subr.mxu0 0.0
  %3544 = vmatpush1.msra.mxu0 0.0
  %3545 = vmatprep.subr.mxu0 0.0
  %3546 = vmatpush1.msra.mxu0 0.0
  %3547 = vmatprep.subr.mxu0 0.0
  %3548 = vmatpush1.msra.mxu0 0.0
  %3549 = vmatprep.subr.mxu0 0.0
  %3550 = vmatpush1.msra.mxu0 0.0
  %3551 = vmatprep.subr.mxu0 0.0
  %3552 = vmatpush1.msra.mxu0 0.0
  %3553 = vmatprep.subr.mxu0 0.0
  %3554 = vmatpush1.msra.mxu0 0.0
  %3555 = vmatprep.subr.mxu0 0.0
  %3556 = vmatpush1.msra.mxu0 0.0
  %3557 = vmatprep.subr.mxu0 0.0
  %3558 = vmatpush1.msra.mxu0 0.0
  %3559 = vmatprep.subr.mxu0 0.0
  %3560 = vmatpush1.msra.mxu0 0.0
  %3561 = vmatprep.subr.mxu0 0.0
  %3562 = vmatpush1.msra.mxu0 0.0
  %3563 = vmatprep.subr.mxu0 0.0
  %3564 = vmatpush1.msra.mxu0 0.0
  %3565 = vmatprep.subr.mxu0 0.0
  %3566 = vmatpush1.msra.mxu0 0.0
  %3567 = vmatprep.mubr.f32.mxu0 0.0
  %3568 = vmatmul.mubr.f32.gmra.mrb[0].mxu0 %v3501
  %v3569 = vpop.f32.mrb[0].mxu0
  %v3570 = vadd.f32 0.0, %v3569
  %v3571 = vpop.f32.mrb[0].mxu0
  %3572 = vdwg.mxu0
  %v3605 = vrot.slane %v1380, 7
  %vm3606 = vcmask 1041409
  %v3607 = vsel %vm3606, %v3605, %v1307
  %v3608 = vrot.slane %v1453, 6
  %vm3609 = vcmask 1042434
  %v3610 = vsel %vm3609, %v3608, %v3607
  %v3611 = vrot.slane %v1526, 5
  %vm3612 = vcmask 1043459
  %v3613 = vsel %vm3612, %v3611, %v3610
  %v3614 = vrot.slane %v1599, 4
  %vm3615 = vcmask 1044484
  %v3616 = vsel %vm3615, %v3614, %v3613
  %v3617 = vrot.slane %v1672, 3
  %vm3618 = vcmask 1045509
  %v3619 = vsel %vm3618, %v3617, %v3616
  %v3620 = vrot.slane %v1745, 2
  %vm3621 = vcmask 1046534
  %v3622 = vsel %vm3621, %v3620, %v3619
  %v3623 = vrot.slane %v1818, 1
  %vm3624 = vcmask 1047559
  %v3625 = vsel %vm3624, %v3623, %v3622
  %v3626 = vrot.slane %v1964, 7
  %v3627 = vsel %vm3606, %v3626, %v1891
  %v3628 = vrot.slane %v2037, 6
  %v3629 = vsel %vm3609, %v3628, %v3627
  %v3630 = vrot.slane %v2110, 5
  %v3631 = vsel %vm3612, %v3630, %v3629
  %v3632 = vrot.slane %v2183, 4
  %v3633 = vsel %vm3615, %v3632, %v3631
  %v3634 = vrot.slane %v2256, 3
  %v3635 = vsel %vm3618, %v3634, %v3633
  %v3636 = vrot.slane %v2329, 2
  %v3637 = vsel %vm3621, %v3636, %v3635
  %v3638 = vrot.slane %v2402, 1
  %v3639 = vsel %vm3624, %v3638, %v3637
  %v3640 = vrot.slane %v2548, 7
  %v3641 = vsel %vm3606, %v3640, %v2475
  %v3642 = vrot.slane %v2621, 6
  %v3643 = vsel %vm3609, %v3642, %v3641
  %v3644 = vrot.slane %v2694, 5
  %v3645 = vsel %vm3612, %v3644, %v3643
  %v3646 = vrot.slane %v2767, 4
  %v3647 = vsel %vm3615, %v3646, %v3645
  %v3648 = vrot.slane %v2840, 3
  %v3649 = vsel %vm3618, %v3648, %v3647
  %v3650 = vrot.slane %v2913, 2
  %v3651 = vsel %vm3621, %v3650, %v3649
  %v3652 = vrot.slane %v2986, 1
  %v3653 = vsel %vm3624, %v3652, %v3651
  %v3654 = vrot.slane %v3132, 7
  %v3655 = vsel %vm3606, %v3654, %v3059
  %v3656 = vrot.slane %v3205, 6
  %v3657 = vsel %vm3609, %v3656, %v3655
  %v3658 = vrot.slane %v3278, 5
  %v3659 = vsel %vm3612, %v3658, %v3657
  %v3660 = vrot.slane %v3351, 4
  %v3661 = vsel %vm3615, %v3660, %v3659
  %v3662 = vrot.slane %v3424, 3
  %v3663 = vsel %vm3618, %v3662, %v3661
  %v3664 = vrot.slane %v3497, 2
  %v3665 = vsel %vm3621, %v3664, %v3663
  %v3666 = vrot.slane %v3570, 1
  %v3667 = vsel %vm3624, %v3666, %v3665
  %vm3672 = vcmask 121856
  %3673 = vst.msk [vmem:[#allocation2] sm:$0xff] %vm3672, %v3625
  %3674 = vst.msk [vmem:[#allocation2 + $0x8] sm:$0xff] %vm3672, %v3639
  %3675 = vst.msk [vmem:[#allocation2 + $0x10] sm:$0xff] %vm3672, %v3653
  %3676 = vst.msk [vmem:[#allocation2 + $0x18] sm:$0xff] %vm3672, %v3667
  %v3677 = vsel %vm3609, %v3605, %v1307
  %v3678 = vsel %vm3612, %v3608, %v3677
  %v3679 = vsel %vm3615, %v3611, %v3678
  %v3680 = vsel %vm3618, %v3614, %v3679
  %v3681 = vsel %vm3621, %v3617, %v3680
  %v3682 = vsel %vm3624, %v3620, %v3681
  %v3683 = vsel %vm3606, %v1891, %v3623
  %v3684 = vsel %vm3609, %v3626, %v3683
  %v3685 = vsel %vm3612, %v3628, %v3684
  %v3686 = vsel %vm3615, %v3630, %v3685
  %v3687 = vsel %vm3618, %v3632, %v3686
  %v3688 = vsel %vm3621, %v3634, %v3687
  %v3689 = vsel %vm3624, %v3636, %v3688
  %v3690 = vsel %vm3606, %v2475, %v3638
  %v3691 = vsel %vm3609, %v3640, %v3690
  %v3692 = vsel %vm3612, %v3642, %v3691
  %v3693 = vsel %vm3615, %v3644, %v3692
  %v3694 = vsel %vm3618, %v3646, %v3693
  %v3695 = vsel %vm3621, %v3648, %v3694
  %v3696 = vsel %vm3624, %v3650, %v3695
  %v3697 = vsel %vm3606, %v3059, %v3652
  %v3698 = vsel %vm3609, %v3654, %v3697
  %v3699 = vsel %vm3612, %v3656, %v3698
  %v3700 = vsel %vm3615, %v3658, %v3699
  %v3701 = vsel %vm3618, %v3660, %v3700
  %v3702 = vsel %vm3621, %v3662, %v3701
  %v3703 = vsel %vm3624, %v3664, %v3702
  %3704 = vrot.lane.b32.xlu0 %v3682, 15
  %v3705 = vpop.permute.xlu0 %3704
  %3706 = vrot.lane.b32.xlu0 %v3689, 15
  %v3707 = vpop.permute.xlu0 %3706
  %3708 = vrot.lane.b32.xlu0 %v3696, 15
  %v3709 = vpop.permute.xlu0 %3708
  %3710 = vrot.lane.b32.xlu0 %v3703, 15
  %v3711 = vpop.permute.xlu0 %3710
  %3712 = vrot.lane.b32.xlu0 %v3666, 15
  %v3713 = vpop.permute.xlu0 %3712
  %vm3719 = vcmask 244857
  %3720 = vst.msk [vmem:[#allocation2 - $0x1] sm:$0xfe] %vm3719, %v3705
  %vm3721 = vcmask 244856
  %3722 = vst.msk [vmem:[#allocation2 + $0x7] sm:$0xff] %vm3721, %v3707
  %3723 = vst.msk [vmem:[#allocation2 + $0xf] sm:$0xff] %vm3721, %v3709
  %3724 = vst.msk [vmem:[#allocation2 + $0x17] sm:$0xff] %vm3721, %v3711
  %vm3725 = vcmask 237688
  %3726 = vst.msk [vmem:[#allocation2 + $0x1f] sm:$0x1] %vm3725, %v3713
  %v3727 = vsel %vm3612, %v3605, %v1307
  %v3728 = vsel %vm3615, %v3608, %v3727
  %v3729 = vsel %vm3618, %v3611, %v3728
  %v3730 = vsel %vm3621, %v3614, %v3729
  %v3731 = vsel %vm3624, %v3617, %v3730
  %v3732 = vsel %vm3606, %v3623, %v3620
  %v3733 = vsel %vm3609, %v1891, %v3732
  %v3734 = vsel %vm3612, %v3626, %v3733
  %v3735 = vsel %vm3615, %v3628, %v3734
  %v3736 = vsel %vm3618, %v3630, %v3735
  %v3737 = vsel %vm3621, %v3632, %v3736
  %v3738 = vsel %vm3624, %v3634, %v3737
  %v3739 = vsel %vm3606, %v3638, %v3636
  %v3740 = vsel %vm3609, %v2475, %v3739
  %v3741 = vsel %vm3612, %v3640, %v3740
  %v3742 = vsel %vm3615, %v3642, %v3741
  %v3743 = vsel %vm3618, %v3644, %v3742
  %v3744 = vsel %vm3621, %v3646, %v3743
  %v3745 = vsel %vm3624, %v3648, %v3744
  %v3746 = vsel %vm3606, %v3652, %v3650
  %v3747 = vsel %vm3609, %v3059, %v3746
  %v3748 = vsel %vm3612, %v3654, %v3747
  %v3749 = vsel %vm3615, %v3656, %v3748
  %v3750 = vsel %vm3618, %v3658, %v3749
  %v3751 = vsel %vm3621, %v3660, %v3750
  %v3752 = vsel %vm3624, %v3662, %v3751
  %v3753 = vsel %vm3606, %v3666, %v3664
  %3754 = vrot.lane.b32.xlu0 %v3731, 30
  %v3755 = vpop.permute.xlu0 %3754
  %3756 = vrot.lane.b32.xlu0 %v3738, 30
  %v3757 = vpop.permute.xlu0 %3756
  %3758 = vrot.lane.b32.xlu0 %v3745, 30
  %v3759 = vpop.permute.xlu0 %3758
  %3760 = vrot.lane.b32.xlu0 %v3752, 30
  %v3761 = vpop.permute.xlu0 %3760
  %3762 = vrot.lane.b32.xlu0 %v3753, 30
  %v3763 = vpop.permute.xlu0 %3762
  %vm3769 = vcmask 367858
  %3770 = vst.msk [vmem:[#allocation2 - $0x2] sm:$0xfc] %vm3769, %v3755
  %vm3771 = vcmask 367856
  %3772 = vst.msk [vmem:[#allocation2 + $0x6] sm:$0xff] %vm3771, %v3757
  %3773 = vst.msk [vmem:[#allocation2 + $0xe] sm:$0xff] %vm3771, %v3759
  %3774 = vst.msk [vmem:[#allocation2 + $0x16] sm:$0xff] %vm3771, %v3761
  %vm3775 = vcmask 361712
  %3776 = vst.msk [vmem:[#allocation2 + $0x1e] sm:$0x3] %vm3775, %v3763
  %v3777 = vsel %vm3615, %v3605, %v1307
  %v3778 = vsel %vm3618, %v3608, %v3777
  %v3779 = vsel %vm3621, %v3611, %v3778
  %v3780 = vsel %vm3624, %v3614, %v3779
  %v3781 = vsel %vm3606, %v3620, %v3617
  %v3782 = vsel %vm3609, %v3623, %v3781
  %v3783 = vsel %vm3612, %v1891, %v3782
  %v3784 = vsel %vm3615, %v3626, %v3783
  %v3785 = vsel %vm3618, %v3628, %v3784
  %v3786 = vsel %vm3621, %v3630, %v3785
  %v3787 = vsel %vm3624, %v3632, %v3786
  %v3788 = vsel %vm3606, %v3636, %v3634
  %v3789 = vsel %vm3609, %v3638, %v3788
  %v3790 = vsel %vm3612, %v2475, %v3789
  %v3791 = vsel %vm3615, %v3640, %v3790
  %v3792 = vsel %vm3618, %v3642, %v3791
  %v3793 = vsel %vm3621, %v3644, %v3792
  %v3794 = vsel %vm3624, %v3646, %v3793
  %v3795 = vsel %vm3606, %v3650, %v3648
  %v3796 = vsel %vm3609, %v3652, %v3795
  %v3797 = vsel %vm3612, %v3059, %v3796
  %v3798 = vsel %vm3615, %v3654, %v3797
  %v3799 = vsel %vm3618, %v3656, %v3798
  %v3800 = vsel %vm3621, %v3658, %v3799
  %v3801 = vsel %vm3624, %v3660, %v3800
  %v3802 = vsel %vm3606, %v3664, %v3662
  %v3803 = vsel %vm3609, %v3666, %v3802
  %3804 = vrot.lane.b32.xlu0 %v3780, 45
  %v3805 = vpop.permute.xlu0 %3804
  %3806 = vrot.lane.b32.xlu0 %v3787, 45
  %v3807 = vpop.permute.xlu0 %3806
  %3808 = vrot.lane.b32.xlu0 %v3794, 45
  %v3809 = vpop.permute.xlu0 %3808
  %3810 = vrot.lane.b32.xlu0 %v3801, 45
  %v3811 = vpop.permute.xlu0 %3810
  %3812 = vrot.lane.b32.xlu0 %v3803, 45
  %v3813 = vpop.permute.xlu0 %3812
  %vm3819 = vcmask 490859
  %3820 = vst.msk [vmem:[#allocation2 - $0x3] sm:$0xf8] %vm3819, %v3805
  %vm3821 = vcmask 490856
  %3822 = vst.msk [vmem:[#allocation2 + $0x5] sm:$0xff] %vm3821, %v3807
  %3823 = vst.msk [vmem:[#allocation2 + $0xd] sm:$0xff] %vm3821, %v3809
  %3824 = vst.msk [vmem:[#allocation2 + $0x15] sm:$0xff] %vm3821, %v3811
  %vm3825 = vcmask 485736
  %3826 = vst.msk [vmem:[#allocation2 + $0x1d] sm:$0x7] %vm3825, %v3813
  %v3827 = vld [vmem:[#allocation2] sm:$0xff]
  %v3828 = vld [vmem:[#allocation2 + $0x8] sm:$0xff]
  %v3829 = vld [vmem:[#allocation2 + $0x10] sm:$0xff]
  %v3830 = vld [vmem:[#allocation2 + $0x18] sm:$0xff]
  %v3831 = vld [vmem:[%s6] sm:$0xff]
  %v3832 = vld [vmem:[%s6 + $0x8] sm:$0xff]
  %v3833 = vld [vmem:[%s6 + $0x10] sm:$0xff]
  %v3834 = vld [vmem:[%s6 + $0x18] sm:$0xff]
  %v3835 = vld [vmem:[%s6 + $0x20] sm:$0xff]
  %v3836 = vld [vmem:[%s6 + $0x28] sm:$0xff]
  %v3837 = vld [vmem:[%s6 + $0x30] sm:$0xff]
  %v3838 = vld [vmem:[%s6 + $0x38] sm:$0xf]
  %vm3839 = vcmask 490496
  %v3841 = vsel %vm3839, %v3827, 0
  %v3844 = vsel %vm3839, %v3828, 0
  %v3847 = vsel %vm3839, %v3829, 0
  %v3850 = vsel %vm3839, %v3830, 0
  %vm3852 = vcmask 1043456
  %v3854 = vsel %vm3852, %v3838, 0
  %3856 = vmatprep.subr.mxu0 0.0
  %3857 = vmatpush1.msra.mxu0 %v3831
  %3858 = vmatprep.subr.mxu0 0.0
  %3859 = vmatpush1.msra.mxu0 %v3832
  %3860 = vmatprep.subr.mxu0 0.0
  %3861 = vmatpush1.msra.mxu0 %v3833
  %3862 = vmatprep.subr.mxu0 0.0
  %3863 = vmatpush1.msra.mxu0 %v3834
  %3864 = vmatprep.subr.mxu0 0.0
  %3865 = vmatpush1.msra.mxu0 %v3835
  %3866 = vmatprep.subr.mxu0 0.0
  %3867 = vmatpush1.msra.mxu0 %v3836
  %3868 = vmatprep.subr.mxu0 0.0
  %3869 = vmatpush1.msra.mxu0 %v3837
  %3870 = vmatprep.subr.mxu0 0.0
  %3871 = vmatpush1.msra.mxu0 %v3854
  %3872 = vmatprep.subr.mxu0 0.0
  %3873 = vmatpush1.msra.mxu0 0.0
  %3874 = vmatprep.subr.mxu0 0.0
  %3875 = vmatpush1.msra.mxu0 0.0
  %3876 = vmatprep.subr.mxu0 0.0
  %3877 = vmatpush1.msra.mxu0 0.0
  %3878 = vmatprep.subr.mxu0 0.0
  %3879 = vmatpush1.msra.mxu0 0.0
  %3880 = vmatprep.subr.mxu0 0.0
  %3881 = vmatpush1.msra.mxu0 0.0
  %3882 = vmatprep.subr.mxu0 0.0
  %3883 = vmatpush1.msra.mxu0 0.0
  %3884 = vmatprep.subr.mxu0 0.0
  %3885 = vmatpush1.msra.mxu0 0.0
  %3886 = vmatprep.subr.mxu0 0.0
  %3887 = vmatpush1.msra.mxu0 0.0
  %3888 = vmatprep.subr.mxu0 0.0
  %3889 = vmatpush1.msra.mxu0 0.0
  %3890 = vmatprep.subr.mxu0 0.0
  %3891 = vmatpush1.msra.mxu0 0.0
  %3892 = vmatprep.subr.mxu0 0.0
  %3893 = vmatpush1.msra.mxu0 0.0
  %3894 = vmatprep.subr.mxu0 0.0
  %3895 = vmatpush1.msra.mxu0 0.0
  %3896 = vmatprep.subr.mxu0 0.0
  %3897 = vmatpush1.msra.mxu0 0.0
  %3898 = vmatprep.subr.mxu0 0.0
  %3899 = vmatpush1.msra.mxu0 0.0
  %3900 = vmatprep.subr.mxu0 0.0
  %3901 = vmatpush1.msra.mxu0 0.0
  %3902 = vmatprep.subr.mxu0 0.0
  %3903 = vmatpush1.msra.mxu0 0.0
  %3904 = vmatprep.subr.mxu0 0.0
  %3905 = vmatpush1.msra.mxu0 0.0
  %3906 = vmatprep.subr.mxu0 0.0
  %3907 = vmatpush1.msra.mxu0 0.0
  %3908 = vmatprep.subr.mxu0 0.0
  %3909 = vmatpush1.msra.mxu0 0.0
  %3910 = vmatprep.subr.mxu0 0.0
  %3911 = vmatpush1.msra.mxu0 0.0
  %3912 = vmatprep.subr.mxu0 0.0
  %3913 = vmatpush1.msra.mxu0 0.0
  %3914 = vmatprep.subr.mxu0 0.0
  %3915 = vmatpush1.msra.mxu0 0.0
  %3916 = vmatprep.subr.mxu0 0.0
  %3917 = vmatpush1.msra.mxu0 0.0
  %3918 = vmatprep.subr.mxu0 0.0
  %3919 = vmatpush1.msra.mxu0 0.0
  %3920 = vmatprep.mubr.f32.mxu0 0.0
  %3921 = vmatmul.mubr.f32.gmra.mrb[0].mxu0 %v3841
  %v3922 = vpop.f32.mrb[0].mxu0
  %v3923 = vadd.f32 0.0, %v3922
  %v3924 = vpop.f32.mrb[0].mxu0
  %3925 = vmatprep.mubr.f32.mxu0 0.0
  %3926 = vmatmul.mubr.f32.gmra.mrb[0].mxu0 %v3844
  %v3927 = vpop.f32.mrb[0].mxu0
  %v3928 = vadd.f32 0.0, %v3927
  %v3929 = vpop.f32.mrb[0].mxu0
  %3930 = vmatprep.mubr.f32.mxu0 0.0
  %3931 = vmatmul.mubr.f32.gmra.mrb[0].mxu0 %v3847
  %v3932 = vpop.f32.mrb[0].mxu0
  %v3933 = vadd.f32 0.0, %v3932
  %v3934 = vpop.f32.mrb[0].mxu0
  %3935 = vmatprep.mubr.f32.mxu0 0.0
  %3936 = vmatmul.mubr.f32.gmra.mrb[0].mxu0 %v3850
  %v3937 = vpop.f32.mrb[0].mxu0
  %v3938 = vadd.f32 0.0, %v3937
  %v3939 = vpop.f32.mrb[0].mxu0
  %3940 = vdwg.mxu0
  %v3941 = vld [vmem:[%s3] sm:$0xff]
  %v3942 = vld [vmem:[%s3 + $0x8] sm:$0xff]
  %v3943 = vld [vmem:[%s3 + $0x10] sm:$0xff]
  %v3944 = vld [vmem:[%s3 + $0x18] sm:$0xff]
  %3946 = vset.pattern.permute.xlu0 0
  %3947 = vperm.xlu0 %3946, %v3941
  %v3948 = vpop.permute.xlu0 %3947
  %3951 = vset.pattern.permute.xlu0 0
  %3952 = vperm.xlu0 %3951, %v3942
  %v3953 = vpop.permute.xlu0 %3952
  %3956 = vset.pattern.permute.xlu0 0
  %3957 = vperm.xlu0 %3956, %v3943
  %v3958 = vpop.permute.xlu0 %3957
  %3961 = vset.pattern.permute.xlu0 0
  %3962 = vperm.xlu0 %3961, %v3944
  %v3963 = vpop.permute.xlu0 %3962
  %v3965 = vmul.f32 %v3923, %v3948
  %v3966 = vmul.f32 %v3928, %v3953
  %v3967 = vmul.f32 %v3933, %v3958
  %v3968 = vmul.f32 %v3938, %v3963
  %v3969 = vld [vmem:[%s7] sm:$0x1]
  %v3970 = vld [vmem:[%s8] sm:$0x1]
  %v3971 = vld [vmem:[%s9] sm:$0xff]
  %v3972 = vld [vmem:[%s10] sm:$0xf]
  %v3973 = vsel %vm1236, %v3965, 0.0
  %v3974 = vsel %vm1236, %v3966, 0.0
  %v3975 = vadd.f32 %v3973, %v3974
  %v3976 = vsel %vm1236, %v3967, 0.0
  %v3977 = vadd.f32 %v3975, %v3976
  %v3978 = vsel %vm1236, %v3968, 0.0
  %v3979 = vadd.f32 %v3977, %v3978
  %v3980 = vrot.slane %v3979, 4
  %v3981 = vadd.f32 %v3979, %v3980
  %v3982 = vrot.slane %v3981, 2
  %v3983 = vadd.f32 %v3981, %v3982
  %v3984 = vrot.slane %v3983, 1
  %v3985 = vadd.f32 %v3983, %v3984
  %v3987 = vsel %vm1236, %v3985, 0
  %3989 = vmatprep.subr.mxu0 0.0
  %3990 = vmatpush1.msra.mxu0 %v3971
  %3991 = vmatprep.subr.mxu0 0.0
  %3992 = vmatpush1.msra.mxu0 0.0
  %3993 = vmatprep.subr.mxu0 0.0
  %3994 = vmatpush1.msra.mxu0 0.0
  %3995 = vmatprep.subr.mxu0 0.0
  %3996 = vmatpush1.msra.mxu0 0.0
  %3997 = vmatprep.subr.mxu0 0.0
  %3998 = vmatpush1.msra.mxu0 0.0
  %3999 = vmatprep.subr.mxu0 0.0
  %4000 = vmatpush1.msra.mxu0 0.0
  %4001 = vmatprep.subr.mxu0 0.0
  %4002 = vmatpush1.msra.mxu0 0.0
  %4003 = vmatprep.subr.mxu0 0.0
  %4004 = vmatpush1.msra.mxu0 0.0
  %4005 = vmatprep.subr.mxu0 0.0
  %4006 = vmatpush1.msra.mxu0 0.0
  %4007 = vmatprep.subr.mxu0 0.0
  %4008 = vmatpush1.msra.mxu0 0.0
  %4009 = vmatprep.subr.mxu0 0.0
  %4010 = vmatpush1.msra.mxu0 0.0
  %4011 = vmatprep.subr.mxu0 0.0
  %4012 = vmatpush1.msra.mxu0 0.0
  %4013 = vmatprep.subr.mxu0 0.0
  %4014 = vmatpush1.msra.mxu0 0.0
  %4015 = vmatprep.subr.mxu0 0.0
  %4016 = vmatpush1.msra.mxu0 0.0
  %4017 = vmatprep.subr.mxu0 0.0
  %4018 = vmatpush1.msra.mxu0 0.0
  %4019 = vmatprep.subr.mxu0 0.0
  %4020 = vmatpush1.msra.mxu0 0.0
  %4021 = vmatprep.subr.mxu0 0.0
  %4022 = vmatpush1.msra.mxu0 0.0
  %4023 = vmatprep.subr.mxu0 0.0
  %4024 = vmatpush1.msra.mxu0 0.0
  %4025 = vmatprep.subr.mxu0 0.0
  %4026 = vmatpush1.msra.mxu0 0.0
  %4027 = vmatprep.subr.mxu0 0.0
  %4028 = vmatpush1.msra.mxu0 0.0
  %4029 = vmatprep.subr.mxu0 0.0
  %4030 = vmatpush1.msra.mxu0 0.0
  %4031 = vmatprep.subr.mxu0 0.0
  %4032 = vmatpush1.msra.mxu0 0.0
  %4033 = vmatprep.subr.mxu0 0.0
  %4034 = vmatpush1.msra.mxu0 0.0
  %4035 = vmatprep.subr.mxu0 0.0
  %4036 = vmatpush1.msra.mxu0 0.0
  %4037 = vmatprep.subr.mxu0 0.0
  %4038 = vmatpush1.msra.mxu0 0.0
  %4039 = vmatprep.subr.mxu0 0.0
  %4040 = vmatpush1.msra.mxu0 0.0
  %4041 = vmatprep.subr.mxu0 0.0
  %4042 = vmatpush1.msra.mxu0 0.0
  %4043 = vmatprep.subr.mxu0 0.0
  %4044 = vmatpush1.msra.mxu0 0.0
  %4045 = vmatprep.subr.mxu0 0.0
  %4046 = vmatpush1.msra.mxu0 0.0
  %4047 = vmatprep.subr.mxu0 0.0
  %4048 = vmatpush1.msra.mxu0 0.0
  %4049 = vmatprep.subr.mxu0 0.0
  %4050 = vmatpush1.msra.mxu0 0.0
  %4051 = vmatprep.subr.mxu0 0.0
  %4052 = vmatpush1.msra.mxu0 0.0
  %4053 = vmatprep.mubr.f32.mxu0 0.0
  %4054 = vmatmul.mubr.f32.gmra.mrb[0].mxu0 %v3987
  %v4055 = vpop.f32.mrb[0].mxu0
  %v4056 = vadd.f32 0.0, %v4055
  %v4057 = vpop.f32.mrb[0].mxu0
  %4058 = vdwg.mxu0
  %v4059 = vmul.f32 %v4056, 0.015625
  %vm4060 = vcmask 31744
  %v4062 = vsel %vm4060, %v4059, 0
  %v4065 = vsel %vm3852, %v3972, 0
  %4067 = vmatprep.subr.mxu0 0.0
  %4068 = vmatpush1.msra.mxu0 %v4065
  %4069 = vmatprep.subr.mxu0 0.0
  %4070 = vmatpush1.msra.mxu0 0.0
  %4071 = vmatprep.subr.mxu0 0.0
  %4072 = vmatpush1.msra.mxu0 0.0
  %4073 = vmatprep.subr.mxu0 0.0
  %4074 = vmatpush1.msra.mxu0 0.0
  %4075 = vmatprep.subr.mxu0 0.0
  %4076 = vmatpush1.msra.mxu0 0.0
  %4077 = vmatprep.subr.mxu0 0.0
  %4078 = vmatpush1.msra.mxu0 0.0
  %4079 = vmatprep.subr.mxu0 0.0
  %4080 = vmatpush1.msra.mxu0 0.0
  %4081 = vmatprep.subr.mxu0 0.0
  %4082 = vmatpush1.msra.mxu0 0.0
  %4083 = vmatprep.subr.mxu0 0.0
  %4084 = vmatpush1.msra.mxu0 0.0
  %4085 = vmatprep.subr.mxu0 0.0
  %4086 = vmatpush1.msra.mxu0 0.0
  %4087 = vmatprep.subr.mxu0 0.0
  %4088 = vmatpush1.msra.mxu0 0.0
  %4089 = vmatprep.subr.mxu0 0.0
  %4090 = vmatpush1.msra.mxu0 0.0
  %4091 = vmatprep.subr.mxu0 0.0
  %4092 = vmatpush1.msra.mxu0 0.0
  %4093 = vmatprep.subr.mxu0 0.0
  %4094 = vmatpush1.msra.mxu0 0.0
  %4095 = vmatprep.subr.mxu0 0.0
  %4096 = vmatpush1.msra.mxu0 0.0
  %4097 = vmatprep.subr.mxu0 0.0
  %4098 = vmatpush1.msra.mxu0 0.0
  %4099 = vmatprep.subr.mxu0 0.0
  %4100 = vmatpush1.msra.mxu0 0.0
  %4101 = vmatprep.subr.mxu0 0.0
  %4102 = vmatpush1.msra.mxu0 0.0
  %4103 = vmatprep.subr.mxu0 0.0
  %4104 = vmatpush1.msra.mxu0 0.0
  %4105 = vmatprep.subr.mxu0 0.0
  %4106 = vmatpush1.msra.mxu0 0.0
  %4107 = vmatprep.subr.mxu0 0.0
  %4108 = vmatpush1.msra.mxu0 0.0
  %4109 = vmatprep.subr.mxu0 0.0
  %4110 = vmatpush1.msra.mxu0 0.0
  %4111 = vmatprep.subr.mxu0 0.0
  %4112 = vmatpush1.msra.mxu0 0.0
  %4113 = vmatprep.subr.mxu0 0.0
  %4114 = vmatpush1.msra.mxu0 0.0
  %4115 = vmatprep.subr.mxu0 0.0
  %4116 = vmatpush1.msra.mxu0 0.0
  %4117 = vmatprep.subr.mxu0 0.0
  %4118 = vmatpush1.msra.mxu0 0.0
  %4119 = vmatprep.subr.mxu0 0.0
  %4120 = vmatpush1.msra.mxu0 0.0
  %4121 = vmatprep.subr.mxu0 0.0
  %4122 = vmatpush1.msra.mxu0 0.0
  %4123 = vmatprep.subr.mxu0 0.0
  %4124 = vmatpush1.msra.mxu0 0.0
  %4125 = vmatprep.subr.mxu0 0.0
  %4126 = vmatpush1.msra.mxu0 0.0
  %4127 = vmatprep.subr.mxu0 0.0
  %4128 = vmatpush1.msra.mxu0 0.0
  %4129 = vmatprep.subr.mxu0 0.0
  %4130 = vmatpush1.msra.mxu0 0.0
  %4131 = vmatprep.mubr.f32.mxu0 0.0
  %4132 = vmatmul.mubr.f32.gmra.mrb[0].mxu0 %v4062
  %v4133 = vpop.f32.mrb[0].mxu0
  %v4134 = vadd.f32 0.0, %v4133
  %v4135 = vpop.f32.mrb[0].mxu0
  %4136 = vdwg.mxu0
  %v4137 = vlaneseq
  %v4138 = vshrl.u32 %v4137, 7
  %v4139 = vsub.s32 0, %v4138
  %v4140 = vrot.slane %v4134, %v4139
  %v4141 = vsub.f32 %v3965, %v4140
  %v4142 = vsub.f32 %v3966, %v4140
  %v4143 = vsub.f32 %v3967, %v4140
  %v4144 = vsub.f32 %v3968, %v4140
  %v4145 = vmul.f32 %v4141, %v4141
  %v4146 = vmul.f32 %v4142, %v4142
  %v4147 = vmul.f32 %v4143, %v4143
  %v4148 = vmul.f32 %v4144, %v4144
  %v4149 = vsel %vm1236, %v4145, 0.0
  %v4150 = vsel %vm1236, %v4146, 0.0
  %v4151 = vadd.f32 %v4149, %v4150
  %v4152 = vsel %vm1236, %v4147, 0.0
  %v4153 = vadd.f32 %v4151, %v4152
  %v4154 = vsel %vm1236, %v4148, 0.0
  %v4155 = vadd.f32 %v4153, %v4154
  %v4156 = vrot.slane %v4155, 4
  %v4157 = vadd.f32 %v4155, %v4156
  %v4158 = vrot.slane %v4157, 2
  %v4159 = vadd.f32 %v4157, %v4158
  %v4160 = vrot.slane %v4159, 1
  %v4161 = vadd.f32 %v4159, %v4160
  %v4163 = vsel %vm1236, %v4161, 0
  %4165 = vmatprep.subr.mxu0 0.0
  %4166 = vmatpush1.msra.mxu0 %v3971
  %4167 = vmatprep.subr.mxu0 0.0
  %4168 = vmatpush1.msra.mxu0 0.0
  %4169 = vmatprep.subr.mxu0 0.0
  %4170 = vmatpush1.msra.mxu0 0.0
  %4171 = vmatprep.subr.mxu0 0.0
  %4172 = vmatpush1.msra.mxu0 0.0
  %4173 = vmatprep.subr.mxu0 0.0
  %4174 = vmatpush1.msra.mxu0 0.0
  %4175 = vmatprep.subr.mxu0 0.0
  %4176 = vmatpush1.msra.mxu0 0.0
  %4177 = vmatprep.subr.mxu0 0.0
  %4178 = vmatpush1.msra.mxu0 0.0
  %4179 = vmatprep.subr.mxu0 0.0
  %4180 = vmatpush1.msra.mxu0 0.0
  %4181 = vmatprep.subr.mxu0 0.0
  %4182 = vmatpush1.msra.mxu0 0.0
  %4183 = vmatprep.subr.mxu0 0.0
  %4184 = vmatpush1.msra.mxu0 0.0
  %4185 = vmatprep.subr.mxu0 0.0
  %4186 = vmatpush1.msra.mxu0 0.0
  %4187 = vmatprep.subr.mxu0 0.0
  %4188 = vmatpush1.msra.mxu0 0.0
  %4189 = vmatprep.subr.mxu0 0.0
  %4190 = vmatpush1.msra.mxu0 0.0
  %4191 = vmatprep.subr.mxu0 0.0
  %4192 = vmatpush1.msra.mxu0 0.0
  %4193 = vmatprep.subr.mxu0 0.0
  %4194 = vmatpush1.msra.mxu0 0.0
  %4195 = vmatprep.subr.mxu0 0.0
  %4196 = vmatpush1.msra.mxu0 0.0
  %4197 = vmatprep.subr.mxu0 0.0
  %4198 = vmatpush1.msra.mxu0 0.0
  %4199 = vmatprep.subr.mxu0 0.0
  %4200 = vmatpush1.msra.mxu0 0.0
  %4201 = vmatprep.subr.mxu0 0.0
  %4202 = vmatpush1.msra.mxu0 0.0
  %4203 = vmatprep.subr.mxu0 0.0
  %4204 = vmatpush1.msra.mxu0 0.0
  %4205 = vmatprep.subr.mxu0 0.0
  %4206 = vmatpush1.msra.mxu0 0.0
  %4207 = vmatprep.subr.mxu0 0.0
  %4208 = vmatpush1.msra.mxu0 0.0
  %4209 = vmatprep.subr.mxu0 0.0
  %4210 = vmatpush1.msra.mxu0 0.0
  %4211 = vmatprep.subr.mxu0 0.0
  %4212 = vmatpush1.msra.mxu0 0.0
  %4213 = vmatprep.subr.mxu0 0.0
  %4214 = vmatpush1.msra.mxu0 0.0
  %4215 = vmatprep.subr.mxu0 0.0
  %4216 = vmatpush1.msra.mxu0 0.0
  %4217 = vmatprep.subr.mxu0 0.0
  %4218 = vmatpush1.msra.mxu0 0.0
  %4219 = vmatprep.subr.mxu0 0.0
  %4220 = vmatpush1.msra.mxu0 0.0
  %4221 = vmatprep.subr.mxu0 0.0
  %4222 = vmatpush1.msra.mxu0 0.0
  %4223 = vmatprep.subr.mxu0 0.0
  %4224 = vmatpush1.msra.mxu0 0.0
  %4225 = vmatprep.subr.mxu0 0.0
  %4226 = vmatpush1.msra.mxu0 0.0
  %4227 = vmatprep.subr.mxu0 0.0
  %4228 = vmatpush1.msra.mxu0 0.0
  %4229 = vmatprep.mubr.f32.mxu0 0.0
  %4230 = vmatmul.mubr.f32.gmra.mrb[0].mxu0 %v4163
  %v4231 = vpop.f32.mrb[0].mxu0
  %v4232 = vadd.f32 0.0, %v4231
  %v4233 = vpop.f32.mrb[0].mxu0
  %4234 = vdwg.mxu0
  %v4235 = vmul.f32 %v4232, 0.015625
  %v4236 = vadd.f32 %v4235, 1e-05
  %v4237 = vrsqrt.pop %v4236
  %v4239 = vsel %vm4060, %v4237, 0
  %4241 = vmatprep.subr.mxu0 0.0
  %4242 = vmatpush1.msra.mxu0 %v4065
  %4243 = vmatprep.subr.mxu0 0.0
  %4244 = vmatpush1.msra.mxu0 0.0
  %4245 = vmatprep.subr.mxu0 0.0
  %4246 = vmatpush1.msra.mxu0 0.0
  %4247 = vmatprep.subr.mxu0 0.0
  %4248 = vmatpush1.msra.mxu0 0.0
  %4249 = vmatprep.subr.mxu0 0.0
  %4250 = vmatpush1.msra.mxu0 0.0
  %4251 = vmatprep.subr.mxu0 0.0
  %4252 = vmatpush1.msra.mxu0 0.0
  %4253 = vmatprep.subr.mxu0 0.0
  %4254 = vmatpush1.msra.mxu0 0.0
  %4255 = vmatprep.subr.mxu0 0.0
  %4256 = vmatpush1.msra.mxu0 0.0
  %4257 = vmatprep.subr.mxu0 0.0
  %4258 = vmatpush1.msra.mxu0 0.0
  %4259 = vmatprep.subr.mxu0 0.0
  %4260 = vmatpush1.msra.mxu0 0.0
  %4261 = vmatprep.subr.mxu0 0.0
  %4262 = vmatpush1.msra.mxu0 0.0
  %4263 = vmatprep.subr.mxu0 0.0
  %4264 = vmatpush1.msra.mxu0 0.0
  %4265 = vmatprep.subr.mxu0 0.0
  %4266 = vmatpush1.msra.mxu0 0.0
  %4267 = vmatprep.subr.mxu0 0.0
  %4268 = vmatpush1.msra.mxu0 0.0
  %4269 = vmatprep.subr.mxu0 0.0
  %4270 = vmatpush1.msra.mxu0 0.0
  %4271 = vmatprep.subr.mxu0 0.0
  %4272 = vmatpush1.msra.mxu0 0.0
  %4273 = vmatprep.subr.mxu0 0.0
  %4274 = vmatpush1.msra.mxu0 0.0
  %4275 = vmatprep.subr.mxu0 0.0
  %4276 = vmatpush1.msra.mxu0 0.0
  %4277 = vmatprep.subr.mxu0 0.0
  %4278 = vmatpush1.msra.mxu0 0.0
  %4279 = vmatprep.subr.mxu0 0.0
  %4280 = vmatpush1.msra.mxu0 0.0
  %4281 = vmatprep.subr.mxu0 0.0
  %4282 = vmatpush1.msra.mxu0 0.0
  %4283 = vmatprep.subr.mxu0 0.0
  %4284 = vmatpush1.msra.mxu0 0.0
  %4285 = vmatprep.subr.mxu0 0.0
  %4286 = vmatpush1.msra.mxu0 0.0
  %4287 = vmatprep.subr.mxu0 0.0
  %4288 = vmatpush1.msra.mxu0 0.0
  %4289 = vmatprep.subr.mxu0 0.0
  %4290 = vmatpush1.msra.mxu0 0.0
  %4291 = vmatprep.subr.mxu0 0.0
  %4292 = vmatpush1.msra.mxu0 0.0
  %4293 = vmatprep.subr.mxu0 0.0
  %4294 = vmatpush1.msra.mxu0 0.0
  %4295 = vmatprep.subr.mxu0 0.0
  %4296 = vmatpush1.msra.mxu0 0.0
  %4297 = vmatprep.subr.mxu0 0.0
  %4298 = vmatpush1.msra.mxu0 0.0
  %4299 = vmatprep.subr.mxu0 0.0
  %4300 = vmatpush1.msra.mxu0 0.0
  %4301 = vmatprep.subr.mxu0 0.0
  %4302 = vmatpush1.msra.mxu0 0.0
  %4303 = vmatprep.subr.mxu0 0.0
  %4304 = vmatpush1.msra.mxu0 0.0
  %4305 = vmatprep.mubr.f32.mxu0 0.0
  %4306 = vmatmul.mubr.f32.gmra.mrb[0].mxu0 %v4239
  %v4307 = vpop.f32.mrb[0].mxu0
  %v4308 = vadd.f32 0.0, %v4307
  %v4309 = vpop.f32.mrb[0].mxu0
  %4310 = vdwg.mxu0
  %v4311 = vlaneseq
  %v4312 = vshrl.u32 %v4311, 7
  %v4313 = vsub.s32 0, %v4312
  %v4314 = vrot.slane %v4308, %v4313
  %v4315 = vmul.f32 %v4141, %v4314
  %v4316 = vmul.f32 %v4142, %v4314
  %v4317 = vmul.f32 %v4143, %v4314
  %v4318 = vmul.f32 %v4144, %v4314
  %v4320 = vlaneseq
  %v4321 = vshrl.u32 %v4320, 7
  %v4322 = vsub.s32 0, %v4321
  %v4323 = vrot.slane %v3969, %v4322
  %v4325 = vmul.f32 %v4315, %v4323
  %v4326 = vmul.f32 %v4316, %v4323
  %v4327 = vmul.f32 %v4317, %v4323
  %v4328 = vmul.f32 %v4318, %v4323
  %v4330 = vlaneseq
  %v4331 = vshrl.u32 %v4330, 7
  %v4332 = vsub.s32 0, %v4331
  %v4333 = vrot.slane %v3970, %v4332
  %v4335 = vadd.f32 %v4325, %v4333
  %v4336 = vadd.f32 %v4326, %v4333
  %v4337 = vadd.f32 %v4327, %v4333
  %v4338 = vadd.f32 %v4328, %v4333
  %vm4339 = vcmp.ge.f32.partialorder %v4335, 0.0
  %vm4340 = vcmp.ge.f32.partialorder %v4336, 0.0
  %vm4341 = vcmp.ge.f32.partialorder %v4337, 0.0
  %vm4342 = vcmp.ge.f32.partialorder %v4338, 0.0
  %v4343 = vmul.f32 %v4335, 0.1
  %v4344 = vmul.f32 %v4336, 0.1
  %v4345 = vmul.f32 %v4337, 0.1
  %v4346 = vmul.f32 %v4338, 0.1
  %v4347 = vsel %vm4339, %v4335, %v4343
  %v4348 = vsel %vm4340, %v4336, %v4344
  %v4349 = vsel %vm4341, %v4337, %v4345
  %v4350 = vsel %vm4342, %v4338, %v4346
  %4351 = vst.msk [vmem:[%s11] sm:$0xff] %vm1236, %v4347
  %4352 = vst.msk [vmem:[%s11 + $0x8] sm:$0xff] %vm1236, %v4348
  %4353 = vst.msk [vmem:[%s11 + $0x10] sm:$0xff] %vm1236, %v4349
  %4354 = vst.msk [vmem:[%s11 + $0x18] sm:$0xff] %vm1236, %v4350
  // Predicated region
  $region46: #{tpu_custom_call.1} parent=0 // pred_check
    _
  $region47: #{tpu_custom_call.1} parent=0 // pred_check_branch
    %4356 = sbr.rel (0) target = $region49
  $region48: #{tpu_custom_call.1} parent=0 // pred_region
    _
  $region49: #{tpu_custom_call.1} parent=0 // pred_fallthru
    _
  // Predicated region
  $region50: #{tpu_custom_call.1} parent=0 // pred_check
    _
  $region51: #{tpu_custom_call.1} parent=0 // pred_check_branch
    %4358 = sbr.rel (0) target = $region53
  $region52: #{tpu_custom_call.1} parent=0 // pred_region
    _
  $region53: #{tpu_custom_call.1} parent=0 // pred_fallthru
    _

</llo_original>
